<compile_context>
chip_gen: v6e
topology: v6e:2x2x1
jax: 0.10.0
libtpu: 0.0.40
codegen_flags: <defaults>
</compile_context>

<pallas_src>
import functools

import jax
import jax.numpy as jnp
import numpy as np
from jax.experimental import pallas as pl
from jax.experimental.pallas import tpu as pltpu


TILE_N = 512      # points per tile (review: 512-1024; largest temp ~2 MiB f32)
NEG_BIG = -1e30   # bias for padded class lanes (acts as -inf in log_softmax)


# ----------------------------------------------------------------------------
# Kernel 1/3 (unified): point MLP conv1/conv2/conv3 (BN folded) + running max
# over points.  Grid (B, n_splits, tiles_per_split); the conv3 bias (+relu for
# the STN variant) is deferred to glue past the max.  The per-(b, h) output
# block holds the running max directly (it is resident across the innermost
# "arbitrary" axis), so no scratch is needed.  emit_pointfeat=True also writes
# the 64-channel conv1 output per point (needed for the segmentation concat).
# ----------------------------------------------------------------------------
def _point_mlp_max_kernel(x_ref, w1_ref, b1_ref, w2_ref, b2_ref, w3_ref,
                          *out_refs, n_valid, tile_n, npt, padded,
                          emit_pointfeat):
    if emit_pointfeat:
        pf_ref, acc_ref = out_refs
    else:
        (acc_ref,) = out_refs
    t_idx = pl.program_id(2)

    @pl.when(t_idx == 0)
    def _():
        acc_ref[...] = jnp.full(acc_ref.shape, -jnp.inf, acc_ref.dtype)

    x = x_ref[...]                                                  # (tile_n, 3) f32
    h1 = jnp.maximum(
        jnp.dot(x.astype(jnp.bfloat16), w1_ref[...],
                preferred_element_type=jnp.float32) + b1_ref[...], 0.0)
    if emit_pointfeat:
        pf_ref[...] = h1.astype(jnp.bfloat16)                      # pointfeat tile
    h2 = jnp.maximum(
        jnp.dot(h1.astype(jnp.bfloat16), w2_ref[...],
                preferred_element_type=jnp.float32) + b2_ref[...], 0.0)
    # conv3 without bias / relu (deferred past the max).
    t = jnp.dot(h2.astype(jnp.bfloat16), w3_ref[...],
                preferred_element_type=jnp.float32)                 # (tile_n, 1024)

    def update(vals):
        acc_ref[...] = jnp.maximum(acc_ref[...],
                                   jnp.max(vals, axis=0, keepdims=True))

    if padded:
        g_tile = pl.program_id(1) * npt + t_idx
        needs_mask = (g_tile + 1) * tile_n > n_valid   # only tiles w/ padded rows

        @pl.when(needs_mask)
        def _():
            rows = g_tile * tile_n + jax.lax.broadcasted_iota(jnp.int32, t.shape, 0)
            update(jnp.where(rows < n_valid, t, -jnp.inf))

        @pl.when(jnp.logical_not(needs_mask))
        def _():
            update(t)
    else:
        update(t)


def point_mlp_max(x, w1, b1, w2, b2, w3, *, n_valid, tile_n, n_splits,
                  emit_pointfeat):
    B, n_pad, C = x.shape
    assert n_pad % (tile_n * n_splits) == 0
    npt = (n_pad // tile_n) // n_splits
    const = lambda a: pl.BlockSpec(a.shape, lambda *_: (0,) * a.ndim)
    point_map = lambda b, h, t: (b, h * npt + t, 0)
    in_specs = [pl.BlockSpec((None, tile_n, C), point_map),
                const(w1), const(b1), const(w2), const(b2), const(w3)]
    max_shape = jax.ShapeDtypeStruct((B, n_splits, 1, 1024), jnp.float32)
    max_spec = pl.BlockSpec((None, None, 1, 1024), lambda b, h, t: (b, h, 0, 0))
    if emit_pointfeat:
        out_shape = (jax.ShapeDtypeStruct((B, n_pad, 64), jnp.bfloat16), max_shape)
        out_specs = (pl.BlockSpec((None, tile_n, 64), point_map), max_spec)
    else:
        out_shape = max_shape
        out_specs = max_spec
    return pl.pallas_call(
        functools.partial(_point_mlp_max_kernel, n_valid=n_valid, tile_n=tile_n,
                          npt=npt, padded=(n_pad != n_valid),
                          emit_pointfeat=emit_pointfeat),
        out_shape=out_shape,
        grid=(B, n_splits, npt),
        in_specs=in_specs,
        out_specs=out_specs,
        compiler_params=pltpu.CompilerParams(
            dimension_semantics=("parallel", "parallel", "arbitrary")),
    )(x, w1, b1, w2, b2, w3)


# ----------------------------------------------------------------------------
# Kernel 2: STN3d FC head (fc1/fc2 BN-folded + relu, fc3 + identity).
# Tiny; whole batch in one block; fc1/fc2 use bf16 MXU operands.
# ----------------------------------------------------------------------------
def _stn_fc_head_kernel(f_ref, w4_ref, b4_ref, w5_ref, b5_ref,
                        w6_ref, b6_ref, iden_ref, out_ref):
    f = f_ref[...]                                                  # (B, 1024) f32
    h4 = jnp.maximum(
        jnp.dot(f.astype(jnp.bfloat16), w4_ref[...],
                preferred_element_type=jnp.float32) + b4_ref[...], 0.0)    # (B, 512)
    h5 = jnp.maximum(
        jnp.dot(h4.astype(jnp.bfloat16), w5_ref[...],
                preferred_element_type=jnp.float32) + b5_ref[...], 0.0)    # (B, 256)
    out_ref[...] = (
        jnp.dot(h5, w6_ref[...], preferred_element_type=jnp.float32)
        + b6_ref[...] + iden_ref[...])                              # (B, 9)


def stn_fc_head(feat, w4, b4, w5, b5, w6, b6, iden):
    B = feat.shape[0]
    kk = w6.shape[1]
    full = lambda a: pl.BlockSpec(a.shape, lambda i: (0,) * a.ndim)
    return pl.pallas_call(
        _stn_fc_head_kernel,
        out_shape=jax.ShapeDtypeStruct((B, kk), jnp.float32),
        grid=(1,),
        in_specs=[full(feat), full(w4), full(b4), full(w5), full(b5),
                  full(w6), full(b6), full(iden)],
        out_specs=pl.BlockSpec((B, kk), lambda i: (0, 0)),
    )(feat, w4, b4, w5, b5, w6, b6, iden)


# ----------------------------------------------------------------------------
# Kernel 4: dense segmentation head.  The concat [global(1024), pointfeat(64)]
# is never materialized: the global contribution  g @ W1g + b1  is precomputed
# per cloud and broadcast-added, so the kernel only does the 64-channel part.
# Ends with log_softmax over a lane-dense, 128-padded class dim (padded lanes
# carry a -1e30 bias so they contribute exactly 0 to the softmax sum).
# ----------------------------------------------------------------------------
def _dense_head_kernel(pf_ref, gc_ref, w1p_ref, w2_ref, b2_ref,
                       w3_ref, b3_ref, w4_ref, b4_ref, out_ref):
    pf = pf_ref[...]                                                # (tile_n, 64) bf16
    h1 = jnp.maximum(
        jnp.dot(pf, w1p_ref[...], preferred_element_type=jnp.float32)
        + gc_ref[...], 0.0)                                         # (tile_n, 512)
    h2 = jnp.maximum(
        jnp.dot(h1.astype(jnp.bfloat16), w2_ref[...],
                preferred_element_type=jnp.float32) + b2_ref[...], 0.0)
    h3 = jnp.maximum(
        jnp.dot(h2.astype(jnp.bfloat16), w3_ref[...],
                preferred_element_type=jnp.float32) + b3_ref[...], 0.0)
    logits = (jnp.dot(h3.astype(jnp.bfloat16), w4_ref[...],
                      preferred_element_type=jnp.float32) + b4_ref[...])   # (tile_n, k_pad)
    m = jnp.max(logits, axis=-1, keepdims=True)
    z = logits - m
    out_ref[...] = z - jnp.log(jnp.sum(jnp.exp(z), axis=-1, keepdims=True))


def dense_head(pf, gc, w1p, w2, b2, w3, b3, w4, b4, *, tile_n):
    B, n_pad, _ = pf.shape
    k_pad = w4.shape[1]
    num_t = n_pad // tile_n
    const = lambda a: pl.BlockSpec(a.shape, lambda *_: (0,) * a.ndim)
    return pl.pallas_call(
        _dense_head_kernel,
        out_shape=jax.ShapeDtypeStruct((B, n_pad, k_pad), jnp.float32),
        grid=(B, num_t),
        in_specs=[
            pl.BlockSpec((None, tile_n, 64), lambda b, t: (b, t, 0)),
            pl.BlockSpec((None, 1, 512), lambda b, t: (b, 0, 0)),
            const(w1p), const(w2), const(b2), const(w3), const(b3),
            const(w4), const(b4),
        ],
        out_specs=pl.BlockSpec((None, tile_n, k_pad), lambda b, t: (b, t, 0)),
        compiler_params=pltpu.CompilerParams(
            dimension_semantics=("parallel", "parallel")),
    )(pf, gc, w1p, w2, b2, w3, b3, w4, b4)


# ----------------------------------------------------------------------------
# Parameter setup / BN folding (plain-JAX glue).
# ----------------------------------------------------------------------------
def fold_bn(W, b, gamma, beta, mean, var, eps=1e-5):
    scale = gamma / jnp.sqrt(var + eps)
    return W * scale[:, None], (b - mean) * scale + beta


def init_params(key, k_cls):
    conv_fc = [
        ("stn_conv1", 64, 3), ("stn_conv2", 128, 64), ("stn_conv3", 1024, 128),
        ("stn_fc1", 512, 1024), ("stn_fc2", 256, 512), ("stn_fc3", 9, 256),
        ("feat_conv1", 64, 3), ("feat_conv2", 128, 64), ("feat_conv3", 1024, 128),
        ("seg_conv1", 512, 1088), ("seg_conv2", 256, 512),
        ("seg_conv3", 128, 256), ("seg_conv4", k_cls, 128),
    ]
    bns = [("stn_bn1", 64), ("stn_bn2", 128), ("stn_bn3", 1024),
           ("stn_bn4", 512), ("stn_bn5", 256),
           ("feat_bn1", 64), ("feat_bn2", 128), ("feat_bn3", 1024),
           ("seg_bn1", 512), ("seg_bn2", 256), ("seg_bn3", 128)]
    params = {}
    for name, cout, cin in conv_fc:
        key, kw, kb = jax.random.split(key, 3)
        bound = 1.0 / np.sqrt(cin)
        params[name + "_w"] = jax.random.uniform(kw, (cout, cin), jnp.float32,
                                                 -bound, bound)
        params[name + "_b"] = jax.random.uniform(kb, (cout,), jnp.float32,
                                                 -bound, bound)
    for name, c in bns:
        key, k1, k2, k3, k4 = jax.random.split(key, 5)
        params[name + "_gamma"] = jax.random.uniform(k1, (c,), jnp.float32, 0.5, 1.5)
        params[name + "_beta"] = jax.random.uniform(k2, (c,), jnp.float32, -0.2, 0.2)
        params[name + "_mean"] = jax.random.uniform(k3, (c,), jnp.float32, -0.2, 0.2)
        params[name + "_var"] = jax.random.uniform(k4, (c,), jnp.float32, 0.5, 1.5)
    return params


def prepare_weights(params):
    """Fold BN, transpose to (in, out); MXU matmul operands bf16, biases f32."""
    def conv_bn(conv, bn, dtype=jnp.bfloat16):
        W, b = fold_bn(params[conv + "_w"], params[conv + "_b"],
                       params[bn + "_gamma"], params[bn + "_beta"],
                       params[bn + "_mean"], params[bn + "_var"])
        return W.T.astype(dtype), b[None, :].astype(jnp.float32)

    def plain(conv, dtype):
        return (params[conv + "_w"].T.astype(dtype),
                params[conv + "_b"][None, :].astype(jnp.float32))

    wp = {}
    wp["s_w1"], wp["s_b1"] = conv_bn("stn_conv1", "stn_bn1")
    wp["s_w2"], wp["s_b2"] = conv_bn("stn_conv2", "stn_bn2")
    wp["s_w3"], wp["s_b3"] = conv_bn("stn_conv3", "stn_bn3")
    wp["s_w4"], wp["s_b4"] = conv_bn("stn_fc1", "stn_bn4")      # bf16 MXU operands
    wp["s_w5"], wp["s_b5"] = conv_bn("stn_fc2", "stn_bn5")      # bf16 MXU operands
    wp["s_w6"], wp["s_b6"] = plain("stn_fc3", jnp.float32)
    wp["f_w1"], wp["f_b1"] = conv_bn("feat_conv1", "feat_bn1")
    wp["f_w2"], wp["f_b2"] = conv_bn("feat_conv2", "feat_bn2")
    wp["f_w3"], wp["f_b3"] = conv_bn("feat_conv3", "feat_bn3")
    wp["d_w1"], wp["d_b1"] = conv_bn("seg_conv1", "seg_bn1")     # (1088, 512)
    wp["d_w2"], wp["d_b2"] = conv_bn("seg_conv2", "seg_bn2")
    wp["d_w3"], wp["d_b3"] = conv_bn("seg_conv3", "seg_bn3")
    wp["d_w4"], wp["d_b4"] = plain("seg_conv4", jnp.bfloat16)    # conv4 has no BN
    return wp


# ----------------------------------------------------------------------------
# Full forward: PointNetDenseCls (global_feat=False, feature_transform=False).
# ----------------------------------------------------------------------------
def pointnet_densecls_forward(x_bcn, wp, tile_n=TILE_N, point_splits=None):
    B, C, N = x_bcn.shape
    if point_splits is None:
        # v7x megacore: with a single cloud, keep both TensorCores busy by
        # splitting the point axis into two parallel halves.
        point_splits = 2 if B == 1 else 1
    chunk = tile_n * point_splits
    n_pad = ((N + chunk - 1) // chunk) * chunk
    x_bnc = jnp.transpose(x_bcn, (0, 2, 1)).astype(jnp.float32)     # (B, N, 3)
    x_pad = jnp.pad(x_bnc, ((0, 0), (0, n_pad - N), (0, 0))) if n_pad != N else x_bnc

    # --- STN3d -> 3x3 input transform ---
    stn_partial = point_mlp_max(x_pad, wp["s_w1"], wp["s_b1"], wp["s_w2"],
                                wp["s_b2"], wp["s_w3"], n_valid=N, tile_n=tile_n,
                                n_splits=point_splits, emit_pointfeat=False)
    # max(relu(z + b)) == relu(max(z) + b)  (relu monotone, b const over points)
    stn_feat = jnp.maximum(
        jnp.max(stn_partial, axis=1).reshape(B, 1024) + wp["s_b3"], 0.0)

    iden3 = jnp.eye(3, dtype=jnp.float32).reshape(1, 9)
    trans = stn_fc_head(stn_feat, wp["s_w4"], wp["s_b4"], wp["s_w5"], wp["s_b5"],
                        wp["s_w6"], wp["s_b6"], iden3).reshape(B, 3, 3)

    # --- apply the 3x3 transform (tiny bmm; plain-JAX glue) ---
    x_t = jnp.einsum("bnc,bcj->bnj", x_pad, trans)                  # (B, n_pad, 3)

    # --- PointNetfeat: per-point features + global max feature ---
    pointfeat, feat_partial = point_mlp_max(
        x_t, wp["f_w1"], wp["f_b1"], wp["f_w2"], wp["f_b2"], wp["f_w3"],
        n_valid=N, tile_n=tile_n, n_splits=point_splits, emit_pointfeat=True)
    # PointNetfeat: x = bn3(conv3(x)) (NO relu) then max -> add bias only.
    gfeat = jnp.max(feat_partial, axis=1).reshape(B, 1024) + wp["f_b3"]

    # --- seg-head conv1: split the 1088-channel matmul; the global part is
    #     computed once per cloud in plain JAX and broadcast inside the kernel.
    d_w1g, d_w1p = wp["d_w1"][:1024], wp["d_w1"][1024:]
    g_contrib = (jnp.dot(gfeat.astype(jnp.bfloat16), d_w1g,
                         preferred_element_type=jnp.float32) + wp["d_b1"])
    g_contrib = g_contrib[:, None, :]                               # (B, 1, 512)

    # --- lane-dense class padding for the dense head output ---
    k_cls = wp["d_w4"].shape[1]
    k_pad = max(128, ((k_cls + 127) // 128) * 128)
    if k_pad != k_cls:
        w4 = jnp.pad(wp["d_w4"], ((0, 0), (0, k_pad - k_cls)))
        b4 = jnp.pad(wp["d_b4"], ((0, 0), (0, k_pad - k_cls)),
                     constant_values=NEG_BIG)
    else:
        w4, b4 = wp["d_w4"], wp["d_b4"]

    logp = dense_head(pointfeat, g_contrib, d_w1p, wp["d_w2"], wp["d_b2"],
                      wp["d_w3"], wp["d_b3"], w4, b4, tile_n=tile_n)
    return logp[:, :N, :k_cls], trans, None


# ----------------------------------------------------------------------------
# Pure-JAX reference (same bf16 cast points) for verification.
# ----------------------------------------------------------------------------
def pointnet_densecls_reference(x_bcn, wp):
    f32, bf16 = jnp.float32, jnp.bfloat16
    B, C, N = x_bcn.shape
    x = jnp.transpose(x_bcn, (0, 2, 1)).astype(f32)

    def lin(h, w, b, relu=True, bf=True):
        hh = h.astype(bf16) if bf else h
        y = jnp.dot(hh, w, preferred_element_type=f32) + b
        return jnp.maximum(y, 0.0) if relu else y

    # STN3d
    h = lin(x, wp["s_w1"], wp["s_b1"])
    h = lin(h, wp["s_w2"], wp["s_b2"])
    h = lin(h, wp["s_w3"], wp["s_b3"])
    sf = jnp.max(h, axis=1)
    h = lin(sf, wp["s_w4"], wp["s_b4"])
    h = lin(h, wp["s_w5"], wp["s_b5"])
    trans = (lin(h, wp["s_w6"], wp["s_b6"], relu=False, bf=False)
             + jnp.eye(3, dtype=f32).reshape(1, 9)).reshape(B, 3, 3)
    # input transform
    x_t = jnp.einsum("bnc,bcj->bnj", x, trans)
    # PointNetfeat
    pf = lin(x_t, wp["f_w1"], wp["f_b1"])                           # (B, N, 64)
    h = lin(pf, wp["f_w2"], wp["f_b2"])
    h = lin(h, wp["f_w3"], wp["f_b3"], relu=False)                  # no relu before max
    g = jnp.max(h, axis=1)                                          # (B, 1024)
    # concat + segmentation head
    gr = jnp.broadcast_to(g[:, None, :], (B, N, 1024))
    cat = jnp.concatenate([gr, pf], axis=-1)                        # (B, N, 1088)
    h = lin(cat, wp["d_w1"], wp["d_b1"])
    h = lin(h, wp["d_w2"], wp["d_b2"])
    h = lin(h, wp["d_w3"], wp["d_b3"])
    logits = lin(h, wp["d_w4"], wp["d_b4"], relu=False)
    return jax.nn.log_softmax(logits, axis=-1), trans, None


if __name__ == "__main__":
    B, N, K_CLS = 2, 300, 2        # small test: 2 clouds, 300 points, 2 classes

    key = jax.random.PRNGKey(0)
    key, kx, kp = jax.random.split(key, 3)
    x = jax.random.normal(kx, (B, 3, N), jnp.float32)   # PyTorch NCW layout
    params = init_params(kp, K_CLS)
    wp = prepare_weights(params)

    # Default path (B=2 -> point_splits=1)
    logp, trans, trans_feat = pointnet_densecls_forward(x, wp)
    logp = jax.block_until_ready(logp)
    trans = jax.block_until_ready(trans)

    ref_logp, ref_trans, _ = pointnet_densecls_reference(x, wp)
    assert logp.shape == (B, N, K_CLS), logp.shape
    assert trans.shape == (B, 3, 3), trans.shape
    assert trans_feat is None
    np.testing.assert_allclose(np.asarray(trans), np.asarray(ref_trans),
                               rtol=2e-2, atol=2e-2)
    np.testing.assert_allclose(np.asarray(logp), np.asarray(ref_logp),
                               rtol=2e-2, atol=2e-2)

    # Exercise the v7x megacore point-split path (B=1 -> point_splits=2)
    x1 = x[:1]
    logp1, trans1, _ = pointnet_densecls_forward(x1, wp)
    logp1 = jax.block_until_ready(logp1)
    ref_logp1, ref_trans1, _ = pointnet_densecls_reference(x1, wp)
    np.testing.assert_allclose(np.asarray(trans1), np.asarray(ref_trans1),
                               rtol=2e-2, atol=2e-2)
    np.testing.assert_allclose(np.asarray(logp1), np.asarray(ref_logp1),
                               rtol=2e-2, atol=2e-2)

    print("KERNEL_OK")
</pallas_src>

<mosaic_0001>
module attributes {stable_mosaic.version = 11 : i64} {
  func.func @_point_mlp_max_kernel(%arg0: i32, %arg1: i32, %arg2: i32, %arg3: memref<1x512x3xf32, #tpu.memory_space<vmem>>, %arg4: memref<3x64xbf16, #tpu.memory_space<vmem>>, %arg5: memref<1x64xf32, #tpu.memory_space<vmem>>, %arg6: memref<64x128xbf16, #tpu.memory_space<vmem>>, %arg7: memref<1x128xf32, #tpu.memory_space<vmem>>, %arg8: memref<128x1024xbf16, #tpu.memory_space<vmem>>, %arg9: memref<1x1x1x1024xf32, #tpu.memory_space<vmem>>) attributes {dimension_semantics = [#tpu.dimension_semantics<parallel>, #tpu.dimension_semantics<parallel>, #tpu.dimension_semantics<arbitrary>], iteration_bounds = array<i64: 2, 1, 1>, scalar_prefetch = 0 : i64, scratch_operands = 0 : i64, tpu.core_type = #tpu.core_type<tc>, window_params = [{transform_indices = @transform_0, window_bounds = array<i64: 1, 512, 3>}, {pipeline_mode = #tpu.pipeline_mode<synchronous>, transform_indices = @transform_1, window_bounds = array<i64: 3, 64>}, {pipeline_mode = #tpu.pipeline_mode<synchronous>, transform_indices = @transform_2, window_bounds = array<i64: 1, 64>}, {pipeline_mode = #tpu.pipeline_mode<synchronous>, transform_indices = @transform_3, window_bounds = array<i64: 64, 128>}, {pipeline_mode = #tpu.pipeline_mode<synchronous>, transform_indices = @transform_4, window_bounds = array<i64: 1, 128>}, {pipeline_mode = #tpu.pipeline_mode<synchronous>, transform_indices = @transform_5, window_bounds = array<i64: 128, 1024>}, {transform_indices = @transform_6, window_bounds = array<i64: 1, 1, 1, 1024>}]} {
    %c0_i32 = arith.constant 0 : i32
    %0 = arith.cmpi eq, %arg2, %c0_i32 : i32
    %1 = arith.extui %0 : i1 to i32
    %c0_i32_0 = arith.constant 0 : i32
    %2 = arith.cmpi ne, %1, %c0_i32_0 : i32
    scf.if %2 {
      %cst_20 = arith.constant 0xFF800000 : f32
      %34 = vector.broadcast %cst_20 : f32 to vector<1x1024xf32>
      %c0_21 = arith.constant 0 : index
      %c0_22 = arith.constant 0 : index
      %c0_23 = arith.constant 0 : index
      %c0_24 = arith.constant 0 : index
      %35 = vector.load %arg9[%c0_21, %c0_22, %c0_23, %c0_24] : memref<1x1x1x1024xf32, #tpu.memory_space<vmem>>, vector<1x1x1x1024xf32>
      %36 = vector.shape_cast %35 : vector<1x1x1x1024xf32> to vector<1x1024xf32>
      %37 = vector.shape_cast %34 : vector<1x1024xf32> to vector<1x1x1x1024xf32>
      tpu.vector_store %arg9[%c0_21, %c0_22, %c0_23, %c0_24], %37 {strides = array<i32>} : memref<1x1x1x1024xf32, #tpu.memory_space<vmem>>, vector<1x1x1x1024xf32>,
    } else {
    }
    %c0 = arith.constant 0 : index
    %c0_1 = arith.constant 0 : index
    %c0_2 = arith.constant 0 : index
    %3 = vector.load %arg3[%c0, %c0_1, %c0_2] : memref<1x512x3xf32, #tpu.memory_space<vmem>>, vector<1x512x3xf32>
    %4 = vector.shape_cast %3 : vector<1x512x3xf32> to vector<512x3xf32>
    %5 = arith.truncf %4 : vector<512x3xf32> to vector<512x3xbf16>
    %c0_3 = arith.constant 0 : index
    %c0_4 = arith.constant 0 : index
    %6 = vector.load %arg4[%c0_3, %c0_4] : memref<3x64xbf16, #tpu.memory_space<vmem>>, vector<3x64xbf16>
    %cst = arith.constant dense<0.000000e+00> : vector<512x64xf32>
    %7 = tpu.matmul %5, %6, %cst {dimension_numbers = #tpu.dot_dimension_numbers<[1], [0], [0], [1], [0, 0, 1, 1], [], []>} : vector<512x3xbf16>, vector<3x64xbf16>, vector<512x64xf32> -> vector<512x64xf32>
    %c0_5 = arith.constant 0 : index
    %c0_6 = arith.constant 0 : index
    %8 = vector.load %arg5[%c0_5, %c0_6] : memref<1x64xf32, #tpu.memory_space<vmem>>, vector<1x64xf32>
    %9 = vector.broadcast %8 : vector<1x64xf32> to vector<512x64xf32>
    %10 = arith.addf %7, %9 : vector<512x64xf32>
    %cst_7 = arith.constant 0.000000e+00 : f32
    %11 = vector.broadcast %cst_7 : f32 to vector<512x64xf32>
    %12 = arith.maximumf %10, %11 : vector<512x64xf32>
    %13 = arith.truncf %12 : vector<512x64xf32> to vector<512x64xbf16>
    %c0_8 = arith.constant 0 : index
    %c0_9 = arith.constant 0 : index
    %14 = vector.load %arg6[%c0_8, %c0_9] : memref<64x128xbf16, #tpu.memory_space<vmem>>, vector<64x128xbf16>
    %cst_10 = arith.constant dense<0.000000e+00> : vector<512x128xf32>
    %15 = tpu.matmul %13, %14, %cst_10 {dimension_numbers = #tpu.dot_dimension_numbers<[1], [0], [0], [1], [0, 0, 1, 1], [], []>} : vector<512x64xbf16>, vector<64x128xbf16>, vector<512x128xf32> -> vector<512x128xf32>
    %c0_11 = arith.constant 0 : index
    %c0_12 = arith.constant 0 : index
    %16 = vector.load %arg7[%c0_11, %c0_12] : memref<1x128xf32, #tpu.memory_space<vmem>>, vector<1x128xf32>
    %17 = vector.broadcast %16 : vector<1x128xf32> to vector<512x128xf32>
    %18 = arith.addf %15, %17 : vector<512x128xf32>
    %cst_13 = arith.constant 0.000000e+00 : f32
    %19 = vector.broadcast %cst_13 : f32 to vector<512x128xf32>
    %20 = arith.maximumf %18, %19 : vector<512x128xf32>
    %21 = arith.truncf %20 : vector<512x128xf32> to vector<512x128xbf16>
    %c0_14 = arith.constant 0 : index
    %c0_15 = arith.constant 0 : index
    %22 = vector.load %arg8[%c0_14, %c0_15] : memref<128x1024xbf16, #tpu.memory_space<vmem>>, vector<128x1024xbf16>
    %cst_16 = arith.constant dense<0.000000e+00> : vector<512x1024xf32>
    %23 = tpu.matmul %21, %22, %cst_16 {dimension_numbers = #tpu.dot_dimension_numbers<[1], [0], [0], [1], [0, 0, 1, 1], [], []>} : vector<512x128xbf16>, vector<128x1024xbf16>, vector<512x1024xf32> -> vector<512x1024xf32>
    %c1_i32 = arith.constant 1 : i32
    %24 = arith.muli %arg1, %c1_i32 : i32
    %25 = arith.addi %24, %arg2 : i32
    %c1_i32_17 = arith.constant 1 : i32
    %26 = arith.addi %25, %c1_i32_17 : i32
    %c512_i32 = arith.constant 512 : i32
    %27 = arith.muli %26, %c512_i32 : i32
    %c300_i32 = arith.constant 300 : i32
    %28 = arith.cmpi sgt, %27, %c300_i32 : i32
    %29 = arith.extui %28 : i1 to i32
    %c0_i32_18 = arith.constant 0 : i32
    %30 = arith.cmpi ne, %29, %c0_i32_18 : i32
    scf.if %30 {
      %c512_i32_20 = arith.constant 512 : i32
      %34 = arith.muli %25, %c512_i32_20 : i32
      %35 = tpu.iota {dimensions = array<i32: 0>} : vector<512x1024xi32>
      %36 = vector.broadcast %34 : i32 to vector<512x1024xi32>
      %37 = arith.addi %36, %35 : vector<512x1024xi32>
      %c300_i32_21 = arith.constant 300 : i32
      %38 = vector.broadcast %c300_i32_21 : i32 to vector<512x1024xi32>
      %39 = arith.cmpi slt, %37, %38 : vector<512x1024xi32>
      %cst_22 = arith.constant 0xFF800000 : f32
      %40 = vector.broadcast %cst_22 : f32 to vector<512x1024xf32>
      %41 = arith.select %39, %23, %40 : vector<512x1024xi1>, vector<512x1024xf32>
      %c0_23 = arith.constant 0 : index
      %c0_24 = arith.constant 0 : index
      %c0_25 = arith.constant 0 : index
      %c0_26 = arith.constant 0 : index
      %42 = vector.load %arg9[%c0_23, %c0_24, %c0_25, %c0_26] : memref<1x1x1x1024xf32, #tpu.memory_space<vmem>>, vector<1x1x1x1024xf32>
      %43 = vector.shape_cast %42 : vector<1x1x1x1024xf32> to vector<1x1024xf32>
      %cst_27 = arith.constant dense<0xFF800000> : vector<1024xf32>
      %44 = vector.multi_reduction <maximumf>, %41, %cst_27 [0] : vector<512x1024xf32> to vector<1024xf32>
      %45 = vector.shape_cast %44 : vector<1024xf32> to vector<1x1024xf32>
      %46 = arith.maximumf %43, %45 : vector<1x1024xf32>
      %c0_28 = arith.constant 0 : index
      %c0_29 = arith.constant 0 : index
      %c0_30 = arith.constant 0 : index
      %c0_31 = arith.constant 0 : index
      %47 = vector.load %arg9[%c0_28, %c0_29, %c0_30, %c0_31] : memref<1x1x1x1024xf32, #tpu.memory_space<vmem>>, vector<1x1x1x1024xf32>
      %48 = vector.shape_cast %47 : vector<1x1x1x1024xf32> to vector<1x1024xf32>
      %49 = vector.shape_cast %46 : vector<1x1024xf32> to vector<1x1x1x1024xf32>
      tpu.vector_store %arg9[%c0_28, %c0_29, %c0_30, %c0_31], %49 {strides = array<i32>} : memref<1x1x1x1024xf32, #tpu.memory_space<vmem>>, vector<1x1x1x1024xf32>,
    } else {
    }
    %true = arith.constant true
    %31 = arith.xori %28, %true : i1
    %32 = arith.extui %31 : i1 to i32
    %c0_i32_19 = arith.constant 0 : i32
    %33 = arith.cmpi ne, %32, %c0_i32_19 : i32
    scf.if %33 {
      %c0_20 = arith.constant 0 : index
      %c0_21 = arith.constant 0 : index
      %c0_22 = arith.constant 0 : index
      %c0_23 = arith.constant 0 : index
      %34 = vector.load %arg9[%c0_20, %c0_21, %c0_22, %c0_23] : memref<1x1x1x1024xf32, #tpu.memory_space<vmem>>, vector<1x1x1x1024xf32>
      %35 = vector.shape_cast %34 : vector<1x1x1x1024xf32> to vector<1x1024xf32>
      %cst_24 = arith.constant dense<0xFF800000> : vector<1024xf32>
      %36 = vector.multi_reduction <maximumf>, %23, %cst_24 [0] : vector<512x1024xf32> to vector<1024xf32>
      %37 = vector.shape_cast %36 : vector<1024xf32> to vector<1x1024xf32>
      %38 = arith.maximumf %35, %37 : vector<1x1024xf32>
      %c0_25 = arith.constant 0 : index
      %c0_26 = arith.constant 0 : index
      %c0_27 = arith.constant 0 : index
      %c0_28 = arith.constant 0 : index
      %39 = vector.load %arg9[%c0_25, %c0_26, %c0_27, %c0_28] : memref<1x1x1x1024xf32, #tpu.memory_space<vmem>>, vector<1x1x1x1024xf32>
      %40 = vector.shape_cast %39 : vector<1x1x1x1024xf32> to vector<1x1024xf32>
      %41 = vector.shape_cast %38 : vector<1x1024xf32> to vector<1x1x1x1024xf32>
      tpu.vector_store %arg9[%c0_25, %c0_26, %c0_27, %c0_28], %41 {strides = array<i32>} : memref<1x1x1x1024xf32, #tpu.memory_space<vmem>>, vector<1x1x1x1024xf32>,
    } else {
    }
    return
  }
  func.func @transform_0(%arg0: i32, %arg1: i32, %arg2: i32) -> (i32, i32, i32) {
    %c1_i32 = arith.constant 1 : i32
    %0 = arith.muli %arg1, %c1_i32 : i32
    %1 = arith.addi %0, %arg2 : i32
    %c0_i32 = arith.constant 0 : i32
    %c0_i32_0 = arith.constant 0 : i32
    return %arg0, %1, %c0_i32 : i32, i32, i32
  }
  func.func @transform_1(%arg0: i32, %arg1: i32, %arg2: i32) -> (i32, i32) {
    %c0_i32 = arith.constant 0 : i32
    %c0_i32_0 = arith.constant 0 : i32
    %c0_i32_1 = arith.constant 0 : i32
    return %c0_i32, %c0_i32_0 : i32, i32
  }
  func.func @transform_2(%arg0: i32, %arg1: i32, %arg2: i32) -> (i32, i32) {
    %c0_i32 = arith.constant 0 : i32
    %c0_i32_0 = arith.constant 0 : i32
    %c0_i32_1 = arith.constant 0 : i32
    return %c0_i32, %c0_i32_0 : i32, i32
  }
  func.func @transform_3(%arg0: i32, %arg1: i32, %arg2: i32) -> (i32, i32) {
    %c0_i32 = arith.constant 0 : i32
    %c0_i32_0 = arith.constant 0 : i32
    %c0_i32_1 = arith.constant 0 : i32
    return %c0_i32, %c0_i32_0 : i32, i32
  }
  func.func @transform_4(%arg0: i32, %arg1: i32, %arg2: i32) -> (i32, i32) {
    %c0_i32 = arith.constant 0 : i32
    %c0_i32_0 = arith.constant 0 : i32
    %c0_i32_1 = arith.constant 0 : i32
    return %c0_i32, %c0_i32_0 : i32, i32
  }
  func.func @transform_5(%arg0: i32, %arg1: i32, %arg2: i32) -> (i32, i32) {
    %c0_i32 = arith.constant 0 : i32
    %c0_i32_0 = arith.constant 0 : i32
    %c0_i32_1 = arith.constant 0 : i32
    return %c0_i32, %c0_i32_0 : i32, i32
  }
  func.func @transform_6(%arg0: i32, %arg1: i32, %arg2: i32) -> (i32, i32, i32, i32) {
    %c0_i32 = arith.constant 0 : i32
    %c0_i32_0 = arith.constant 0 : i32
    %c0_i32_1 = arith.constant 0 : i32
    return %arg0, %arg1, %c0_i32, %c0_i32_0 : i32, i32, i32, i32
  }
}

</mosaic_0001>

<llo_original>
// kernel: tpu_custom_call.1
$region0: #{tpu_custom_call.1}
  #allocation0 [shape = 'u32[]', space=smem, size = 0x4, offset = 0x4, fixed_abs, tag = 'smem constant byte address 0x4 - core index']
  #allocation1 [shape = 'u32[144,128]{1,0:T(1,128)}', space=vmem, size = 0x12000, scoped, tag = 'internal scratch']
  %s0 = inlined_call_operand.vmem [shape: f32[2,512,3], index: 0, kind: input, shape index: {}]
  %s1 = inlined_call_operand.vmem [shape: bf16[3,64], index: 1, kind: input, shape index: {}]
  %s2 = inlined_call_operand.vmem [shape: f32[1,64], index: 2, kind: input, shape index: {}]
  %s3 = inlined_call_operand.vmem [shape: bf16[64,128], index: 3, kind: input, shape index: {}]
  %s4 = inlined_call_operand.vmem [shape: f32[1,128], index: 4, kind: input, shape index: {}]
  %s5 = inlined_call_operand.vmem [shape: bf16[128,1024], index: 5, kind: input, shape index: {}]
  %s6 = inlined_call_operand.hbm [shape: f32[2,1,1,1024], index: 6, kind: output, shape index: {}]
  %s7 = sld [smem:[#allocation0]]
  $region69: #{tpu_custom_call.1} parent=0
    _
  %s9 = ssub.s32 1, %s7
  %s10 = scalar_select 0, %s9, %s7
  $region1: #{tpu_custom_call.1} parent=0
    #allocation2 [shape = 'u8[8192]{0}', space=vmem, size = 0x2000, scoped, tag = 'output window, operand 0']
    #allocation3 [shape = 's32[2]{0}', space=sflag, size = 0x8, scoped, tag = 'scoped memory for tpu_custom_call.1']
    %11 = vsyncpa [#allocation3], 0
    %s12 = scalar_lea.sflag [#allocation3], 1
    %13 = vsyncpa %s12, 0
    loop: start=0, step=1, limit=4
    $region2: #{tpu_custom_call.1} parent=1 // loop_pre_header
      _
    $region3: #{tpu_custom_call.1} parent=1 // loop_header
      %s15 = sphi 0, %s19
      %p16 = scmp.ge.s32.totalorder %s15, 4
      %s22 = sphi 0, %s41
      %s23 = sphi 0, %s37
      %s24 = sphi 0, %s33
      %s25 = sphi 0, %s22
      %s26 = sphi 0, %s23
      %s27 = sphi 0, %s24
      %s28 = sphi 0, %s25
      %s29 = sphi 0, %s26
      %s30 = sphi 0, %s27
      %s48 = sphi 0, %s50
      %s51 = sphi 0, %s48
      %s52 = sphi 0, %s51
      %s68 = sphi 0, %s52
      %s72 = sphi 0, %s72
      %s74 = sphi 0, %s72
      %s75 = sphi 0, %s74
      %s89 = sphi 0, %s75
      %s93 = sphi 0, %s93
      %s95 = sphi 0, %s93
      %s96 = sphi 0, %s95
      %s110 = sphi 0, %s96
      %s114 = sphi 0, %s114
      %s116 = sphi 0, %s114
      %s117 = sphi 0, %s116
      %s131 = sphi 0, %s117
      %s135 = sphi 0, %s135
      %s137 = sphi 0, %s135
      %s138 = sphi 0, %s137
      %s152 = sphi 0, %s138
      %s156 = sphi 0, %s156
      %s158 = sphi 0, %s156
      %s159 = sphi 0, %s158
      %s173 = sphi 0, %s159
      %s181 = sphi 0, %s183
      %s184 = sphi 0, %s181
      %s185 = sphi 0, %s184
      %s201 = sphi 0, %s185
    $region4: #{tpu_custom_call.1} parent=1 // loop_header_branch
      %18 = sbr.rel (%p16) target = $region8
    $region5: #{tpu_custom_call.1} parent=1 // loop_body
      %s20 = ssub.s32 %s15, 1
      %s21 = ssub.s32 %s15, 2
      %s31 = sadd.s32 1, %s24
      %p32 = scmp.ge.s32.totalorder %s31, 1
      %s33 = scalar_select %p32, 0, %s31
      %s34 = sadd.s32 1, %s23
      %s35 = scalar_select %p32, %s34, %s23
      %p36 = scmp.ge.s32.totalorder %s35, 1
      %s37 = scalar_select %p36, 0, %s35
      %s38 = sadd.s32 1, %s22
      %s39 = scalar_select %p36, %s38, %s22
      %p40 = scmp.ge.s32.totalorder %s39, 2
      %s41 = scalar_select %p40, 0, %s39
      %s42 = sadd.s32 %s23, %s24
      %s43 = sadd.s32 %s37, %s33
      %s44 = ssub.s32 %s22, %s41
      %s45 = ssub.s32 %s42, %s43
      %s46 = sor.u32 %s44, %s45
      %p47 = scmp.eq.s32.totalorder %s46, 0
      %s49 = sadd.s32 %s48, 1
      %s50 = scalar_select %p47, %s48, %s49
      %p53 = pneg %p47
      %p54 = scmp.eq.s32.totalorder %s15, 1
      %p55 = por %p53, %p54
      %p56 = scmp.ne.s32.totalorder %s48, %s51
      %p57 = scmp.eq.s32.totalorder %s15, 0
      %p58 = por %p56, %p57
      %p59 = scmp.ne.s32.totalorder %s48, %s51
      %p60 = scmp.eq.s32.totalorder %s20, 1
      %p61 = por %p59, %p60
      %p62 = scmp.ne.s32.totalorder %s51, %s52
      %p63 = scmp.eq.s32.totalorder %s20, 0
      %p64 = por %p62, %p63
      %p65 = scmp.ne.s32.totalorder %s51, %s52
      %p66 = scmp.eq.s32.totalorder %s21, 1
      %p67 = por %p65, %p66
      %p69 = scmp.ne.s32.totalorder %s52, %s68
      %p70 = scmp.eq.s32.totalorder %s21, 0
      %p71 = por %p69, %p70
      %s73 = sadd.s32 %s72, 1
      %p76 = scmp.eq.s32.totalorder %s15, 1
      %p77 = scmp.ne.s32.totalorder %s72, %s74
      %p78 = scmp.eq.s32.totalorder %s15, 0
      %p79 = por %p77, %p78
      %p80 = scmp.ne.s32.totalorder %s72, %s74
      %p81 = scmp.eq.s32.totalorder %s20, 1
      %p82 = por %p80, %p81
      %p83 = scmp.ne.s32.totalorder %s74, %s75
      %p84 = scmp.eq.s32.totalorder %s20, 0
      %p85 = por %p83, %p84
      %p86 = scmp.ne.s32.totalorder %s74, %s75
      %p87 = scmp.eq.s32.totalorder %s21, 1
      %p88 = por %p86, %p87
      %p90 = scmp.ne.s32.totalorder %s75, %s89
      %p91 = scmp.eq.s32.totalorder %s21, 0
      %p92 = por %p90, %p91
      %s94 = sadd.s32 %s93, 1
      %p97 = scmp.eq.s32.totalorder %s15, 1
      %p98 = scmp.ne.s32.totalorder %s93, %s95
      %p99 = scmp.eq.s32.totalorder %s15, 0
      %p100 = por %p98, %p99
      %p101 = scmp.ne.s32.totalorder %s93, %s95
      %p102 = scmp.eq.s32.totalorder %s20, 1
      %p103 = por %p101, %p102
      %p104 = scmp.ne.s32.totalorder %s95, %s96
      %p105 = scmp.eq.s32.totalorder %s20, 0
      %p106 = por %p104, %p105
      %p107 = scmp.ne.s32.totalorder %s95, %s96
      %p108 = scmp.eq.s32.totalorder %s21, 1
      %p109 = por %p107, %p108
      %p111 = scmp.ne.s32.totalorder %s96, %s110
      %p112 = scmp.eq.s32.totalorder %s21, 0
      %p113 = por %p111, %p112
      %s115 = sadd.s32 %s114, 1
      %p118 = scmp.eq.s32.totalorder %s15, 1
      %p119 = scmp.ne.s32.totalorder %s114, %s116
      %p120 = scmp.eq.s32.totalorder %s15, 0
      %p121 = por %p119, %p120
      %p122 = scmp.ne.s32.totalorder %s114, %s116
      %p123 = scmp.eq.s32.totalorder %s20, 1
      %p124 = por %p122, %p123
      %p125 = scmp.ne.s32.totalorder %s116, %s117
      %p126 = scmp.eq.s32.totalorder %s20, 0
      %p127 = por %p125, %p126
      %p128 = scmp.ne.s32.totalorder %s116, %s117
      %p129 = scmp.eq.s32.totalorder %s21, 1
      %p130 = por %p128, %p129
      %p132 = scmp.ne.s32.totalorder %s117, %s131
      %p133 = scmp.eq.s32.totalorder %s21, 0
      %p134 = por %p132, %p133
      %s136 = sadd.s32 %s135, 1
      %p139 = scmp.eq.s32.totalorder %s15, 1
      %p140 = scmp.ne.s32.totalorder %s135, %s137
      %p141 = scmp.eq.s32.totalorder %s15, 0
      %p142 = por %p140, %p141
      %p143 = scmp.ne.s32.totalorder %s135, %s137
      %p144 = scmp.eq.s32.totalorder %s20, 1
      %p145 = por %p143, %p144
      %p146 = scmp.ne.s32.totalorder %s137, %s138
      %p147 = scmp.eq.s32.totalorder %s20, 0
      %p148 = por %p146, %p147
      %p149 = scmp.ne.s32.totalorder %s137, %s138
      %p150 = scmp.eq.s32.totalorder %s21, 1
      %p151 = por %p149, %p150
      %p153 = scmp.ne.s32.totalorder %s138, %s152
      %p154 = scmp.eq.s32.totalorder %s21, 0
      %p155 = por %p153, %p154
      %s157 = sadd.s32 %s156, 1
      %p160 = scmp.eq.s32.totalorder %s15, 1
      %p161 = scmp.ne.s32.totalorder %s156, %s158
      %p162 = scmp.eq.s32.totalorder %s15, 0
      %p163 = por %p161, %p162
      %p164 = scmp.ne.s32.totalorder %s156, %s158
      %p165 = scmp.eq.s32.totalorder %s20, 1
      %p166 = por %p164, %p165
      %p167 = scmp.ne.s32.totalorder %s158, %s159
      %p168 = scmp.eq.s32.totalorder %s20, 0
      %p169 = por %p167, %p168
      %p170 = scmp.ne.s32.totalorder %s158, %s159
      %p171 = scmp.eq.s32.totalorder %s21, 1
      %p172 = por %p170, %p171
      %p174 = scmp.ne.s32.totalorder %s159, %s173
      %p175 = scmp.eq.s32.totalorder %s21, 0
      %p176 = por %p174, %p175
      %s177 = ssub.s32 %s22, %s41
      %s178 = ssub.s32 %s23, %s37
      %s179 = sor.u32 %s177, %s178
      %p180 = scmp.eq.s32.totalorder %s179, 0
      %s182 = sadd.s32 %s181, 1
      %s183 = scalar_select %p180, %s181, %s182
      %p186 = pneg %p180
      %p187 = scmp.eq.s32.totalorder %s15, 1
      %p188 = por %p186, %p187
      %p189 = scmp.ne.s32.totalorder %s181, %s184
      %p190 = scmp.eq.s32.totalorder %s15, 0
      %p191 = por %p189, %p190
      %p192 = scmp.ne.s32.totalorder %s181, %s184
      %p193 = scmp.eq.s32.totalorder %s20, 1
      %p194 = por %p192, %p193
      %p195 = scmp.ne.s32.totalorder %s184, %s185
      %p196 = scmp.eq.s32.totalorder %s20, 0
      %p197 = por %p195, %p196
      %p198 = scmp.ne.s32.totalorder %s184, %s185
      %p199 = scmp.eq.s32.totalorder %s21, 1
      %p200 = por %p198, %p199
      %p202 = scmp.ne.s32.totalorder %s185, %s201
      %p203 = scmp.eq.s32.totalorder %s21, 0
      %p204 = por %p202, %p203
      %p205 = scmp.le.s32.totalorder 1, %s15
      %p206 = scmp.lt.s32.totalorder %s15, 3
      %p207 = pnand %p205, %p206
      %p208 = pneg %p207
      // Predicated region
      $region9: #{tpu_custom_call.1} parent=5 // pred_check
        _
      $region10: #{tpu_custom_call.1} parent=5 // pred_check_branch
        %210 = sbr.rel (%p207) target = $region12
      $region11: #{tpu_custom_call.1} parent=5 // pred_region
        %s211 = ssub.s32 %s15, 1
        // Predicated region
        $region13: #{tpu_custom_call.1} parent=11 // pred_check
          %p212 = pneg %p85
        $region14: #{tpu_custom_call.1} parent=11 // pred_check_branch
          %214 = sbr.rel (%p212) target = $region16
        $region15: #{tpu_custom_call.1} parent=11 // pred_region
          _
        $region16: #{tpu_custom_call.1} parent=11 // pred_fallthru
          _
        // Predicated region
        $region17: #{tpu_custom_call.1} parent=11 // pred_check
          %p215 = pneg %p106
        $region18: #{tpu_custom_call.1} parent=11 // pred_check_branch
          %217 = sbr.rel (%p215) target = $region20
        $region19: #{tpu_custom_call.1} parent=11 // pred_region
          _
        $region20: #{tpu_custom_call.1} parent=11 // pred_fallthru
          _
        // Predicated region
        $region21: #{tpu_custom_call.1} parent=11 // pred_check
          %p218 = pneg %p127
        $region22: #{tpu_custom_call.1} parent=11 // pred_check_branch
          %220 = sbr.rel (%p218) target = $region24
        $region23: #{tpu_custom_call.1} parent=11 // pred_region
          _
        $region24: #{tpu_custom_call.1} parent=11 // pred_fallthru
          _
        // Predicated region
        $region25: #{tpu_custom_call.1} parent=11 // pred_check
          %p221 = pneg %p148
        $region26: #{tpu_custom_call.1} parent=11 // pred_check_branch
          %223 = sbr.rel (%p221) target = $region28
        $region27: #{tpu_custom_call.1} parent=11 // pred_region
          _
        $region28: #{tpu_custom_call.1} parent=11 // pred_fallthru
          _
        // Predicated region
        $region29: #{tpu_custom_call.1} parent=11 // pred_check
          %p224 = pneg %p169
        $region30: #{tpu_custom_call.1} parent=11 // pred_check_branch
          %226 = sbr.rel (%p224) target = $region32
        $region31: #{tpu_custom_call.1} parent=11 // pred_region
          _
        $region32: #{tpu_custom_call.1} parent=11 // pred_fallthru
          _
      $region12: #{tpu_custom_call.1} parent=5 // pred_fallthru
        _
      %p227 = scmp.lt.s32.totalorder %s15, 2
      // Predicated region
      $region33: #{tpu_custom_call.1} parent=5 // pred_check
        %p228 = pneg %p227
      $region34: #{tpu_custom_call.1} parent=5 // pred_check_branch
        %230 = sbr.rel (%p228) target = $region36
      $region35: #{tpu_custom_call.1} parent=5 // pred_region
        // Predicated region
        $region37: #{tpu_custom_call.1} parent=35 // pred_check
          %p231 = pneg %p58
        $region38: #{tpu_custom_call.1} parent=35 // pred_check_branch
          %233 = sbr.rel (%p231) target = $region40
        $region39: #{tpu_custom_call.1} parent=35 // pred_region
          %s234 = sadd.s32 %s23, %s24
          %s235 = smul.u32 64, %s234
          %p236 = scmp.lt.s32.totalorder %s22, 1
          %s237 = scalar_select %p236, %s22, 1
          %p238 = scmp.lt.s32.totalorder %s235, 63
          %s239 = scalar_select %p238, %s235, 63
          %s240 = smul.addr %s237, 64
          %s241 = sadd.s32 %s239, %s240
          %s242 = smul.addr %s241, 8
          %s243 = scalar_lea.vmem %s0, %s242
          %s244 = sadd.s32 %s23, %s24
          %s245 = smul.u32 64, %s244
        $region40: #{tpu_custom_call.1} parent=35 // pred_fallthru
          _
      $region36: #{tpu_custom_call.1} parent=5 // pred_fallthru
        _
      %p246 = scmp.le.s32.totalorder 1, %s15
      %p247 = scmp.lt.s32.totalorder %s15, 3
      %p248 = pnand %p246, %p247
      %p249 = pneg %p248
      // Predicated region
      $region41: #{tpu_custom_call.1} parent=5 // pred_check
        _
      $region42: #{tpu_custom_call.1} parent=5 // pred_check_branch
        %251 = sbr.rel (%p248) target = $region44
      $region43: #{tpu_custom_call.1} parent=5 // pred_region
        %s252 = ssub.s32 %s15, 1
        %s253 = sadd.s32 %s26, %s27
        %s254 = smul.u32 64, %s253
        %p255 = scmp.lt.s32.totalorder %s25, 1
        %s256 = scalar_select %p255, %s25, 1
        %p257 = scmp.lt.s32.totalorder %s254, 63
        %s258 = scalar_select %p257, %s254, 63
        %s259 = smul.addr %s256, 64
        %s260 = sadd.s32 %s258, %s259
        %s261 = smul.addr %s260, 8
        %s262 = scalar_lea.vmem %s0, %s261
        %p263 = pneg %p64
        %p264 = pneg %p61
        %p265 = pneg %p85
        %p266 = pneg %p82
        %p267 = pneg %p106
        %p268 = pneg %p103
        %p269 = pneg %p127
        %p270 = pneg %p124
        %p271 = pneg %p148
        %p272 = pneg %p145
        %p273 = pneg %p169
        %p274 = pneg %p166
        %p275 = pneg %p197
        %p276 = pneg %p194
        %s277 = sand.u32 %s184, 1
        %s278 = scalar_lea.sflag [#allocation3], %s277
        %s279 = sand.u32 %s184, 1
        %s280 = smul.addr %s279, 8
        %s281 = scalar_lea.vmem [#allocation2], %s280
        %s282 = sadd.s32 %s26, %s27
        %s283 = smul.u32 64, %s282
        %p284 = scmp.lt.s32.totalorder %s25, 1
        %s285 = scalar_select %p284, %s25, 1
        %p286 = scmp.lt.s32.totalorder %s283, 63
        %s287 = scalar_select %p286, %s283, 63
        %s288 = smul.addr %s285, 64
        %s289 = sadd.s32 %s287, %s288
        %s290 = smul.addr %s289, 8
        %s291 = scalar_lea.vmem %s0, %s290
        %s292 = sadd.s32 %s26, %s27
        %s293 = smul.u32 64, %s292
        %p295 = scmp.eq.s32.totalorder %s27, 0
        // Predicated region
        $region45: #{tpu_custom_call.1} parent=43 // pred_check
          %p296 = pneg %p295
        $region46: #{tpu_custom_call.1} parent=43 // pred_check_branch
          %298 = sbr.rel (%p296) target = $region48
        $region47: #{tpu_custom_call.1} parent=43 // pred_region
          %299 = vst [vmem:[%s281] sm:$0xff] -inf
        $region48: #{tpu_custom_call.1} parent=43 // pred_fallthru
          _
        %v300 = vld [vmem:[%s291] sm:$0xff]
        %v301 = vld [vmem:[%s291 + $0x8] sm:$0xff]
        %v302 = vld [vmem:[%s291 + $0x10] sm:$0xff]
        %v303 = vld [vmem:[%s291 + $0x18] sm:$0xff]
        %v304 = vld [vmem:[%s291 + $0x20] sm:$0xff]
        %v305 = vld [vmem:[%s291 + $0x28] sm:$0xff]
        %v306 = vld [vmem:[%s291 + $0x30] sm:$0xff]
        %v307 = vld [vmem:[%s291 + $0x38] sm:$0xff]
        %v308 = vld [vmem:[%s291 + $0x40] sm:$0xff]
        %v309 = vld [vmem:[%s291 + $0x48] sm:$0xff]
        %v310 = vld [vmem:[%s291 + $0x50] sm:$0xff]
        %v311 = vld [vmem:[%s291 + $0x58] sm:$0xff]
        %v312 = vld [vmem:[%s291 + $0x60] sm:$0xff]
        %v313 = vld [vmem:[%s291 + $0x68] sm:$0xff]
        %v314 = vld [vmem:[%s291 + $0x70] sm:$0xff]
        %v315 = vld [vmem:[%s291 + $0x78] sm:$0xff]
        %v316 = vld [vmem:[%s291 + $0x80] sm:$0xff]
        %v317 = vld [vmem:[%s291 + $0x88] sm:$0xff]
        %v318 = vld [vmem:[%s291 + $0x90] sm:$0xff]
        %v319 = vld [vmem:[%s291 + $0x98] sm:$0xff]
        %v320 = vld [vmem:[%s291 + $0xa0] sm:$0xff]
        %v321 = vld [vmem:[%s291 + $0xa8] sm:$0xff]
        %v322 = vld [vmem:[%s291 + $0xb0] sm:$0xff]
        %v323 = vld [vmem:[%s291 + $0xb8] sm:$0xff]
        %v324 = vld [vmem:[%s291 + $0xc0] sm:$0xff]
        %v325 = vld [vmem:[%s291 + $0xc8] sm:$0xff]
        %v326 = vld [vmem:[%s291 + $0xd0] sm:$0xff]
        %v327 = vld [vmem:[%s291 + $0xd8] sm:$0xff]
        %v328 = vld [vmem:[%s291 + $0xe0] sm:$0xff]
        %v329 = vld [vmem:[%s291 + $0xe8] sm:$0xff]
        %v330 = vld [vmem:[%s291 + $0xf0] sm:$0xff]
        %v331 = vld [vmem:[%s291 + $0xf8] sm:$0xff]
        %v332 = vld [vmem:[%s291 + $0x100] sm:$0xff]
        %v333 = vld [vmem:[%s291 + $0x108] sm:$0xff]
        %v334 = vld [vmem:[%s291 + $0x110] sm:$0xff]
        %v335 = vld [vmem:[%s291 + $0x118] sm:$0xff]
        %v336 = vld [vmem:[%s291 + $0x120] sm:$0xff]
        %v337 = vld [vmem:[%s291 + $0x128] sm:$0xff]
        %v338 = vld [vmem:[%s291 + $0x130] sm:$0xff]
        %v339 = vld [vmem:[%s291 + $0x138] sm:$0xff]
        %v340 = vld [vmem:[%s291 + $0x140] sm:$0xff]
        %v341 = vld [vmem:[%s291 + $0x148] sm:$0xff]
        %v342 = vld [vmem:[%s291 + $0x150] sm:$0xff]
        %v343 = vld [vmem:[%s291 + $0x158] sm:$0xff]
        %v344 = vld [vmem:[%s291 + $0x160] sm:$0xff]
        %v345 = vld [vmem:[%s291 + $0x168] sm:$0xff]
        %v346 = vld [vmem:[%s291 + $0x170] sm:$0xff]
        %v347 = vld [vmem:[%s291 + $0x178] sm:$0xff]
        %v348 = vld [vmem:[%s291 + $0x180] sm:$0xff]
        %v349 = vld [vmem:[%s291 + $0x188] sm:$0xff]
        %v350 = vld [vmem:[%s291 + $0x190] sm:$0xff]
        %v351 = vld [vmem:[%s291 + $0x198] sm:$0xff]
        %v352 = vld [vmem:[%s291 + $0x1a0] sm:$0xff]
        %v353 = vld [vmem:[%s291 + $0x1a8] sm:$0xff]
        %v354 = vld [vmem:[%s291 + $0x1b0] sm:$0xff]
        %v355 = vld [vmem:[%s291 + $0x1b8] sm:$0xff]
        %v356 = vld [vmem:[%s291 + $0x1c0] sm:$0xff]
        %v357 = vld [vmem:[%s291 + $0x1c8] sm:$0xff]
        %v358 = vld [vmem:[%s291 + $0x1d0] sm:$0xff]
        %v359 = vld [vmem:[%s291 + $0x1d8] sm:$0xff]
        %v360 = vld [vmem:[%s291 + $0x1e0] sm:$0xff]
        %v361 = vld [vmem:[%s291 + $0x1e8] sm:$0xff]
        %v362 = vld [vmem:[%s291 + $0x1f0] sm:$0xff]
        %v363 = vld [vmem:[%s291 + $0x1f8] sm:$0xff]
        %v364 = vpack.c.bf16 %v301, %v300
        %v365 = vpack.c.bf16 %v303, %v302
        %v366 = vpack.c.bf16 %v305, %v304
        %v367 = vpack.c.bf16 %v307, %v306
        %v368 = vpack.c.bf16 %v309, %v308
        %v369 = vpack.c.bf16 %v311, %v310
        %v370 = vpack.c.bf16 %v313, %v312
        %v371 = vpack.c.bf16 %v315, %v314
        %v372 = vpack.c.bf16 %v317, %v316
        %v373 = vpack.c.bf16 %v319, %v318
        %v374 = vpack.c.bf16 %v321, %v320
        %v375 = vpack.c.bf16 %v323, %v322
        %v376 = vpack.c.bf16 %v325, %v324
        %v377 = vpack.c.bf16 %v327, %v326
        %v378 = vpack.c.bf16 %v329, %v328
        %v379 = vpack.c.bf16 %v331, %v330
        %v380 = vpack.c.bf16 %v333, %v332
        %v381 = vpack.c.bf16 %v335, %v334
        %v382 = vpack.c.bf16 %v337, %v336
        %v383 = vpack.c.bf16 %v339, %v338
        %v384 = vpack.c.bf16 %v341, %v340
        %v385 = vpack.c.bf16 %v343, %v342
        %v386 = vpack.c.bf16 %v345, %v344
        %v387 = vpack.c.bf16 %v347, %v346
        %v388 = vpack.c.bf16 %v349, %v348
        %v389 = vpack.c.bf16 %v351, %v350
        %v390 = vpack.c.bf16 %v353, %v352
        %v391 = vpack.c.bf16 %v355, %v354
        %v392 = vpack.c.bf16 %v357, %v356
        %v393 = vpack.c.bf16 %v359, %v358
        %v394 = vpack.c.bf16 %v361, %v360
        %v395 = vpack.c.bf16 %v363, %v362
        %v396 = vld [vmem:[%s1] sm:$0x3]
        %v397 = vld [vmem:[%s2] sm:$0x1]
        %v399 = vlaneseq
        %v400 = vshrl.u32 %v399, 7
        %v401 = vsub.s32 0, %v400
        %v402 = vrot.slane %v397, %v401
        %vm404 = vcmask 23552
        %v406 = vsel %vm404, %v364, 0
        %v409 = vsel %vm404, %v365, 0
        %v412 = vsel %vm404, %v366, 0
        %v415 = vsel %vm404, %v367, 0
        %v418 = vsel %vm404, %v368, 0
        %v421 = vsel %vm404, %v369, 0
        %v424 = vsel %vm404, %v370, 0
        %v427 = vsel %vm404, %v371, 0
        %v430 = vsel %vm404, %v372, 0
        %v433 = vsel %vm404, %v373, 0
        %v436 = vsel %vm404, %v374, 0
        %v439 = vsel %vm404, %v375, 0
        %v442 = vsel %vm404, %v376, 0
        %v445 = vsel %vm404, %v377, 0
        %v448 = vsel %vm404, %v378, 0
        %v451 = vsel %vm404, %v379, 0
        %v454 = vsel %vm404, %v380, 0
        %v457 = vsel %vm404, %v381, 0
        %v460 = vsel %vm404, %v382, 0
        %v463 = vsel %vm404, %v383, 0
        %v466 = vsel %vm404, %v384, 0
        %v469 = vsel %vm404, %v385, 0
        %v472 = vsel %vm404, %v386, 0
        %v475 = vsel %vm404, %v387, 0
        %v478 = vsel %vm404, %v388, 0
        %v481 = vsel %vm404, %v389, 0
        %v484 = vsel %vm404, %v390, 0
        %v487 = vsel %vm404, %v391, 0
        %v490 = vsel %vm404, %v392, 0
        %v493 = vsel %vm404, %v393, 0
        %v496 = vsel %vm404, %v394, 0
        %v499 = vsel %vm404, %v395, 0
        %vm501 = vcmask 1040384
        %vm502 = vcmask 1041408
        %v503 = vsel %vm501, 4294967295, 65535
        %v504 = vsel %vm502, %v503, 0
        %v506 = vand.u32 %v396, %v504
        %508 = vmatprep.subr.bf16.mxu0 0
        %509 = vmatpush1.bf16.msra.mxu0 0
        %510 = vmatprep.subr.bf16.mxu0 0
        %511 = vmatpush1.bf16.msra.mxu0 0
        %512 = vmatprep.subr.bf16.mxu0 0
        %513 = vmatpush1.bf16.msra.mxu0 0
        %514 = vmatprep.subr.bf16.mxu0 0
        %515 = vmatpush1.bf16.msra.mxu0 0
        %516 = vmatprep.subr.bf16.mxu0 0
        %517 = vmatpush1.bf16.msra.mxu0 0
        %518 = vmatprep.subr.bf16.mxu0 0
        %519 = vmatpush1.bf16.msra.mxu0 0
        %520 = vmatprep.subr.bf16.mxu0 0
        %521 = vmatpush1.bf16.msra.mxu0 0
        %522 = vmatprep.subr.bf16.mxu0 0
        %523 = vmatpush1.bf16.msra.mxu0 %v506
        %524 = vmatprep.subr.bf16.mxu0 0
        %525 = vmatpush2.bf16.msra.mxu0 0
        %526 = vmatprep.subr.bf16.mxu0 0
        %527 = vmatpush2.bf16.msra.mxu0 0
        %528 = vmatprep.subr.bf16.mxu0 0
        %529 = vmatpush2.bf16.msra.mxu0 0
        %530 = vmatprep.subr.bf16.mxu0 0
        %531 = vmatpush2.bf16.msra.mxu0 0
        %532 = vmatprep.subr.bf16.mxu0 0
        %533 = vmatpush2.bf16.msra.mxu0 0
        %534 = vmatprep.subr.bf16.mxu0 0
        %535 = vmatpush2.bf16.msra.mxu0 0
        %536 = vmatprep.subr.bf16.mxu0 0
        %537 = vmatpush2.bf16.msra.mxu0 0
        %538 = vmatprep.subr.bf16.mxu0 0
        %539 = vmatpush2.bf16.msra.mxu0 0
        %540 = vmatprep.mubr.bf16.mxu0 0
        %541 = vmatmul.mubr.bf16.gmra.mxu0 %v406
        %v542 = vpop.f32.mrf.mxu0
        %v543 = vadd.f32 %v402, %v542
        %v544 = vpop.f32.mrf.mxu0
        %v545 = vpop.f32.mrf.mxu0
        %v546 = vadd.f32 %v402, %v545
        %v547 = vpop.f32.mrf.mxu0
        %548 = vmatprep.mubr.bf16.mxu0 0
        %549 = vmatmul.mubr.bf16.gmra.mxu0 %v409
        %v550 = vpop.f32.mrf.mxu0
        %v551 = vadd.f32 %v402, %v550
        %v552 = vpop.f32.mrf.mxu0
        %v553 = vpop.f32.mrf.mxu0
        %v554 = vadd.f32 %v402, %v553
        %v555 = vpop.f32.mrf.mxu0
        %556 = vmatprep.mubr.bf16.mxu0 0
        %557 = vmatmul.mubr.bf16.gmra.mxu0 %v412
        %v558 = vpop.f32.mrf.mxu0
        %v559 = vadd.f32 %v402, %v558
        %v560 = vpop.f32.mrf.mxu0
        %v561 = vpop.f32.mrf.mxu0
        %v562 = vadd.f32 %v402, %v561
        %v563 = vpop.f32.mrf.mxu0
        %564 = vmatprep.mubr.bf16.mxu0 0
        %565 = vmatmul.mubr.bf16.gmra.mxu0 %v415
        %v566 = vpop.f32.mrf.mxu0
        %v567 = vadd.f32 %v402, %v566
        %v568 = vpop.f32.mrf.mxu0
        %v569 = vpop.f32.mrf.mxu0
        %v570 = vadd.f32 %v402, %v569
        %v571 = vpop.f32.mrf.mxu0
        %572 = vmatprep.mubr.bf16.mxu0 0
        %573 = vmatmul.mubr.bf16.gmra.mxu0 %v418
        %v574 = vpop.f32.mrf.mxu0
        %v575 = vadd.f32 %v402, %v574
        %v576 = vpop.f32.mrf.mxu0
        %v577 = vpop.f32.mrf.mxu0
        %v578 = vadd.f32 %v402, %v577
        %v579 = vpop.f32.mrf.mxu0
        %580 = vmatprep.mubr.bf16.mxu0 0
        %581 = vmatmul.mubr.bf16.gmra.mxu0 %v421
        %v582 = vpop.f32.mrf.mxu0
        %v583 = vadd.f32 %v402, %v582
        %v584 = vpop.f32.mrf.mxu0
        %v585 = vpop.f32.mrf.mxu0
        %v586 = vadd.f32 %v402, %v585
        %v587 = vpop.f32.mrf.mxu0
        %588 = vmatprep.mubr.bf16.mxu0 0
        %589 = vmatmul.mubr.bf16.gmra.mxu0 %v424
        %v590 = vpop.f32.mrf.mxu0
        %v591 = vadd.f32 %v402, %v590
        %v592 = vpop.f32.mrf.mxu0
        %v593 = vpop.f32.mrf.mxu0
        %v594 = vadd.f32 %v402, %v593
        %v595 = vpop.f32.mrf.mxu0
        %596 = vmatprep.mubr.bf16.mxu0 0
        %597 = vmatmul.mubr.bf16.gmra.mxu0 %v427
        %v598 = vpop.f32.mrf.mxu0
        %v599 = vadd.f32 %v402, %v598
        %v600 = vpop.f32.mrf.mxu0
        %v601 = vpop.f32.mrf.mxu0
        %v602 = vadd.f32 %v402, %v601
        %v603 = vpop.f32.mrf.mxu0
        %604 = vmatprep.mubr.bf16.mxu0 0
        %605 = vmatmul.mubr.bf16.gmra.mxu0 %v430
        %v606 = vpop.f32.mrf.mxu0
        %v607 = vadd.f32 %v402, %v606
        %v608 = vpop.f32.mrf.mxu0
        %v609 = vpop.f32.mrf.mxu0
        %v610 = vadd.f32 %v402, %v609
        %v611 = vpop.f32.mrf.mxu0
        %612 = vmatprep.mubr.bf16.mxu0 0
        %613 = vmatmul.mubr.bf16.gmra.mxu0 %v433
        %v614 = vpop.f32.mrf.mxu0
        %v615 = vadd.f32 %v402, %v614
        %v616 = vpop.f32.mrf.mxu0
        %v617 = vpop.f32.mrf.mxu0
        %v618 = vadd.f32 %v402, %v617
        %v619 = vpop.f32.mrf.mxu0
        %620 = vmatprep.mubr.bf16.mxu0 0
        %621 = vmatmul.mubr.bf16.gmra.mxu0 %v436
        %v622 = vpop.f32.mrf.mxu0
        %v623 = vadd.f32 %v402, %v622
        %v624 = vpop.f32.mrf.mxu0
        %v625 = vpop.f32.mrf.mxu0
        %v626 = vadd.f32 %v402, %v625
        %v627 = vpop.f32.mrf.mxu0
        %628 = vmatprep.mubr.bf16.mxu0 0
        %629 = vmatmul.mubr.bf16.gmra.mxu0 %v439
        %v630 = vpop.f32.mrf.mxu0
        %v631 = vadd.f32 %v402, %v630
        %v632 = vpop.f32.mrf.mxu0
        %v633 = vpop.f32.mrf.mxu0
        %v634 = vadd.f32 %v402, %v633
        %v635 = vpop.f32.mrf.mxu0
        %636 = vmatprep.mubr.bf16.mxu0 0
        %637 = vmatmul.mubr.bf16.gmra.mxu0 %v442
        %v638 = vpop.f32.mrf.mxu0
        %v639 = vadd.f32 %v402, %v638
        %v640 = vpop.f32.mrf.mxu0
        %v641 = vpop.f32.mrf.mxu0
        %v642 = vadd.f32 %v402, %v641
        %v643 = vpop.f32.mrf.mxu0
        %644 = vmatprep.mubr.bf16.mxu0 0
        %645 = vmatmul.mubr.bf16.gmra.mxu0 %v445
        %v646 = vpop.f32.mrf.mxu0
        %v647 = vadd.f32 %v402, %v646
        %v648 = vpop.f32.mrf.mxu0
        %v649 = vpop.f32.mrf.mxu0
        %v650 = vadd.f32 %v402, %v649
        %v651 = vpop.f32.mrf.mxu0
        %652 = vmatprep.mubr.bf16.mxu0 0
        %653 = vmatmul.mubr.bf16.gmra.mxu0 %v448
        %v654 = vpop.f32.mrf.mxu0
        %v655 = vadd.f32 %v402, %v654
        %v656 = vpop.f32.mrf.mxu0
        %v657 = vpop.f32.mrf.mxu0
        %v658 = vadd.f32 %v402, %v657
        %v659 = vpop.f32.mrf.mxu0
        %660 = vmatprep.mubr.bf16.mxu0 0
        %661 = vmatmul.mubr.bf16.gmra.mxu0 %v451
        %v662 = vpop.f32.mrf.mxu0
        %v663 = vadd.f32 %v402, %v662
        %v664 = vpop.f32.mrf.mxu0
        %v665 = vpop.f32.mrf.mxu0
        %v666 = vadd.f32 %v402, %v665
        %v667 = vpop.f32.mrf.mxu0
        %668 = vmatprep.mubr.bf16.mxu0 0
        %669 = vmatmul.mubr.bf16.gmra.mxu0 %v454
        %v670 = vpop.f32.mrf.mxu0
        %v671 = vadd.f32 %v402, %v670
        %v672 = vpop.f32.mrf.mxu0
        %v673 = vpop.f32.mrf.mxu0
        %v674 = vadd.f32 %v402, %v673
        %v675 = vpop.f32.mrf.mxu0
        %676 = vmatprep.mubr.bf16.mxu0 0
        %677 = vmatmul.mubr.bf16.gmra.mxu0 %v457
        %v678 = vpop.f32.mrf.mxu0
        %v679 = vadd.f32 %v402, %v678
        %v680 = vpop.f32.mrf.mxu0
        %v681 = vpop.f32.mrf.mxu0
        %v682 = vadd.f32 %v402, %v681
        %v683 = vpop.f32.mrf.mxu0
        %684 = vmatprep.mubr.bf16.mxu0 0
        %685 = vmatmul.mubr.bf16.gmra.mxu0 %v460
        %v686 = vpop.f32.mrf.mxu0
        %v687 = vadd.f32 %v402, %v686
        %v688 = vpop.f32.mrf.mxu0
        %v689 = vpop.f32.mrf.mxu0
        %v690 = vadd.f32 %v402, %v689
        %v691 = vpop.f32.mrf.mxu0
        %692 = vmatprep.mubr.bf16.mxu0 0
        %693 = vmatmul.mubr.bf16.gmra.mxu0 %v463
        %v694 = vpop.f32.mrf.mxu0
        %v695 = vadd.f32 %v402, %v694
        %v696 = vpop.f32.mrf.mxu0
        %v697 = vpop.f32.mrf.mxu0
        %v698 = vadd.f32 %v402, %v697
        %v699 = vpop.f32.mrf.mxu0
        %700 = vmatprep.mubr.bf16.mxu0 0
        %701 = vmatmul.mubr.bf16.gmra.mxu0 %v466
        %v702 = vpop.f32.mrf.mxu0
        %v703 = vadd.f32 %v402, %v702
        %v704 = vpop.f32.mrf.mxu0
        %v705 = vpop.f32.mrf.mxu0
        %v706 = vadd.f32 %v402, %v705
        %v707 = vpop.f32.mrf.mxu0
        %708 = vmatprep.mubr.bf16.mxu0 0
        %709 = vmatmul.mubr.bf16.gmra.mxu0 %v469
        %v710 = vpop.f32.mrf.mxu0
        %v711 = vadd.f32 %v402, %v710
        %v712 = vpop.f32.mrf.mxu0
        %v713 = vpop.f32.mrf.mxu0
        %v714 = vadd.f32 %v402, %v713
        %v715 = vpop.f32.mrf.mxu0
        %716 = vmatprep.mubr.bf16.mxu0 0
        %717 = vmatmul.mubr.bf16.gmra.mxu0 %v472
        %v718 = vpop.f32.mrf.mxu0
        %v719 = vadd.f32 %v402, %v718
        %v720 = vpop.f32.mrf.mxu0
        %v721 = vpop.f32.mrf.mxu0
        %v722 = vadd.f32 %v402, %v721
        %v723 = vpop.f32.mrf.mxu0
        %724 = vmatprep.mubr.bf16.mxu0 0
        %725 = vmatmul.mubr.bf16.gmra.mxu0 %v475
        %v726 = vpop.f32.mrf.mxu0
        %v727 = vadd.f32 %v402, %v726
        %v728 = vpop.f32.mrf.mxu0
        %v729 = vpop.f32.mrf.mxu0
        %v730 = vadd.f32 %v402, %v729
        %v731 = vpop.f32.mrf.mxu0
        %732 = vmatprep.mubr.bf16.mxu0 0
        %733 = vmatmul.mubr.bf16.gmra.mxu0 %v478
        %v734 = vpop.f32.mrf.mxu0
        %v735 = vadd.f32 %v402, %v734
        %v736 = vpop.f32.mrf.mxu0
        %v737 = vpop.f32.mrf.mxu0
        %v738 = vadd.f32 %v402, %v737
        %v739 = vpop.f32.mrf.mxu0
        %740 = vmatprep.mubr.bf16.mxu0 0
        %741 = vmatmul.mubr.bf16.gmra.mxu0 %v481
        %v742 = vpop.f32.mrf.mxu0
        %v743 = vadd.f32 %v402, %v742
        %v744 = vpop.f32.mrf.mxu0
        %v745 = vpop.f32.mrf.mxu0
        %v746 = vadd.f32 %v402, %v745
        %v747 = vpop.f32.mrf.mxu0
        %748 = vmatprep.mubr.bf16.mxu0 0
        %749 = vmatmul.mubr.bf16.gmra.mxu0 %v484
        %v750 = vpop.f32.mrf.mxu0
        %v751 = vadd.f32 %v402, %v750
        %v752 = vpop.f32.mrf.mxu0
        %v753 = vpop.f32.mrf.mxu0
        %v754 = vadd.f32 %v402, %v753
        %v755 = vpop.f32.mrf.mxu0
        %756 = vmatprep.mubr.bf16.mxu0 0
        %757 = vmatmul.mubr.bf16.gmra.mxu0 %v487
        %v758 = vpop.f32.mrf.mxu0
        %v759 = vadd.f32 %v402, %v758
        %v760 = vpop.f32.mrf.mxu0
        %v761 = vpop.f32.mrf.mxu0
        %v762 = vadd.f32 %v402, %v761
        %v763 = vpop.f32.mrf.mxu0
        %764 = vmatprep.mubr.bf16.mxu0 0
        %765 = vmatmul.mubr.bf16.gmra.mxu0 %v490
        %v766 = vpop.f32.mrf.mxu0
        %v767 = vadd.f32 %v402, %v766
        %v768 = vpop.f32.mrf.mxu0
        %v769 = vpop.f32.mrf.mxu0
        %v770 = vadd.f32 %v402, %v769
        %v771 = vpop.f32.mrf.mxu0
        %772 = vmatprep.mubr.bf16.mxu0 0
        %773 = vmatmul.mubr.bf16.gmra.mxu0 %v493
        %v774 = vpop.f32.mrf.mxu0
        %v775 = vadd.f32 %v402, %v774
        %v776 = vpop.f32.mrf.mxu0
        %v777 = vpop.f32.mrf.mxu0
        %v778 = vadd.f32 %v402, %v777
        %v779 = vpop.f32.mrf.mxu0
        %780 = vmatprep.mubr.bf16.mxu0 0
        %781 = vmatmul.mubr.bf16.gmra.mxu0 %v496
        %v782 = vpop.f32.mrf.mxu0
        %v783 = vadd.f32 %v402, %v782
        %v784 = vpop.f32.mrf.mxu0
        %v785 = vpop.f32.mrf.mxu0
        %v786 = vadd.f32 %v402, %v785
        %v787 = vpop.f32.mrf.mxu0
        %788 = vmatprep.mubr.bf16.mxu0 0
        %789 = vmatmul.mubr.bf16.gmra.mxu0 %v499
        %v790 = vpop.f32.mrf.mxu0
        %v791 = vadd.f32 %v402, %v790
        %v792 = vpop.f32.mrf.mxu0
        %v793 = vpop.f32.mrf.mxu0
        %v794 = vadd.f32 %v402, %v793
        %v795 = vpop.f32.mrf.mxu0
        %796 = vdwg.mxu0
        %v797 = vmax.f32 %v543, 0.0
        %v798 = vmax.f32 %v546, 0.0
        %v799 = vmax.f32 %v551, 0.0
        %v800 = vmax.f32 %v554, 0.0
        %v801 = vmax.f32 %v559, 0.0
        %v802 = vmax.f32 %v562, 0.0
        %v803 = vmax.f32 %v567, 0.0
        %v804 = vmax.f32 %v570, 0.0
        %v805 = vmax.f32 %v575, 0.0
        %v806 = vmax.f32 %v578, 0.0
        %v807 = vmax.f32 %v583, 0.0
        %v808 = vmax.f32 %v586, 0.0
        %v809 = vmax.f32 %v591, 0.0
        %v810 = vmax.f32 %v594, 0.0
        %v811 = vmax.f32 %v599, 0.0
        %v812 = vmax.f32 %v602, 0.0
        %v813 = vmax.f32 %v607, 0.0
        %v814 = vmax.f32 %v610, 0.0
        %v815 = vmax.f32 %v615, 0.0
        %v816 = vmax.f32 %v618, 0.0
        %v817 = vmax.f32 %v623, 0.0
        %v818 = vmax.f32 %v626, 0.0
        %v819 = vmax.f32 %v631, 0.0
        %v820 = vmax.f32 %v634, 0.0
        %v821 = vmax.f32 %v639, 0.0
        %v822 = vmax.f32 %v642, 0.0
        %v823 = vmax.f32 %v647, 0.0
        %v824 = vmax.f32 %v650, 0.0
        %v825 = vmax.f32 %v655, 0.0
        %v826 = vmax.f32 %v658, 0.0
        %v827 = vmax.f32 %v663, 0.0
        %v828 = vmax.f32 %v666, 0.0
        %v829 = vmax.f32 %v671, 0.0
        %v830 = vmax.f32 %v674, 0.0
        %v831 = vmax.f32 %v679, 0.0
        %v832 = vmax.f32 %v682, 0.0
        %v833 = vmax.f32 %v687, 0.0
        %v834 = vmax.f32 %v690, 0.0
        %v835 = vmax.f32 %v695, 0.0
        %v836 = vmax.f32 %v698, 0.0
        %v837 = vmax.f32 %v703, 0.0
        %v838 = vmax.f32 %v706, 0.0
        %v839 = vmax.f32 %v711, 0.0
        %v840 = vmax.f32 %v714, 0.0
        %v841 = vmax.f32 %v719, 0.0
        %v842 = vmax.f32 %v722, 0.0
        %v843 = vmax.f32 %v727, 0.0
        %v844 = vmax.f32 %v730, 0.0
        %v845 = vmax.f32 %v735, 0.0
        %v846 = vmax.f32 %v738, 0.0
        %v847 = vmax.f32 %v743, 0.0
        %v848 = vmax.f32 %v746, 0.0
        %v849 = vmax.f32 %v751, 0.0
        %v850 = vmax.f32 %v754, 0.0
        %v851 = vmax.f32 %v759, 0.0
        %v852 = vmax.f32 %v762, 0.0
        %v853 = vmax.f32 %v767, 0.0
        %v854 = vmax.f32 %v770, 0.0
        %v855 = vmax.f32 %v775, 0.0
        %v856 = vmax.f32 %v778, 0.0
        %v857 = vmax.f32 %v783, 0.0
        %v858 = vmax.f32 %v786, 0.0
        %v859 = vmax.f32 %v791, 0.0
        %v860 = vmax.f32 %v794, 0.0
        %v861 = vpack.c.bf16 %v798, %v797
        %v862 = vpack.c.bf16 %v800, %v799
        %v863 = vpack.c.bf16 %v802, %v801
        %v864 = vpack.c.bf16 %v804, %v803
        %v865 = vpack.c.bf16 %v806, %v805
        %v866 = vpack.c.bf16 %v808, %v807
        %v867 = vpack.c.bf16 %v810, %v809
        %v868 = vpack.c.bf16 %v812, %v811
        %v869 = vpack.c.bf16 %v814, %v813
        %v870 = vpack.c.bf16 %v816, %v815
        %v871 = vpack.c.bf16 %v818, %v817
        %v872 = vpack.c.bf16 %v820, %v819
        %v873 = vpack.c.bf16 %v822, %v821
        %v874 = vpack.c.bf16 %v824, %v823
        %v875 = vpack.c.bf16 %v826, %v825
        %v876 = vpack.c.bf16 %v828, %v827
        %v877 = vpack.c.bf16 %v830, %v829
        %v878 = vpack.c.bf16 %v832, %v831
        %v879 = vpack.c.bf16 %v834, %v833
        %v880 = vpack.c.bf16 %v836, %v835
        %v881 = vpack.c.bf16 %v838, %v837
        %v882 = vpack.c.bf16 %v840, %v839
        %v883 = vpack.c.bf16 %v842, %v841
        %v884 = vpack.c.bf16 %v844, %v843
        %v885 = vpack.c.bf16 %v846, %v845
        %v886 = vpack.c.bf16 %v848, %v847
        %v887 = vpack.c.bf16 %v850, %v849
        %v888 = vpack.c.bf16 %v852, %v851
        %v889 = vpack.c.bf16 %v854, %v853
        %v890 = vpack.c.bf16 %v856, %v855
        %v891 = vpack.c.bf16 %v858, %v857
        %v892 = vpack.c.bf16 %v860, %v859
        %v893 = vld [vmem:[%s3] sm:$0xf]
        %v894 = vld [vmem:[%s3 + $0x4] sm:$0xf]
        %v895 = vld [vmem:[%s3 + $0x8] sm:$0xf]
        %v896 = vld [vmem:[%s3 + $0xc] sm:$0xf]
        %v897 = vld [vmem:[%s3 + $0x10] sm:$0xf]
        %v898 = vld [vmem:[%s3 + $0x14] sm:$0xf]
        %v899 = vld [vmem:[%s3 + $0x18] sm:$0xf]
        %v900 = vld [vmem:[%s3 + $0x1c] sm:$0xf]
        %v901 = vld [vmem:[%s4] sm:$0x1]
        %v903 = vlaneseq
        %v904 = vshrl.u32 %v903, 7
        %v905 = vsub.s32 0, %v904
        %v906 = vrot.slane %v901, %v905
        %v916 = vunpack.c.l.b16 %v893
        %v917 = vunpack.c.l.b16 %v894
        %v918 = vunpack.c.l.b16 %v895
        %v919 = vunpack.c.l.b16 %v896
        %v920 = vunpack.c.l.b16 %v897
        %v921 = vunpack.c.l.b16 %v898
        %v922 = vunpack.c.l.b16 %v899
        %v923 = vunpack.c.l.b16 %v900
        %v924 = vpack.c.b16 %v917, %v916
        %v925 = vpack.c.b16 %v919, %v918
        %v926 = vpack.c.b16 %v921, %v920
        %v927 = vpack.c.b16 %v923, %v922
        %vm932 = vcmask 523264
        %v934 = vsel %vm932, %v861, 0
        %v937 = vsel %vm932, %v862, 0
        %v940 = vsel %vm932, %v863, 0
        %v943 = vsel %vm932, %v864, 0
        %v946 = vsel %vm932, %v865, 0
        %v949 = vsel %vm932, %v866, 0
        %v952 = vsel %vm932, %v867, 0
        %v955 = vsel %vm932, %v868, 0
        %v958 = vsel %vm932, %v869, 0
        %v961 = vsel %vm932, %v870, 0
        %v964 = vsel %vm932, %v871, 0
        %v967 = vsel %vm932, %v872, 0
        %v970 = vsel %vm932, %v873, 0
        %v973 = vsel %vm932, %v874, 0
        %v976 = vsel %vm932, %v875, 0
        %v979 = vsel %vm932, %v876, 0
        %v982 = vsel %vm932, %v877, 0
        %v985 = vsel %vm932, %v878, 0
        %v988 = vsel %vm932, %v879, 0
        %v991 = vsel %vm932, %v880, 0
        %v994 = vsel %vm932, %v881, 0
        %v997 = vsel %vm932, %v882, 0
        %v1000 = vsel %vm932, %v883, 0
        %v1003 = vsel %vm932, %v884, 0
        %v1006 = vsel %vm932, %v885, 0
        %v1009 = vsel %vm932, %v886, 0
        %v1012 = vsel %vm932, %v887, 0
        %v1015 = vsel %vm932, %v888, 0
        %v1018 = vsel %vm932, %v889, 0
        %v1021 = vsel %vm932, %v890, 0
        %v1024 = vsel %vm932, %v891, 0
        %v1027 = vsel %vm932, %v892, 0
        %1029 = vmatprep.subr.bf16.mxu0 0
        %1030 = vmatpush1.bf16.msra.mxu0 0
        %1031 = vmatprep.subr.bf16.mxu0 0
        %1032 = vmatpush1.bf16.msra.mxu0 0
        %1033 = vmatprep.subr.bf16.mxu0 0
        %1034 = vmatpush1.bf16.msra.mxu0 0
        %1035 = vmatprep.subr.bf16.mxu0 0
        %1036 = vmatpush1.bf16.msra.mxu0 0
        %1037 = vmatprep.subr.bf16.mxu0 0
        %1038 = vmatpush1.bf16.msra.mxu0 %v927
        %1039 = vmatprep.subr.bf16.mxu0 0
        %1040 = vmatpush1.bf16.msra.mxu0 %v926
        %1041 = vmatprep.subr.bf16.mxu0 0
        %1042 = vmatpush1.bf16.msra.mxu0 %v925
        %1043 = vmatprep.subr.bf16.mxu0 0
        %1044 = vmatpush1.bf16.msra.mxu0 %v924
        %1045 = vmatprep.subr.bf16.mxu0 0
        %1046 = vmatpush2.bf16.msra.mxu0 0
        %1047 = vmatprep.subr.bf16.mxu0 0
        %1048 = vmatpush2.bf16.msra.mxu0 0
        %1049 = vmatprep.subr.bf16.mxu0 0
        %1050 = vmatpush2.bf16.msra.mxu0 0
        %1051 = vmatprep.subr.bf16.mxu0 0
        %1052 = vmatpush2.bf16.msra.mxu0 0
        %1053 = vmatprep.subr.bf16.mxu0 0
        %1054 = vmatpush2.bf16.msra.mxu0 0
        %1055 = vmatprep.subr.bf16.mxu0 0
        %1056 = vmatpush2.bf16.msra.mxu0 0
        %1057 = vmatprep.subr.bf16.mxu0 0
        %1058 = vmatpush2.bf16.msra.mxu0 0
        %1059 = vmatprep.subr.bf16.mxu0 0
        %1060 = vmatpush2.bf16.msra.mxu0 0
        %1061 = vmatprep.mubr.bf16.mxu0 0
        %1062 = vmatmul.mubr.bf16.gmra.mxu0 %v934
        %v1063 = vpop.f32.mrf.mxu0
        %v1064 = vadd.f32 %v906, %v1063
        %v1065 = vpop.f32.mrf.mxu0
        %v1066 = vpop.f32.mrf.mxu0
        %v1067 = vadd.f32 %v906, %v1066
        %v1068 = vpop.f32.mrf.mxu0
        %1069 = vmatprep.mubr.bf16.mxu0 0
        %1070 = vmatmul.mubr.bf16.gmra.mxu0 %v937
        %v1071 = vpop.f32.mrf.mxu0
        %v1072 = vadd.f32 %v906, %v1071
        %v1073 = vpop.f32.mrf.mxu0
        %v1074 = vpop.f32.mrf.mxu0
        %v1075 = vadd.f32 %v906, %v1074
        %v1076 = vpop.f32.mrf.mxu0
        %1077 = vmatprep.mubr.bf16.mxu0 0
        %1078 = vmatmul.mubr.bf16.gmra.mxu0 %v940
        %v1079 = vpop.f32.mrf.mxu0
        %v1080 = vadd.f32 %v906, %v1079
        %v1081 = vpop.f32.mrf.mxu0
        %v1082 = vpop.f32.mrf.mxu0
        %v1083 = vadd.f32 %v906, %v1082
        %v1084 = vpop.f32.mrf.mxu0
        %1085 = vmatprep.mubr.bf16.mxu0 0
        %1086 = vmatmul.mubr.bf16.gmra.mxu0 %v943
        %v1087 = vpop.f32.mrf.mxu0
        %v1088 = vadd.f32 %v906, %v1087
        %v1089 = vpop.f32.mrf.mxu0
        %v1090 = vpop.f32.mrf.mxu0
        %v1091 = vadd.f32 %v906, %v1090
        %v1092 = vpop.f32.mrf.mxu0
        %1093 = vmatprep.mubr.bf16.mxu0 0
        %1094 = vmatmul.mubr.bf16.gmra.mxu0 %v946
        %v1095 = vpop.f32.mrf.mxu0
        %v1096 = vadd.f32 %v906, %v1095
        %v1097 = vpop.f32.mrf.mxu0
        %v1098 = vpop.f32.mrf.mxu0
        %v1099 = vadd.f32 %v906, %v1098
        %v1100 = vpop.f32.mrf.mxu0
        %1101 = vmatprep.mubr.bf16.mxu0 0
        %1102 = vmatmul.mubr.bf16.gmra.mxu0 %v949
        %v1103 = vpop.f32.mrf.mxu0
        %v1104 = vadd.f32 %v906, %v1103
        %v1105 = vpop.f32.mrf.mxu0
        %v1106 = vpop.f32.mrf.mxu0
        %v1107 = vadd.f32 %v906, %v1106
        %v1108 = vpop.f32.mrf.mxu0
        %1109 = vmatprep.mubr.bf16.mxu0 0
        %1110 = vmatmul.mubr.bf16.gmra.mxu0 %v952
        %v1111 = vpop.f32.mrf.mxu0
        %v1112 = vadd.f32 %v906, %v1111
        %v1113 = vpop.f32.mrf.mxu0
        %v1114 = vpop.f32.mrf.mxu0
        %v1115 = vadd.f32 %v906, %v1114
        %v1116 = vpop.f32.mrf.mxu0
        %1117 = vmatprep.mubr.bf16.mxu0 0
        %1118 = vmatmul.mubr.bf16.gmra.mxu0 %v955
        %v1119 = vpop.f32.mrf.mxu0
        %v1120 = vadd.f32 %v906, %v1119
        %v1121 = vpop.f32.mrf.mxu0
        %v1122 = vpop.f32.mrf.mxu0
        %v1123 = vadd.f32 %v906, %v1122
        %v1124 = vpop.f32.mrf.mxu0
        %1125 = vmatprep.mubr.bf16.mxu0 0
        %1126 = vmatmul.mubr.bf16.gmra.mxu0 %v958
        %v1127 = vpop.f32.mrf.mxu0
        %v1128 = vadd.f32 %v906, %v1127
        %v1129 = vpop.f32.mrf.mxu0
        %v1130 = vpop.f32.mrf.mxu0
        %v1131 = vadd.f32 %v906, %v1130
        %v1132 = vpop.f32.mrf.mxu0
        %1133 = vmatprep.mubr.bf16.mxu0 0
        %1134 = vmatmul.mubr.bf16.gmra.mxu0 %v961
        %v1135 = vpop.f32.mrf.mxu0
        %v1136 = vadd.f32 %v906, %v1135
        %v1137 = vpop.f32.mrf.mxu0
        %v1138 = vpop.f32.mrf.mxu0
        %v1139 = vadd.f32 %v906, %v1138
        %v1140 = vpop.f32.mrf.mxu0
        %1141 = vmatprep.mubr.bf16.mxu0 0
        %1142 = vmatmul.mubr.bf16.gmra.mxu0 %v964
        %v1143 = vpop.f32.mrf.mxu0
        %v1144 = vadd.f32 %v906, %v1143
        %v1145 = vpop.f32.mrf.mxu0
        %v1146 = vpop.f32.mrf.mxu0
        %v1147 = vadd.f32 %v906, %v1146
        %v1148 = vpop.f32.mrf.mxu0
        %1149 = vmatprep.mubr.bf16.mxu0 0
        %1150 = vmatmul.mubr.bf16.gmra.mxu0 %v967
        %v1151 = vpop.f32.mrf.mxu0
        %v1152 = vadd.f32 %v906, %v1151
        %v1153 = vpop.f32.mrf.mxu0
        %v1154 = vpop.f32.mrf.mxu0
        %v1155 = vadd.f32 %v906, %v1154
        %v1156 = vpop.f32.mrf.mxu0
        %1157 = vmatprep.mubr.bf16.mxu0 0
        %1158 = vmatmul.mubr.bf16.gmra.mxu0 %v970
        %v1159 = vpop.f32.mrf.mxu0
        %v1160 = vadd.f32 %v906, %v1159
        %v1161 = vpop.f32.mrf.mxu0
        %v1162 = vpop.f32.mrf.mxu0
        %v1163 = vadd.f32 %v906, %v1162
        %v1164 = vpop.f32.mrf.mxu0
        %1165 = vmatprep.mubr.bf16.mxu0 0
        %1166 = vmatmul.mubr.bf16.gmra.mxu0 %v973
        %v1167 = vpop.f32.mrf.mxu0
        %v1168 = vadd.f32 %v906, %v1167
        %v1169 = vpop.f32.mrf.mxu0
        %v1170 = vpop.f32.mrf.mxu0
        %v1171 = vadd.f32 %v906, %v1170
        %v1172 = vpop.f32.mrf.mxu0
        %1173 = vmatprep.mubr.bf16.mxu0 0
        %1174 = vmatmul.mubr.bf16.gmra.mxu0 %v976
        %v1175 = vpop.f32.mrf.mxu0
        %v1176 = vadd.f32 %v906, %v1175
        %v1177 = vpop.f32.mrf.mxu0
        %v1178 = vpop.f32.mrf.mxu0
        %v1179 = vadd.f32 %v906, %v1178
        %v1180 = vpop.f32.mrf.mxu0
        %1181 = vmatprep.mubr.bf16.mxu0 0
        %1182 = vmatmul.mubr.bf16.gmra.mxu0 %v979
        %v1183 = vpop.f32.mrf.mxu0
        %v1184 = vadd.f32 %v906, %v1183
        %v1185 = vpop.f32.mrf.mxu0
        %v1186 = vpop.f32.mrf.mxu0
        %v1187 = vadd.f32 %v906, %v1186
        %v1188 = vpop.f32.mrf.mxu0
        %1189 = vmatprep.mubr.bf16.mxu0 0
        %1190 = vmatmul.mubr.bf16.gmra.mxu0 %v982
        %v1191 = vpop.f32.mrf.mxu0
        %v1192 = vadd.f32 %v906, %v1191
        %v1193 = vpop.f32.mrf.mxu0
        %v1194 = vpop.f32.mrf.mxu0
        %v1195 = vadd.f32 %v906, %v1194
        %v1196 = vpop.f32.mrf.mxu0
        %1197 = vmatprep.mubr.bf16.mxu0 0
        %1198 = vmatmul.mubr.bf16.gmra.mxu0 %v985
        %v1199 = vpop.f32.mrf.mxu0
        %v1200 = vadd.f32 %v906, %v1199
        %v1201 = vpop.f32.mrf.mxu0
        %v1202 = vpop.f32.mrf.mxu0
        %v1203 = vadd.f32 %v906, %v1202
        %v1204 = vpop.f32.mrf.mxu0
        %1205 = vmatprep.mubr.bf16.mxu0 0
        %1206 = vmatmul.mubr.bf16.gmra.mxu0 %v988
        %v1207 = vpop.f32.mrf.mxu0
        %v1208 = vadd.f32 %v906, %v1207
        %v1209 = vpop.f32.mrf.mxu0
        %v1210 = vpop.f32.mrf.mxu0
        %v1211 = vadd.f32 %v906, %v1210
        %v1212 = vpop.f32.mrf.mxu0
        %1213 = vmatprep.mubr.bf16.mxu0 0
        %1214 = vmatmul.mubr.bf16.gmra.mxu0 %v991
        %v1215 = vpop.f32.mrf.mxu0
        %v1216 = vadd.f32 %v906, %v1215
        %v1217 = vpop.f32.mrf.mxu0
        %v1218 = vpop.f32.mrf.mxu0
        %v1219 = vadd.f32 %v906, %v1218
        %v1220 = vpop.f32.mrf.mxu0
        %1221 = vmatprep.mubr.bf16.mxu0 0
        %1222 = vmatmul.mubr.bf16.gmra.mxu0 %v994
        %v1223 = vpop.f32.mrf.mxu0
        %v1224 = vadd.f32 %v906, %v1223
        %v1225 = vpop.f32.mrf.mxu0
        %v1226 = vpop.f32.mrf.mxu0
        %v1227 = vadd.f32 %v906, %v1226
        %v1228 = vpop.f32.mrf.mxu0
        %1229 = vmatprep.mubr.bf16.mxu0 0
        %1230 = vmatmul.mubr.bf16.gmra.mxu0 %v997
        %v1231 = vpop.f32.mrf.mxu0
        %v1232 = vadd.f32 %v906, %v1231
        %v1233 = vpop.f32.mrf.mxu0
        %v1234 = vpop.f32.mrf.mxu0
        %v1235 = vadd.f32 %v906, %v1234
        %v1236 = vpop.f32.mrf.mxu0
        %1237 = vmatprep.mubr.bf16.mxu0 0
        %1238 = vmatmul.mubr.bf16.gmra.mxu0 %v1000
        %v1239 = vpop.f32.mrf.mxu0
        %v1240 = vadd.f32 %v906, %v1239
        %v1241 = vpop.f32.mrf.mxu0
        %v1242 = vpop.f32.mrf.mxu0
        %v1243 = vadd.f32 %v906, %v1242
        %v1244 = vpop.f32.mrf.mxu0
        %1245 = vmatprep.mubr.bf16.mxu0 0
        %1246 = vmatmul.mubr.bf16.gmra.mxu0 %v1003
        %v1247 = vpop.f32.mrf.mxu0
        %v1248 = vadd.f32 %v906, %v1247
        %v1249 = vpop.f32.mrf.mxu0
        %v1250 = vpop.f32.mrf.mxu0
        %v1251 = vadd.f32 %v906, %v1250
        %v1252 = vpop.f32.mrf.mxu0
        %1253 = vmatprep.mubr.bf16.mxu0 0
        %1254 = vmatmul.mubr.bf16.gmra.mxu0 %v1006
        %v1255 = vpop.f32.mrf.mxu0
        %v1256 = vadd.f32 %v906, %v1255
        %v1257 = vpop.f32.mrf.mxu0
        %v1258 = vpop.f32.mrf.mxu0
        %v1259 = vadd.f32 %v906, %v1258
        %v1260 = vpop.f32.mrf.mxu0
        %1261 = vmatprep.mubr.bf16.mxu0 0
        %1262 = vmatmul.mubr.bf16.gmra.mxu0 %v1009
        %v1263 = vpop.f32.mrf.mxu0
        %v1264 = vadd.f32 %v906, %v1263
        %v1265 = vpop.f32.mrf.mxu0
        %v1266 = vpop.f32.mrf.mxu0
        %v1267 = vadd.f32 %v906, %v1266
        %v1268 = vpop.f32.mrf.mxu0
        %1269 = vmatprep.mubr.bf16.mxu0 0
        %1270 = vmatmul.mubr.bf16.gmra.mxu0 %v1012
        %v1271 = vpop.f32.mrf.mxu0
        %v1272 = vadd.f32 %v906, %v1271
        %v1273 = vpop.f32.mrf.mxu0
        %v1274 = vpop.f32.mrf.mxu0
        %v1275 = vadd.f32 %v906, %v1274
        %v1276 = vpop.f32.mrf.mxu0
        %1277 = vmatprep.mubr.bf16.mxu0 0
        %1278 = vmatmul.mubr.bf16.gmra.mxu0 %v1015
        %v1279 = vpop.f32.mrf.mxu0
        %v1280 = vadd.f32 %v906, %v1279
        %v1281 = vpop.f32.mrf.mxu0
        %v1282 = vpop.f32.mrf.mxu0
        %v1283 = vadd.f32 %v906, %v1282
        %v1284 = vpop.f32.mrf.mxu0
        %1285 = vmatprep.mubr.bf16.mxu0 0
        %1286 = vmatmul.mubr.bf16.gmra.mxu0 %v1018
        %v1287 = vpop.f32.mrf.mxu0
        %v1288 = vadd.f32 %v906, %v1287
        %v1289 = vpop.f32.mrf.mxu0
        %v1290 = vpop.f32.mrf.mxu0
        %v1291 = vadd.f32 %v906, %v1290
        %v1292 = vpop.f32.mrf.mxu0
        %1293 = vmatprep.mubr.bf16.mxu0 0
        %1294 = vmatmul.mubr.bf16.gmra.mxu0 %v1021
        %v1295 = vpop.f32.mrf.mxu0
        %v1296 = vadd.f32 %v906, %v1295
        %v1297 = vpop.f32.mrf.mxu0
        %v1298 = vpop.f32.mrf.mxu0
        %v1299 = vadd.f32 %v906, %v1298
        %v1300 = vpop.f32.mrf.mxu0
        %1301 = vmatprep.mubr.bf16.mxu0 0
        %1302 = vmatmul.mubr.bf16.gmra.mxu0 %v1024
        %v1303 = vpop.f32.mrf.mxu0
        %v1304 = vadd.f32 %v906, %v1303
        %v1305 = vpop.f32.mrf.mxu0
        %v1306 = vpop.f32.mrf.mxu0
        %v1307 = vadd.f32 %v906, %v1306
        %v1308 = vpop.f32.mrf.mxu0
        %1309 = vmatprep.mubr.bf16.mxu0 0
        %1310 = vmatmul.mubr.bf16.gmra.mxu0 %v1027
        %v1311 = vpop.f32.mrf.mxu0
        %v1312 = vadd.f32 %v906, %v1311
        %v1313 = vpop.f32.mrf.mxu0
        %v1314 = vpop.f32.mrf.mxu0
        %v1315 = vadd.f32 %v906, %v1314
        %v1316 = vpop.f32.mrf.mxu0
        %1317 = vdwg.mxu0
        %v1318 = vmax.f32 %v1064, 0.0
        %v1319 = vmax.f32 %v1067, 0.0
        %v1320 = vmax.f32 %v1072, 0.0
        %v1321 = vmax.f32 %v1075, 0.0
        %v1322 = vmax.f32 %v1080, 0.0
        %v1323 = vmax.f32 %v1083, 0.0
        %v1324 = vmax.f32 %v1088, 0.0
        %v1325 = vmax.f32 %v1091, 0.0
        %v1326 = vmax.f32 %v1096, 0.0
        %v1327 = vmax.f32 %v1099, 0.0
        %v1328 = vmax.f32 %v1104, 0.0
        %v1329 = vmax.f32 %v1107, 0.0
        %v1330 = vmax.f32 %v1112, 0.0
        %v1331 = vmax.f32 %v1115, 0.0
        %v1332 = vmax.f32 %v1120, 0.0
        %v1333 = vmax.f32 %v1123, 0.0
        %v1334 = vmax.f32 %v1128, 0.0
        %v1335 = vmax.f32 %v1131, 0.0
        %v1336 = vmax.f32 %v1136, 0.0
        %v1337 = vmax.f32 %v1139, 0.0
        %v1338 = vmax.f32 %v1144, 0.0
        %v1339 = vmax.f32 %v1147, 0.0
        %v1340 = vmax.f32 %v1152, 0.0
        %v1341 = vmax.f32 %v1155, 0.0
        %v1342 = vmax.f32 %v1160, 0.0
        %v1343 = vmax.f32 %v1163, 0.0
        %v1344 = vmax.f32 %v1168, 0.0
        %v1345 = vmax.f32 %v1171, 0.0
        %v1346 = vmax.f32 %v1176, 0.0
        %v1347 = vmax.f32 %v1179, 0.0
        %v1348 = vmax.f32 %v1184, 0.0
        %v1349 = vmax.f32 %v1187, 0.0
        %v1350 = vmax.f32 %v1192, 0.0
        %v1351 = vmax.f32 %v1195, 0.0
        %v1352 = vmax.f32 %v1200, 0.0
        %v1353 = vmax.f32 %v1203, 0.0
        %v1354 = vmax.f32 %v1208, 0.0
        %v1355 = vmax.f32 %v1211, 0.0
        %v1356 = vmax.f32 %v1216, 0.0
        %v1357 = vmax.f32 %v1219, 0.0
        %v1358 = vmax.f32 %v1224, 0.0
        %v1359 = vmax.f32 %v1227, 0.0
        %v1360 = vmax.f32 %v1232, 0.0
        %v1361 = vmax.f32 %v1235, 0.0
        %v1362 = vmax.f32 %v1240, 0.0
        %v1363 = vmax.f32 %v1243, 0.0
        %v1364 = vmax.f32 %v1248, 0.0
        %v1365 = vmax.f32 %v1251, 0.0
        %v1366 = vmax.f32 %v1256, 0.0
        %v1367 = vmax.f32 %v1259, 0.0
        %v1368 = vmax.f32 %v1264, 0.0
        %v1369 = vmax.f32 %v1267, 0.0
        %v1370 = vmax.f32 %v1272, 0.0
        %v1371 = vmax.f32 %v1275, 0.0
        %v1372 = vmax.f32 %v1280, 0.0
        %v1373 = vmax.f32 %v1283, 0.0
        %v1374 = vmax.f32 %v1288, 0.0
        %v1375 = vmax.f32 %v1291, 0.0
        %v1376 = vmax.f32 %v1296, 0.0
        %v1377 = vmax.f32 %v1299, 0.0
        %v1378 = vmax.f32 %v1304, 0.0
        %v1379 = vmax.f32 %v1307, 0.0
        %v1380 = vmax.f32 %v1312, 0.0
        %v1381 = vmax.f32 %v1315, 0.0
        %v1382 = vpack.c.bf16 %v1319, %v1318
        %v1383 = vpack.c.bf16 %v1321, %v1320
        %v1384 = vpack.c.bf16 %v1323, %v1322
        %v1385 = vpack.c.bf16 %v1325, %v1324
        %v1386 = vpack.c.bf16 %v1327, %v1326
        %v1387 = vpack.c.bf16 %v1329, %v1328
        %v1388 = vpack.c.bf16 %v1331, %v1330
        %v1389 = vpack.c.bf16 %v1333, %v1332
        %v1390 = vpack.c.bf16 %v1335, %v1334
        %v1391 = vpack.c.bf16 %v1337, %v1336
        %v1392 = vpack.c.bf16 %v1339, %v1338
        %v1393 = vpack.c.bf16 %v1341, %v1340
        %v1394 = vpack.c.bf16 %v1343, %v1342
        %v1395 = vpack.c.bf16 %v1345, %v1344
        %v1396 = vpack.c.bf16 %v1347, %v1346
        %v1397 = vpack.c.bf16 %v1349, %v1348
        %v1398 = vpack.c.bf16 %v1351, %v1350
        %v1399 = vpack.c.bf16 %v1353, %v1352
        %v1400 = vpack.c.bf16 %v1355, %v1354
        %v1401 = vpack.c.bf16 %v1357, %v1356
        %v1402 = vpack.c.bf16 %v1359, %v1358
        %v1403 = vpack.c.bf16 %v1361, %v1360
        %v1404 = vpack.c.bf16 %v1363, %v1362
        %v1405 = vpack.c.bf16 %v1365, %v1364
        %v1406 = vpack.c.bf16 %v1367, %v1366
        %v1407 = vpack.c.bf16 %v1369, %v1368
        %v1408 = vpack.c.bf16 %v1371, %v1370
        %v1409 = vpack.c.bf16 %v1373, %v1372
        %v1410 = vpack.c.bf16 %v1375, %v1374
        %v1411 = vpack.c.bf16 %v1377, %v1376
        %v1412 = vpack.c.bf16 %v1379, %v1378
        %v1413 = vpack.c.bf16 %v1381, %v1380
        %v1414 = vld [vmem:[%s5] sm:$0xff]
        %v1415 = vld [vmem:[%s5 + $0x8] sm:$0xff]
        %v1416 = vld [vmem:[%s5 + $0x10] sm:$0xff]
        %v1417 = vld [vmem:[%s5 + $0x18] sm:$0xff]
        %v1418 = vld [vmem:[%s5 + $0x20] sm:$0xff]
        %v1419 = vld [vmem:[%s5 + $0x28] sm:$0xff]
        %v1420 = vld [vmem:[%s5 + $0x30] sm:$0xff]
        %v1421 = vld [vmem:[%s5 + $0x38] sm:$0xff]
        %v1422 = vld [vmem:[%s5 + $0x40] sm:$0xff]
        %v1423 = vld [vmem:[%s5 + $0x48] sm:$0xff]
        %v1424 = vld [vmem:[%s5 + $0x50] sm:$0xff]
        %v1425 = vld [vmem:[%s5 + $0x58] sm:$0xff]
        %v1426 = vld [vmem:[%s5 + $0x60] sm:$0xff]
        %v1427 = vld [vmem:[%s5 + $0x68] sm:$0xff]
        %v1428 = vld [vmem:[%s5 + $0x70] sm:$0xff]
        %v1429 = vld [vmem:[%s5 + $0x78] sm:$0xff]
        %v1430 = vld [vmem:[%s5 + $0x80] sm:$0xff]
        %v1431 = vld [vmem:[%s5 + $0x88] sm:$0xff]
        %v1432 = vld [vmem:[%s5 + $0x90] sm:$0xff]
        %v1433 = vld [vmem:[%s5 + $0x98] sm:$0xff]
        %v1434 = vld [vmem:[%s5 + $0xa0] sm:$0xff]
        %v1435 = vld [vmem:[%s5 + $0xa8] sm:$0xff]
        %v1436 = vld [vmem:[%s5 + $0xb0] sm:$0xff]
        %v1437 = vld [vmem:[%s5 + $0xb8] sm:$0xff]
        %v1438 = vld [vmem:[%s5 + $0xc0] sm:$0xff]
        %v1439 = vld [vmem:[%s5 + $0xc8] sm:$0xff]
        %v1440 = vld [vmem:[%s5 + $0xd0] sm:$0xff]
        %v1441 = vld [vmem:[%s5 + $0xd8] sm:$0xff]
        %v1442 = vld [vmem:[%s5 + $0xe0] sm:$0xff]
        %v1443 = vld [vmem:[%s5 + $0xe8] sm:$0xff]
        %v1444 = vld [vmem:[%s5 + $0xf0] sm:$0xff]
        %v1445 = vld [vmem:[%s5 + $0xf8] sm:$0xff]
        %v1446 = vld [vmem:[%s5 + $0x100] sm:$0xff]
        %v1447 = vld [vmem:[%s5 + $0x108] sm:$0xff]
        %v1448 = vld [vmem:[%s5 + $0x110] sm:$0xff]
        %v1449 = vld [vmem:[%s5 + $0x118] sm:$0xff]
        %v1450 = vld [vmem:[%s5 + $0x120] sm:$0xff]
        %v1451 = vld [vmem:[%s5 + $0x128] sm:$0xff]
        %v1452 = vld [vmem:[%s5 + $0x130] sm:$0xff]
        %v1453 = vld [vmem:[%s5 + $0x138] sm:$0xff]
        %v1454 = vld [vmem:[%s5 + $0x140] sm:$0xff]
        %v1455 = vld [vmem:[%s5 + $0x148] sm:$0xff]
        %v1456 = vld [vmem:[%s5 + $0x150] sm:$0xff]
        %v1457 = vld [vmem:[%s5 + $0x158] sm:$0xff]
        %v1458 = vld [vmem:[%s5 + $0x160] sm:$0xff]
        %v1459 = vld [vmem:[%s5 + $0x168] sm:$0xff]
        %v1460 = vld [vmem:[%s5 + $0x170] sm:$0xff]
        %v1461 = vld [vmem:[%s5 + $0x178] sm:$0xff]
        %v1462 = vld [vmem:[%s5 + $0x180] sm:$0xff]
        %v1463 = vld [vmem:[%s5 + $0x188] sm:$0xff]
        %v1464 = vld [vmem:[%s5 + $0x190] sm:$0xff]
        %v1465 = vld [vmem:[%s5 + $0x198] sm:$0xff]
        %v1466 = vld [vmem:[%s5 + $0x1a0] sm:$0xff]
        %v1467 = vld [vmem:[%s5 + $0x1a8] sm:$0xff]
        %v1468 = vld [vmem:[%s5 + $0x1b0] sm:$0xff]
        %v1469 = vld [vmem:[%s5 + $0x1b8] sm:$0xff]
        %v1470 = vld [vmem:[%s5 + $0x1c0] sm:$0xff]
        %v1471 = vld [vmem:[%s5 + $0x1c8] sm:$0xff]
        %v1472 = vld [vmem:[%s5 + $0x1d0] sm:$0xff]
        %v1473 = vld [vmem:[%s5 + $0x1d8] sm:$0xff]
        %v1474 = vld [vmem:[%s5 + $0x1e0] sm:$0xff]
        %v1475 = vld [vmem:[%s5 + $0x1e8] sm:$0xff]
        %v1476 = vld [vmem:[%s5 + $0x1f0] sm:$0xff]
        %v1477 = vld [vmem:[%s5 + $0x1f8] sm:$0xff]
        %v1542 = vunpack.c.l.b16 %v1414
        %v1543 = vunpack.c.h.b16 %v1414
        %v1544 = vunpack.c.l.b16 %v1415
        %v1545 = vunpack.c.h.b16 %v1415
        %v1546 = vunpack.c.l.b16 %v1416
        %v1547 = vunpack.c.h.b16 %v1416
        %v1548 = vunpack.c.l.b16 %v1417
        %v1549 = vunpack.c.h.b16 %v1417
        %v1550 = vunpack.c.l.b16 %v1418
        %v1551 = vunpack.c.h.b16 %v1418
        %v1552 = vunpack.c.l.b16 %v1419
        %v1553 = vunpack.c.h.b16 %v1419
        %v1554 = vunpack.c.l.b16 %v1420
        %v1555 = vunpack.c.h.b16 %v1420
        %v1556 = vunpack.c.l.b16 %v1421
        %v1557 = vunpack.c.h.b16 %v1421
        %v1558 = vunpack.c.l.b16 %v1422
        %v1559 = vunpack.c.h.b16 %v1422
        %v1560 = vunpack.c.l.b16 %v1423
        %v1561 = vunpack.c.h.b16 %v1423
        %v1562 = vunpack.c.l.b16 %v1424
        %v1563 = vunpack.c.h.b16 %v1424
        %v1564 = vunpack.c.l.b16 %v1425
        %v1565 = vunpack.c.h.b16 %v1425
        %v1566 = vunpack.c.l.b16 %v1426
        %v1567 = vunpack.c.h.b16 %v1426
        %v1568 = vunpack.c.l.b16 %v1427
        %v1569 = vunpack.c.h.b16 %v1427
        %v1570 = vunpack.c.l.b16 %v1428
        %v1571 = vunpack.c.h.b16 %v1428
        %v1572 = vunpack.c.l.b16 %v1429
        %v1573 = vunpack.c.h.b16 %v1429
        %v1574 = vunpack.c.l.b16 %v1430
        %v1575 = vunpack.c.h.b16 %v1430
        %v1576 = vunpack.c.l.b16 %v1431
        %v1577 = vunpack.c.h.b16 %v1431
        %v1578 = vunpack.c.l.b16 %v1432
        %v1579 = vunpack.c.h.b16 %v1432
        %v1580 = vunpack.c.l.b16 %v1433
        %v1581 = vunpack.c.h.b16 %v1433
        %v1582 = vunpack.c.l.b16 %v1434
        %v1583 = vunpack.c.h.b16 %v1434
        %v1584 = vunpack.c.l.b16 %v1435
        %v1585 = vunpack.c.h.b16 %v1435
        %v1586 = vunpack.c.l.b16 %v1436
        %v1587 = vunpack.c.h.b16 %v1436
        %v1588 = vunpack.c.l.b16 %v1437
        %v1589 = vunpack.c.h.b16 %v1437
        %v1590 = vunpack.c.l.b16 %v1438
        %v1591 = vunpack.c.h.b16 %v1438
        %v1592 = vunpack.c.l.b16 %v1439
        %v1593 = vunpack.c.h.b16 %v1439
        %v1594 = vunpack.c.l.b16 %v1440
        %v1595 = vunpack.c.h.b16 %v1440
        %v1596 = vunpack.c.l.b16 %v1441
        %v1597 = vunpack.c.h.b16 %v1441
        %v1598 = vunpack.c.l.b16 %v1442
        %v1599 = vunpack.c.h.b16 %v1442
        %v1600 = vunpack.c.l.b16 %v1443
        %v1601 = vunpack.c.h.b16 %v1443
        %v1602 = vunpack.c.l.b16 %v1444
        %v1603 = vunpack.c.h.b16 %v1444
        %v1604 = vunpack.c.l.b16 %v1445
        %v1605 = vunpack.c.h.b16 %v1445
        %v1606 = vunpack.c.l.b16 %v1446
        %v1607 = vunpack.c.h.b16 %v1446
        %v1608 = vunpack.c.l.b16 %v1447
        %v1609 = vunpack.c.h.b16 %v1447
        %v1610 = vunpack.c.l.b16 %v1448
        %v1611 = vunpack.c.h.b16 %v1448
        %v1612 = vunpack.c.l.b16 %v1449
        %v1613 = vunpack.c.h.b16 %v1449
        %v1614 = vunpack.c.l.b16 %v1450
        %v1615 = vunpack.c.h.b16 %v1450
        %v1616 = vunpack.c.l.b16 %v1451
        %v1617 = vunpack.c.h.b16 %v1451
        %v1618 = vunpack.c.l.b16 %v1452
        %v1619 = vunpack.c.h.b16 %v1452
        %v1620 = vunpack.c.l.b16 %v1453
        %v1621 = vunpack.c.h.b16 %v1453
        %v1622 = vunpack.c.l.b16 %v1454
        %v1623 = vunpack.c.h.b16 %v1454
        %v1624 = vunpack.c.l.b16 %v1455
        %v1625 = vunpack.c.h.b16 %v1455
        %v1626 = vunpack.c.l.b16 %v1456
        %v1627 = vunpack.c.h.b16 %v1456
        %v1628 = vunpack.c.l.b16 %v1457
        %v1629 = vunpack.c.h.b16 %v1457
        %v1630 = vunpack.c.l.b16 %v1458
        %v1631 = vunpack.c.h.b16 %v1458
        %v1632 = vunpack.c.l.b16 %v1459
        %v1633 = vunpack.c.h.b16 %v1459
        %v1634 = vunpack.c.l.b16 %v1460
        %v1635 = vunpack.c.h.b16 %v1460
        %v1636 = vunpack.c.l.b16 %v1461
        %v1637 = vunpack.c.h.b16 %v1461
        %v1638 = vunpack.c.l.b16 %v1462
        %v1639 = vunpack.c.h.b16 %v1462
        %v1640 = vunpack.c.l.b16 %v1463
        %v1641 = vunpack.c.h.b16 %v1463
        %v1642 = vunpack.c.l.b16 %v1464
        %v1643 = vunpack.c.h.b16 %v1464
        %v1644 = vunpack.c.l.b16 %v1465
        %v1645 = vunpack.c.h.b16 %v1465
        %v1646 = vunpack.c.l.b16 %v1466
        %v1647 = vunpack.c.h.b16 %v1466
        %v1648 = vunpack.c.l.b16 %v1467
        %v1649 = vunpack.c.h.b16 %v1467
        %v1650 = vunpack.c.l.b16 %v1468
        %v1651 = vunpack.c.h.b16 %v1468
        %v1652 = vunpack.c.l.b16 %v1469
        %v1653 = vunpack.c.h.b16 %v1469
        %v1654 = vunpack.c.l.b16 %v1470
        %v1655 = vunpack.c.h.b16 %v1470
        %v1656 = vunpack.c.l.b16 %v1471
        %v1657 = vunpack.c.h.b16 %v1471
        %v1658 = vunpack.c.l.b16 %v1472
        %v1659 = vunpack.c.h.b16 %v1472
        %v1660 = vunpack.c.l.b16 %v1473
        %v1661 = vunpack.c.h.b16 %v1473
        %v1662 = vunpack.c.l.b16 %v1474
        %v1663 = vunpack.c.h.b16 %v1474
        %v1664 = vunpack.c.l.b16 %v1475
        %v1665 = vunpack.c.h.b16 %v1475
        %v1666 = vunpack.c.l.b16 %v1476
        %v1667 = vunpack.c.h.b16 %v1476
        %v1668 = vunpack.c.l.b16 %v1477
        %v1669 = vunpack.c.h.b16 %v1477
        %v1670 = vpack.c.b16 %v1550, %v1542
        %v1671 = vpack.c.b16 %v1551, %v1543
        %v1672 = vpack.c.b16 %v1552, %v1544
        %v1673 = vpack.c.b16 %v1553, %v1545
        %v1674 = vpack.c.b16 %v1554, %v1546
        %v1675 = vpack.c.b16 %v1555, %v1547
        %v1676 = vpack.c.b16 %v1556, %v1548
        %v1677 = vpack.c.b16 %v1557, %v1549
        %v1678 = vpack.c.b16 %v1566, %v1558
        %v1679 = vpack.c.b16 %v1567, %v1559
        %v1680 = vpack.c.b16 %v1568, %v1560
        %v1681 = vpack.c.b16 %v1569, %v1561
        %v1682 = vpack.c.b16 %v1570, %v1562
        %v1683 = vpack.c.b16 %v1571, %v1563
        %v1684 = vpack.c.b16 %v1572, %v1564
        %v1685 = vpack.c.b16 %v1573, %v1565
        %v1686 = vpack.c.b16 %v1582, %v1574
        %v1687 = vpack.c.b16 %v1583, %v1575
        %v1688 = vpack.c.b16 %v1584, %v1576
        %v1689 = vpack.c.b16 %v1585, %v1577
        %v1690 = vpack.c.b16 %v1586, %v1578
        %v1691 = vpack.c.b16 %v1587, %v1579
        %v1692 = vpack.c.b16 %v1588, %v1580
        %v1693 = vpack.c.b16 %v1589, %v1581
        %v1694 = vpack.c.b16 %v1598, %v1590
        %v1695 = vpack.c.b16 %v1599, %v1591
        %v1696 = vpack.c.b16 %v1600, %v1592
        %v1697 = vpack.c.b16 %v1601, %v1593
        %v1698 = vpack.c.b16 %v1602, %v1594
        %v1699 = vpack.c.b16 %v1603, %v1595
        %v1700 = vpack.c.b16 %v1604, %v1596
        %v1701 = vpack.c.b16 %v1605, %v1597
        %v1702 = vpack.c.b16 %v1614, %v1606
        %v1703 = vpack.c.b16 %v1615, %v1607
        %v1704 = vpack.c.b16 %v1616, %v1608
        %v1705 = vpack.c.b16 %v1617, %v1609
        %v1706 = vpack.c.b16 %v1618, %v1610
        %v1707 = vpack.c.b16 %v1619, %v1611
        %v1708 = vpack.c.b16 %v1620, %v1612
        %v1709 = vpack.c.b16 %v1621, %v1613
        %v1710 = vpack.c.b16 %v1630, %v1622
        %v1711 = vpack.c.b16 %v1631, %v1623
        %v1712 = vpack.c.b16 %v1632, %v1624
        %v1713 = vpack.c.b16 %v1633, %v1625
        %v1714 = vpack.c.b16 %v1634, %v1626
        %v1715 = vpack.c.b16 %v1635, %v1627
        %v1716 = vpack.c.b16 %v1636, %v1628
        %v1717 = vpack.c.b16 %v1637, %v1629
        %v1718 = vpack.c.b16 %v1646, %v1638
        %v1719 = vpack.c.b16 %v1647, %v1639
        %v1720 = vpack.c.b16 %v1648, %v1640
        %v1721 = vpack.c.b16 %v1649, %v1641
        %v1722 = vpack.c.b16 %v1650, %v1642
        %v1723 = vpack.c.b16 %v1651, %v1643
        %v1724 = vpack.c.b16 %v1652, %v1644
        %v1725 = vpack.c.b16 %v1653, %v1645
        %v1726 = vpack.c.b16 %v1662, %v1654
        %v1727 = vpack.c.b16 %v1663, %v1655
        %v1728 = vpack.c.b16 %v1664, %v1656
        %v1729 = vpack.c.b16 %v1665, %v1657
        %v1730 = vpack.c.b16 %v1666, %v1658
        %v1731 = vpack.c.b16 %v1667, %v1659
        %v1732 = vpack.c.b16 %v1668, %v1660
        %v1733 = vpack.c.b16 %v1669, %v1661
        %1798 = vmatprep.subr.bf16.mxu0 %v1727
        %1799 = vmatpush1.bf16.msra.mxu0 %v1726
        %1800 = vmatprep.subr.bf16.mxu0 %v1719
        %1801 = vmatpush1.bf16.msra.mxu0 %v1718
        %1802 = vmatprep.subr.bf16.mxu0 %v1711
        %1803 = vmatpush1.bf16.msra.mxu0 %v1710
        %1804 = vmatprep.subr.bf16.mxu0 %v1703
        %1805 = vmatpush1.bf16.msra.mxu0 %v1702
        %1806 = vmatprep.subr.bf16.mxu0 %v1695
        %1807 = vmatpush1.bf16.msra.mxu0 %v1694
        %1808 = vmatprep.subr.bf16.mxu0 %v1687
        %1809 = vmatpush1.bf16.msra.mxu0 %v1686
        %1810 = vmatprep.subr.bf16.mxu0 %v1679
        %1811 = vmatpush1.bf16.msra.mxu0 %v1678
        %1812 = vmatprep.subr.bf16.mxu0 %v1671
        %1813 = vmatpush1.bf16.msra.mxu0 %v1670
        %1814 = vmatprep.subr.bf16.mxu0 0
        %1815 = vmatpush2.bf16.msra.mxu0 0
        %1816 = vmatprep.subr.bf16.mxu0 0
        %1817 = vmatpush2.bf16.msra.mxu0 0
        %1818 = vmatprep.subr.bf16.mxu0 0
        %1819 = vmatpush2.bf16.msra.mxu0 0
        %1820 = vmatprep.subr.bf16.mxu0 0
        %1821 = vmatpush2.bf16.msra.mxu0 0
        %1822 = vmatprep.subr.bf16.mxu0 0
        %1823 = vmatpush2.bf16.msra.mxu0 0
        %1824 = vmatprep.subr.bf16.mxu0 0
        %1825 = vmatpush2.bf16.msra.mxu0 0
        %1826 = vmatprep.subr.bf16.mxu0 0
        %1827 = vmatpush2.bf16.msra.mxu0 0
        %1828 = vmatprep.subr.bf16.mxu0 0
        %1829 = vmatpush2.bf16.msra.mxu0 0
        %1830 = vmatprep.mubr.bf16.mxu0 0
        %1831 = vmatmul.mubr.bf16.gmra.mxu0 %v1382
        %v1832 = vpop.f32.mrf.mxu0
        %v1833 = vadd.f32 0.0, %v1832
        %v1834 = vpop.f32.mrf.mxu0
        %v1835 = vadd.f32 0.0, %v1834
        %v1836 = vpop.f32.mrf.mxu0
        %v1837 = vadd.f32 0.0, %v1836
        %v1838 = vpop.f32.mrf.mxu0
        %v1839 = vadd.f32 0.0, %v1838
        %1840 = vmatprep.mubr.bf16.mxu0 0
        %1841 = vmatmul.mubr.bf16.gmra.mxu0 %v1383
        %v1842 = vpop.f32.mrf.mxu0
        %v1843 = vadd.f32 0.0, %v1842
        %v1844 = vpop.f32.mrf.mxu0
        %v1845 = vadd.f32 0.0, %v1844
        %v1846 = vpop.f32.mrf.mxu0
        %v1847 = vadd.f32 0.0, %v1846
        %v1848 = vpop.f32.mrf.mxu0
        %v1849 = vadd.f32 0.0, %v1848
        %1850 = vmatprep.mubr.bf16.mxu0 0
        %1851 = vmatmul.mubr.bf16.gmra.mxu0 %v1384
        %v1852 = vpop.f32.mrf.mxu0
        %v1853 = vadd.f32 0.0, %v1852
        %v1854 = vpop.f32.mrf.mxu0
        %v1855 = vadd.f32 0.0, %v1854
        %v1856 = vpop.f32.mrf.mxu0
        %v1857 = vadd.f32 0.0, %v1856
        %v1858 = vpop.f32.mrf.mxu0
        %v1859 = vadd.f32 0.0, %v1858
        %1860 = vmatprep.mubr.bf16.mxu0 0
        %1861 = vmatmul.mubr.bf16.gmra.mxu0 %v1385
        %v1862 = vpop.f32.mrf.mxu0
        %v1863 = vadd.f32 0.0, %v1862
        %v1864 = vpop.f32.mrf.mxu0
        %v1865 = vadd.f32 0.0, %v1864
        %v1866 = vpop.f32.mrf.mxu0
        %v1867 = vadd.f32 0.0, %v1866
        %v1868 = vpop.f32.mrf.mxu0
        %v1869 = vadd.f32 0.0, %v1868
        %1870 = vmatprep.mubr.bf16.mxu0 0
        %1871 = vmatmul.mubr.bf16.gmra.mxu0 %v1386
        %v1872 = vpop.f32.mrf.mxu0
        %v1873 = vadd.f32 0.0, %v1872
        %v1874 = vpop.f32.mrf.mxu0
        %v1875 = vadd.f32 0.0, %v1874
        %v1876 = vpop.f32.mrf.mxu0
        %v1877 = vadd.f32 0.0, %v1876
        %v1878 = vpop.f32.mrf.mxu0
        %v1879 = vadd.f32 0.0, %v1878
        %1880 = vmatprep.mubr.bf16.mxu0 0
        %1881 = vmatmul.mubr.bf16.gmra.mxu0 %v1387
        %v1882 = vpop.f32.mrf.mxu0
        %v1883 = vadd.f32 0.0, %v1882
        %v1884 = vpop.f32.mrf.mxu0
        %v1885 = vadd.f32 0.0, %v1884
        %v1886 = vpop.f32.mrf.mxu0
        %v1887 = vadd.f32 0.0, %v1886
        %v1888 = vpop.f32.mrf.mxu0
        %v1889 = vadd.f32 0.0, %v1888
        %1890 = vmatprep.mubr.bf16.mxu0 0
        %1891 = vmatmul.mubr.bf16.gmra.mxu0 %v1388
        %v1892 = vpop.f32.mrf.mxu0
        %v1893 = vadd.f32 0.0, %v1892
        %v1894 = vpop.f32.mrf.mxu0
        %v1895 = vadd.f32 0.0, %v1894
        %v1896 = vpop.f32.mrf.mxu0
        %v1897 = vadd.f32 0.0, %v1896
        %v1898 = vpop.f32.mrf.mxu0
        %v1899 = vadd.f32 0.0, %v1898
        %1900 = vmatprep.mubr.bf16.mxu0 0
        %1901 = vmatmul.mubr.bf16.gmra.mxu0 %v1389
        %v1902 = vpop.f32.mrf.mxu0
        %v1903 = vadd.f32 0.0, %v1902
        %v1904 = vpop.f32.mrf.mxu0
        %v1905 = vadd.f32 0.0, %v1904
        %v1906 = vpop.f32.mrf.mxu0
        %v1907 = vadd.f32 0.0, %v1906
        %v1908 = vpop.f32.mrf.mxu0
        %v1909 = vadd.f32 0.0, %v1908
        %1910 = vmatprep.mubr.bf16.mxu0 0
        %1911 = vmatmul.mubr.bf16.gmra.mxu0 %v1390
        %v1912 = vpop.f32.mrf.mxu0
        %v1913 = vadd.f32 0.0, %v1912
        %v1914 = vpop.f32.mrf.mxu0
        %v1915 = vadd.f32 0.0, %v1914
        %v1916 = vpop.f32.mrf.mxu0
        %v1917 = vadd.f32 0.0, %v1916
        %v1918 = vpop.f32.mrf.mxu0
        %v1919 = vadd.f32 0.0, %v1918
        %1920 = vmatprep.mubr.bf16.mxu0 0
        %1921 = vmatmul.mubr.bf16.gmra.mxu0 %v1391
        %v1922 = vpop.f32.mrf.mxu0
        %v1923 = vadd.f32 0.0, %v1922
        %v1924 = vpop.f32.mrf.mxu0
        %v1925 = vadd.f32 0.0, %v1924
        %v1926 = vpop.f32.mrf.mxu0
        %v1927 = vadd.f32 0.0, %v1926
        %v1928 = vpop.f32.mrf.mxu0
        %v1929 = vadd.f32 0.0, %v1928
        %1930 = vmatprep.mubr.bf16.mxu0 0
        %1931 = vmatmul.mubr.bf16.gmra.mxu0 %v1392
        %v1932 = vpop.f32.mrf.mxu0
        %v1933 = vadd.f32 0.0, %v1932
        %v1934 = vpop.f32.mrf.mxu0
        %v1935 = vadd.f32 0.0, %v1934
        %v1936 = vpop.f32.mrf.mxu0
        %v1937 = vadd.f32 0.0, %v1936
        %v1938 = vpop.f32.mrf.mxu0
        %v1939 = vadd.f32 0.0, %v1938
        %1940 = vmatprep.mubr.bf16.mxu0 0
        %1941 = vmatmul.mubr.bf16.gmra.mxu0 %v1393
        %v1942 = vpop.f32.mrf.mxu0
        %v1943 = vadd.f32 0.0, %v1942
        %v1944 = vpop.f32.mrf.mxu0
        %v1945 = vadd.f32 0.0, %v1944
        %v1946 = vpop.f32.mrf.mxu0
        %v1947 = vadd.f32 0.0, %v1946
        %v1948 = vpop.f32.mrf.mxu0
        %v1949 = vadd.f32 0.0, %v1948
        %1950 = vmatprep.mubr.bf16.mxu0 0
        %1951 = vmatmul.mubr.bf16.gmra.mxu0 %v1394
        %v1952 = vpop.f32.mrf.mxu0
        %v1953 = vadd.f32 0.0, %v1952
        %v1954 = vpop.f32.mrf.mxu0
        %v1955 = vadd.f32 0.0, %v1954
        %v1956 = vpop.f32.mrf.mxu0
        %v1957 = vadd.f32 0.0, %v1956
        %v1958 = vpop.f32.mrf.mxu0
        %v1959 = vadd.f32 0.0, %v1958
        %1960 = vmatprep.mubr.bf16.mxu0 0
        %1961 = vmatmul.mubr.bf16.gmra.mxu0 %v1395
        %v1962 = vpop.f32.mrf.mxu0
        %v1963 = vadd.f32 0.0, %v1962
        %v1964 = vpop.f32.mrf.mxu0
        %v1965 = vadd.f32 0.0, %v1964
        %v1966 = vpop.f32.mrf.mxu0
        %v1967 = vadd.f32 0.0, %v1966
        %v1968 = vpop.f32.mrf.mxu0
        %v1969 = vadd.f32 0.0, %v1968
        %1970 = vmatprep.mubr.bf16.mxu0 0
        %1971 = vmatmul.mubr.bf16.gmra.mxu0 %v1396
        %v1972 = vpop.f32.mrf.mxu0
        %v1973 = vadd.f32 0.0, %v1972
        %v1974 = vpop.f32.mrf.mxu0
        %v1975 = vadd.f32 0.0, %v1974
        %v1976 = vpop.f32.mrf.mxu0
        %v1977 = vadd.f32 0.0, %v1976
        %v1978 = vpop.f32.mrf.mxu0
        %v1979 = vadd.f32 0.0, %v1978
        %1980 = vmatprep.mubr.bf16.mxu0 0
        %1981 = vmatmul.mubr.bf16.gmra.mxu0 %v1397
        %v1982 = vpop.f32.mrf.mxu0
        %v1983 = vadd.f32 0.0, %v1982
        %v1984 = vpop.f32.mrf.mxu0
        %v1985 = vadd.f32 0.0, %v1984
        %v1986 = vpop.f32.mrf.mxu0
        %v1987 = vadd.f32 0.0, %v1986
        %v1988 = vpop.f32.mrf.mxu0
        %v1989 = vadd.f32 0.0, %v1988
        %1990 = vmatprep.mubr.bf16.mxu0 0
        %1991 = vmatmul.mubr.bf16.gmra.mxu0 %v1398
        %v1992 = vpop.f32.mrf.mxu0
        %v1993 = vadd.f32 0.0, %v1992
        %v1994 = vpop.f32.mrf.mxu0
        %v1995 = vadd.f32 0.0, %v1994
        %v1996 = vpop.f32.mrf.mxu0
        %v1997 = vadd.f32 0.0, %v1996
        %v1998 = vpop.f32.mrf.mxu0
        %v1999 = vadd.f32 0.0, %v1998
        %2000 = vmatprep.mubr.bf16.mxu0 0
        %2001 = vmatmul.mubr.bf16.gmra.mxu0 %v1399
        %v2002 = vpop.f32.mrf.mxu0
        %v2003 = vadd.f32 0.0, %v2002
        %v2004 = vpop.f32.mrf.mxu0
        %v2005 = vadd.f32 0.0, %v2004
        %v2006 = vpop.f32.mrf.mxu0
        %v2007 = vadd.f32 0.0, %v2006
        %v2008 = vpop.f32.mrf.mxu0
        %v2009 = vadd.f32 0.0, %v2008
        %2010 = vmatprep.mubr.bf16.mxu0 0
        %2011 = vmatmul.mubr.bf16.gmra.mxu0 %v1400
        %v2012 = vpop.f32.mrf.mxu0
        %v2013 = vadd.f32 0.0, %v2012
        %v2014 = vpop.f32.mrf.mxu0
        %v2015 = vadd.f32 0.0, %v2014
        %v2016 = vpop.f32.mrf.mxu0
        %v2017 = vadd.f32 0.0, %v2016
        %v2018 = vpop.f32.mrf.mxu0
        %v2019 = vadd.f32 0.0, %v2018
        %2020 = vmatprep.mubr.bf16.mxu0 0
        %2021 = vmatmul.mubr.bf16.gmra.mxu0 %v1401
        %v2022 = vpop.f32.mrf.mxu0
        %v2023 = vadd.f32 0.0, %v2022
        %v2024 = vpop.f32.mrf.mxu0
        %v2025 = vadd.f32 0.0, %v2024
        %v2026 = vpop.f32.mrf.mxu0
        %v2027 = vadd.f32 0.0, %v2026
        %v2028 = vpop.f32.mrf.mxu0
        %v2029 = vadd.f32 0.0, %v2028
        %2030 = vmatprep.mubr.bf16.mxu0 0
        %2031 = vmatmul.mubr.bf16.gmra.mxu0 %v1402
        %v2032 = vpop.f32.mrf.mxu0
        %v2033 = vadd.f32 0.0, %v2032
        %v2034 = vpop.f32.mrf.mxu0
        %v2035 = vadd.f32 0.0, %v2034
        %v2036 = vpop.f32.mrf.mxu0
        %v2037 = vadd.f32 0.0, %v2036
        %v2038 = vpop.f32.mrf.mxu0
        %v2039 = vadd.f32 0.0, %v2038
        %2040 = vmatprep.mubr.bf16.mxu0 0
        %2041 = vmatmul.mubr.bf16.gmra.mxu0 %v1403
        %v2042 = vpop.f32.mrf.mxu0
        %v2043 = vadd.f32 0.0, %v2042
        %v2044 = vpop.f32.mrf.mxu0
        %v2045 = vadd.f32 0.0, %v2044
        %v2046 = vpop.f32.mrf.mxu0
        %v2047 = vadd.f32 0.0, %v2046
        %v2048 = vpop.f32.mrf.mxu0
        %v2049 = vadd.f32 0.0, %v2048
        %2050 = vmatprep.mubr.bf16.mxu0 0
        %2051 = vmatmul.mubr.bf16.gmra.mxu0 %v1404
        %v2052 = vpop.f32.mrf.mxu0
        %v2053 = vadd.f32 0.0, %v2052
        %v2054 = vpop.f32.mrf.mxu0
        %v2055 = vadd.f32 0.0, %v2054
        %v2056 = vpop.f32.mrf.mxu0
        %v2057 = vadd.f32 0.0, %v2056
        %v2058 = vpop.f32.mrf.mxu0
        %v2059 = vadd.f32 0.0, %v2058
        %2060 = vmatprep.mubr.bf16.mxu0 0
        %2061 = vmatmul.mubr.bf16.gmra.mxu0 %v1405
        %v2062 = vpop.f32.mrf.mxu0
        %v2063 = vadd.f32 0.0, %v2062
        %v2064 = vpop.f32.mrf.mxu0
        %v2065 = vadd.f32 0.0, %v2064
        %v2066 = vpop.f32.mrf.mxu0
        %v2067 = vadd.f32 0.0, %v2066
        %v2068 = vpop.f32.mrf.mxu0
        %v2069 = vadd.f32 0.0, %v2068
        %2070 = vmatprep.mubr.bf16.mxu0 0
        %2071 = vmatmul.mubr.bf16.gmra.mxu0 %v1406
        %v2072 = vpop.f32.mrf.mxu0
        %v2073 = vadd.f32 0.0, %v2072
        %v2074 = vpop.f32.mrf.mxu0
        %v2075 = vadd.f32 0.0, %v2074
        %v2076 = vpop.f32.mrf.mxu0
        %v2077 = vadd.f32 0.0, %v2076
        %v2078 = vpop.f32.mrf.mxu0
        %v2079 = vadd.f32 0.0, %v2078
        %2080 = vmatprep.mubr.bf16.mxu0 0
        %2081 = vmatmul.mubr.bf16.gmra.mxu0 %v1407
        %v2082 = vpop.f32.mrf.mxu0
        %v2083 = vadd.f32 0.0, %v2082
        %v2084 = vpop.f32.mrf.mxu0
        %v2085 = vadd.f32 0.0, %v2084
        %v2086 = vpop.f32.mrf.mxu0
        %v2087 = vadd.f32 0.0, %v2086
        %v2088 = vpop.f32.mrf.mxu0
        %v2089 = vadd.f32 0.0, %v2088
        %2090 = vmatprep.mubr.bf16.mxu0 0
        %2091 = vmatmul.mubr.bf16.gmra.mxu0 %v1408
        %v2092 = vpop.f32.mrf.mxu0
        %v2093 = vadd.f32 0.0, %v2092
        %v2094 = vpop.f32.mrf.mxu0
        %v2095 = vadd.f32 0.0, %v2094
        %v2096 = vpop.f32.mrf.mxu0
        %v2097 = vadd.f32 0.0, %v2096
        %v2098 = vpop.f32.mrf.mxu0
        %v2099 = vadd.f32 0.0, %v2098
        %2100 = vmatprep.mubr.bf16.mxu0 0
        %2101 = vmatmul.mubr.bf16.gmra.mxu0 %v1409
        %v2102 = vpop.f32.mrf.mxu0
        %v2103 = vadd.f32 0.0, %v2102
        %v2104 = vpop.f32.mrf.mxu0
        %v2105 = vadd.f32 0.0, %v2104
        %v2106 = vpop.f32.mrf.mxu0
        %v2107 = vadd.f32 0.0, %v2106
        %v2108 = vpop.f32.mrf.mxu0
        %v2109 = vadd.f32 0.0, %v2108
        %2110 = vmatprep.mubr.bf16.mxu0 0
        %2111 = vmatmul.mubr.bf16.gmra.mxu0 %v1410
        %v2112 = vpop.f32.mrf.mxu0
        %v2113 = vadd.f32 0.0, %v2112
        %v2114 = vpop.f32.mrf.mxu0
        %v2115 = vadd.f32 0.0, %v2114
        %v2116 = vpop.f32.mrf.mxu0
        %v2117 = vadd.f32 0.0, %v2116
        %v2118 = vpop.f32.mrf.mxu0
        %v2119 = vadd.f32 0.0, %v2118
        %2120 = vmatprep.mubr.bf16.mxu0 0
        %2121 = vmatmul.mubr.bf16.gmra.mxu0 %v1411
        %v2122 = vpop.f32.mrf.mxu0
        %v2123 = vadd.f32 0.0, %v2122
        %v2124 = vpop.f32.mrf.mxu0
        %v2125 = vadd.f32 0.0, %v2124
        %v2126 = vpop.f32.mrf.mxu0
        %v2127 = vadd.f32 0.0, %v2126
        %v2128 = vpop.f32.mrf.mxu0
        %v2129 = vadd.f32 0.0, %v2128
        %2130 = vmatprep.mubr.bf16.mxu0 0
        %2131 = vmatmul.mubr.bf16.gmra.mxu0 %v1412
        %v2132 = vpop.f32.mrf.mxu0
        %v2133 = vadd.f32 0.0, %v2132
        %v2134 = vpop.f32.mrf.mxu0
        %v2135 = vadd.f32 0.0, %v2134
        %v2136 = vpop.f32.mrf.mxu0
        %v2137 = vadd.f32 0.0, %v2136
        %v2138 = vpop.f32.mrf.mxu0
        %v2139 = vadd.f32 0.0, %v2138
        %2140 = vmatprep.mubr.bf16.mxu0 0
        %2141 = vmatmul.mubr.bf16.gmra.mxu0 %v1413
        %v2142 = vpop.f32.mrf.mxu0
        %v2143 = vadd.f32 0.0, %v2142
        %v2144 = vpop.f32.mrf.mxu0
        %v2145 = vadd.f32 0.0, %v2144
        %v2146 = vpop.f32.mrf.mxu0
        %v2147 = vadd.f32 0.0, %v2146
        %v2148 = vpop.f32.mrf.mxu0
        %v2149 = vadd.f32 0.0, %v2148
        %2150 = vdwg.mxu0
        %2151 = vmatprep.subr.bf16.mxu0 %v1729
        %2152 = vmatpush1.bf16.msra.mxu0 %v1728
        %2153 = vmatprep.subr.bf16.mxu0 %v1721
        %2154 = vmatpush1.bf16.msra.mxu0 %v1720
        %2155 = vmatprep.subr.bf16.mxu0 %v1713
        %2156 = vmatpush1.bf16.msra.mxu0 %v1712
        %2157 = vmatprep.subr.bf16.mxu0 %v1705
        %2158 = vmatpush1.bf16.msra.mxu0 %v1704
        %2159 = vmatprep.subr.bf16.mxu0 %v1697
        %2160 = vmatpush1.bf16.msra.mxu0 %v1696
        %2161 = vmatprep.subr.bf16.mxu0 %v1689
        %2162 = vmatpush1.bf16.msra.mxu0 %v1688
        %2163 = vmatprep.subr.bf16.mxu0 %v1681
        %2164 = vmatpush1.bf16.msra.mxu0 %v1680
        %2165 = vmatprep.subr.bf16.mxu0 %v1673
        %2166 = vmatpush1.bf16.msra.mxu0 %v1672
        %2167 = vmatprep.subr.bf16.mxu0 0
        %2168 = vmatpush2.bf16.msra.mxu0 0
        %2169 = vmatprep.subr.bf16.mxu0 0
        %2170 = vmatpush2.bf16.msra.mxu0 0
        %2171 = vmatprep.subr.bf16.mxu0 0
        %2172 = vmatpush2.bf16.msra.mxu0 0
        %2173 = vmatprep.subr.bf16.mxu0 0
        %2174 = vmatpush2.bf16.msra.mxu0 0
        %2175 = vmatprep.subr.bf16.mxu0 0
        %2176 = vmatpush2.bf16.msra.mxu0 0
        %2177 = vmatprep.subr.bf16.mxu0 0
        %2178 = vmatpush2.bf16.msra.mxu0 0
        %2179 = vmatprep.subr.bf16.mxu0 0
        %2180 = vmatpush2.bf16.msra.mxu0 0
        %2181 = vmatprep.subr.bf16.mxu0 0
        %2182 = vmatpush2.bf16.msra.mxu0 0
        %2183 = vmatprep.mubr.bf16.mxu0 0
        %2184 = vmatmul.mubr.bf16.gmra.mxu0 %v1382
        %v2185 = vpop.f32.mrf.mxu0
        %v2186 = vadd.f32 0.0, %v2185
        %v2187 = vpop.f32.mrf.mxu0
        %v2188 = vadd.f32 0.0, %v2187
        %v2189 = vpop.f32.mrf.mxu0
        %v2190 = vadd.f32 0.0, %v2189
        %v2191 = vpop.f32.mrf.mxu0
        %v2192 = vadd.f32 0.0, %v2191
        %2193 = vmatprep.mubr.bf16.mxu0 0
        %2194 = vmatmul.mubr.bf16.gmra.mxu0 %v1383
        %v2195 = vpop.f32.mrf.mxu0
        %v2196 = vadd.f32 0.0, %v2195
        %v2197 = vpop.f32.mrf.mxu0
        %v2198 = vadd.f32 0.0, %v2197
        %v2199 = vpop.f32.mrf.mxu0
        %v2200 = vadd.f32 0.0, %v2199
        %v2201 = vpop.f32.mrf.mxu0
        %v2202 = vadd.f32 0.0, %v2201
        %2203 = vmatprep.mubr.bf16.mxu0 0
        %2204 = vmatmul.mubr.bf16.gmra.mxu0 %v1384
        %v2205 = vpop.f32.mrf.mxu0
        %v2206 = vadd.f32 0.0, %v2205
        %v2207 = vpop.f32.mrf.mxu0
        %v2208 = vadd.f32 0.0, %v2207
        %v2209 = vpop.f32.mrf.mxu0
        %v2210 = vadd.f32 0.0, %v2209
        %v2211 = vpop.f32.mrf.mxu0
        %v2212 = vadd.f32 0.0, %v2211
        %2213 = vmatprep.mubr.bf16.mxu0 0
        %2214 = vmatmul.mubr.bf16.gmra.mxu0 %v1385
        %v2215 = vpop.f32.mrf.mxu0
        %v2216 = vadd.f32 0.0, %v2215
        %v2217 = vpop.f32.mrf.mxu0
        %v2218 = vadd.f32 0.0, %v2217
        %v2219 = vpop.f32.mrf.mxu0
        %v2220 = vadd.f32 0.0, %v2219
        %v2221 = vpop.f32.mrf.mxu0
        %v2222 = vadd.f32 0.0, %v2221
        %2223 = vmatprep.mubr.bf16.mxu0 0
        %2224 = vmatmul.mubr.bf16.gmra.mxu0 %v1386
        %v2225 = vpop.f32.mrf.mxu0
        %v2226 = vadd.f32 0.0, %v2225
        %v2227 = vpop.f32.mrf.mxu0
        %v2228 = vadd.f32 0.0, %v2227
        %v2229 = vpop.f32.mrf.mxu0
        %v2230 = vadd.f32 0.0, %v2229
        %v2231 = vpop.f32.mrf.mxu0
        %v2232 = vadd.f32 0.0, %v2231
        %2233 = vmatprep.mubr.bf16.mxu0 0
        %2234 = vmatmul.mubr.bf16.gmra.mxu0 %v1387
        %v2235 = vpop.f32.mrf.mxu0
        %v2236 = vadd.f32 0.0, %v2235
        %v2237 = vpop.f32.mrf.mxu0
        %v2238 = vadd.f32 0.0, %v2237
        %v2239 = vpop.f32.mrf.mxu0
        %v2240 = vadd.f32 0.0, %v2239
        %v2241 = vpop.f32.mrf.mxu0
        %v2242 = vadd.f32 0.0, %v2241
        %2243 = vmatprep.mubr.bf16.mxu0 0
        %2244 = vmatmul.mubr.bf16.gmra.mxu0 %v1388
        %v2245 = vpop.f32.mrf.mxu0
        %v2246 = vadd.f32 0.0, %v2245
        %v2247 = vpop.f32.mrf.mxu0
        %v2248 = vadd.f32 0.0, %v2247
        %v2249 = vpop.f32.mrf.mxu0
        %v2250 = vadd.f32 0.0, %v2249
        %v2251 = vpop.f32.mrf.mxu0
        %v2252 = vadd.f32 0.0, %v2251
        %2253 = vmatprep.mubr.bf16.mxu0 0
        %2254 = vmatmul.mubr.bf16.gmra.mxu0 %v1389
        %v2255 = vpop.f32.mrf.mxu0
        %v2256 = vadd.f32 0.0, %v2255
        %v2257 = vpop.f32.mrf.mxu0
        %v2258 = vadd.f32 0.0, %v2257
        %v2259 = vpop.f32.mrf.mxu0
        %v2260 = vadd.f32 0.0, %v2259
        %v2261 = vpop.f32.mrf.mxu0
        %v2262 = vadd.f32 0.0, %v2261
        %2263 = vmatprep.mubr.bf16.mxu0 0
        %2264 = vmatmul.mubr.bf16.gmra.mxu0 %v1390
        %v2265 = vpop.f32.mrf.mxu0
        %v2266 = vadd.f32 0.0, %v2265
        %v2267 = vpop.f32.mrf.mxu0
        %v2268 = vadd.f32 0.0, %v2267
        %v2269 = vpop.f32.mrf.mxu0
        %v2270 = vadd.f32 0.0, %v2269
        %v2271 = vpop.f32.mrf.mxu0
        %v2272 = vadd.f32 0.0, %v2271
        %2273 = vmatprep.mubr.bf16.mxu0 0
        %2274 = vmatmul.mubr.bf16.gmra.mxu0 %v1391
        %v2275 = vpop.f32.mrf.mxu0
        %v2276 = vadd.f32 0.0, %v2275
        %v2277 = vpop.f32.mrf.mxu0
        %v2278 = vadd.f32 0.0, %v2277
        %v2279 = vpop.f32.mrf.mxu0
        %v2280 = vadd.f32 0.0, %v2279
        %v2281 = vpop.f32.mrf.mxu0
        %v2282 = vadd.f32 0.0, %v2281
        %2283 = vmatprep.mubr.bf16.mxu0 0
        %2284 = vmatmul.mubr.bf16.gmra.mxu0 %v1392
        %v2285 = vpop.f32.mrf.mxu0
        %v2286 = vadd.f32 0.0, %v2285
        %v2287 = vpop.f32.mrf.mxu0
        %v2288 = vadd.f32 0.0, %v2287
        %v2289 = vpop.f32.mrf.mxu0
        %v2290 = vadd.f32 0.0, %v2289
        %v2291 = vpop.f32.mrf.mxu0
        %v2292 = vadd.f32 0.0, %v2291
        %2293 = vmatprep.mubr.bf16.mxu0 0
        %2294 = vmatmul.mubr.bf16.gmra.mxu0 %v1393
        %v2295 = vpop.f32.mrf.mxu0
        %v2296 = vadd.f32 0.0, %v2295
        %v2297 = vpop.f32.mrf.mxu0
        %v2298 = vadd.f32 0.0, %v2297
        %v2299 = vpop.f32.mrf.mxu0
        %v2300 = vadd.f32 0.0, %v2299
        %v2301 = vpop.f32.mrf.mxu0
        %v2302 = vadd.f32 0.0, %v2301
        %2303 = vmatprep.mubr.bf16.mxu0 0
        %2304 = vmatmul.mubr.bf16.gmra.mxu0 %v1394
        %v2305 = vpop.f32.mrf.mxu0
        %v2306 = vadd.f32 0.0, %v2305
        %v2307 = vpop.f32.mrf.mxu0
        %v2308 = vadd.f32 0.0, %v2307
        %v2309 = vpop.f32.mrf.mxu0
        %v2310 = vadd.f32 0.0, %v2309
        %v2311 = vpop.f32.mrf.mxu0
        %v2312 = vadd.f32 0.0, %v2311
        %2313 = vmatprep.mubr.bf16.mxu0 0
        %2314 = vmatmul.mubr.bf16.gmra.mxu0 %v1395
        %v2315 = vpop.f32.mrf.mxu0
        %v2316 = vadd.f32 0.0, %v2315
        %v2317 = vpop.f32.mrf.mxu0
        %v2318 = vadd.f32 0.0, %v2317
        %v2319 = vpop.f32.mrf.mxu0
        %v2320 = vadd.f32 0.0, %v2319
        %v2321 = vpop.f32.mrf.mxu0
        %v2322 = vadd.f32 0.0, %v2321
        %2323 = vmatprep.mubr.bf16.mxu0 0
        %2324 = vmatmul.mubr.bf16.gmra.mxu0 %v1396
        %v2325 = vpop.f32.mrf.mxu0
        %v2326 = vadd.f32 0.0, %v2325
        %v2327 = vpop.f32.mrf.mxu0
        %v2328 = vadd.f32 0.0, %v2327
        %v2329 = vpop.f32.mrf.mxu0
        %v2330 = vadd.f32 0.0, %v2329
        %v2331 = vpop.f32.mrf.mxu0
        %v2332 = vadd.f32 0.0, %v2331
        %2333 = vmatprep.mubr.bf16.mxu0 0
        %2334 = vmatmul.mubr.bf16.gmra.mxu0 %v1397
        %v2335 = vpop.f32.mrf.mxu0
        %v2336 = vadd.f32 0.0, %v2335
        %v2337 = vpop.f32.mrf.mxu0
        %v2338 = vadd.f32 0.0, %v2337
        %v2339 = vpop.f32.mrf.mxu0
        %v2340 = vadd.f32 0.0, %v2339
        %v2341 = vpop.f32.mrf.mxu0
        %v2342 = vadd.f32 0.0, %v2341
        %2343 = vmatprep.mubr.bf16.mxu0 0
        %2344 = vmatmul.mubr.bf16.gmra.mxu0 %v1398
        %v2345 = vpop.f32.mrf.mxu0
        %v2346 = vadd.f32 0.0, %v2345
        %v2347 = vpop.f32.mrf.mxu0
        %v2348 = vadd.f32 0.0, %v2347
        %v2349 = vpop.f32.mrf.mxu0
        %v2350 = vadd.f32 0.0, %v2349
        %v2351 = vpop.f32.mrf.mxu0
        %v2352 = vadd.f32 0.0, %v2351
        %2353 = vmatprep.mubr.bf16.mxu0 0
        %2354 = vmatmul.mubr.bf16.gmra.mxu0 %v1399
        %v2355 = vpop.f32.mrf.mxu0
        %v2356 = vadd.f32 0.0, %v2355
        %v2357 = vpop.f32.mrf.mxu0
        %v2358 = vadd.f32 0.0, %v2357
        %v2359 = vpop.f32.mrf.mxu0
        %v2360 = vadd.f32 0.0, %v2359
        %v2361 = vpop.f32.mrf.mxu0
        %v2362 = vadd.f32 0.0, %v2361
        %2363 = vmatprep.mubr.bf16.mxu0 0
        %2364 = vmatmul.mubr.bf16.gmra.mxu0 %v1400
        %v2365 = vpop.f32.mrf.mxu0
        %v2366 = vadd.f32 0.0, %v2365
        %v2367 = vpop.f32.mrf.mxu0
        %v2368 = vadd.f32 0.0, %v2367
        %v2369 = vpop.f32.mrf.mxu0
        %v2370 = vadd.f32 0.0, %v2369
        %v2371 = vpop.f32.mrf.mxu0
        %v2372 = vadd.f32 0.0, %v2371
        %2373 = vmatprep.mubr.bf16.mxu0 0
        %2374 = vmatmul.mubr.bf16.gmra.mxu0 %v1401
        %v2375 = vpop.f32.mrf.mxu0
        %v2376 = vadd.f32 0.0, %v2375
        %v2377 = vpop.f32.mrf.mxu0
        %v2378 = vadd.f32 0.0, %v2377
        %v2379 = vpop.f32.mrf.mxu0
        %v2380 = vadd.f32 0.0, %v2379
        %v2381 = vpop.f32.mrf.mxu0
        %v2382 = vadd.f32 0.0, %v2381
        %2383 = vmatprep.mubr.bf16.mxu0 0
        %2384 = vmatmul.mubr.bf16.gmra.mxu0 %v1402
        %v2385 = vpop.f32.mrf.mxu0
        %v2386 = vadd.f32 0.0, %v2385
        %v2387 = vpop.f32.mrf.mxu0
        %v2388 = vadd.f32 0.0, %v2387
        %v2389 = vpop.f32.mrf.mxu0
        %v2390 = vadd.f32 0.0, %v2389
        %v2391 = vpop.f32.mrf.mxu0
        %v2392 = vadd.f32 0.0, %v2391
        %2393 = vmatprep.mubr.bf16.mxu0 0
        %2394 = vmatmul.mubr.bf16.gmra.mxu0 %v1403
        %v2395 = vpop.f32.mrf.mxu0
        %v2396 = vadd.f32 0.0, %v2395
        %v2397 = vpop.f32.mrf.mxu0
        %v2398 = vadd.f32 0.0, %v2397
        %v2399 = vpop.f32.mrf.mxu0
        %v2400 = vadd.f32 0.0, %v2399
        %v2401 = vpop.f32.mrf.mxu0
        %v2402 = vadd.f32 0.0, %v2401
        %2403 = vmatprep.mubr.bf16.mxu0 0
        %2404 = vmatmul.mubr.bf16.gmra.mxu0 %v1404
        %v2405 = vpop.f32.mrf.mxu0
        %v2406 = vadd.f32 0.0, %v2405
        %v2407 = vpop.f32.mrf.mxu0
        %v2408 = vadd.f32 0.0, %v2407
        %v2409 = vpop.f32.mrf.mxu0
        %v2410 = vadd.f32 0.0, %v2409
        %v2411 = vpop.f32.mrf.mxu0
        %v2412 = vadd.f32 0.0, %v2411
        %2413 = vmatprep.mubr.bf16.mxu0 0
        %2414 = vmatmul.mubr.bf16.gmra.mxu0 %v1405
        %v2415 = vpop.f32.mrf.mxu0
        %v2416 = vadd.f32 0.0, %v2415
        %v2417 = vpop.f32.mrf.mxu0
        %v2418 = vadd.f32 0.0, %v2417
        %v2419 = vpop.f32.mrf.mxu0
        %v2420 = vadd.f32 0.0, %v2419
        %v2421 = vpop.f32.mrf.mxu0
        %v2422 = vadd.f32 0.0, %v2421
        %2423 = vmatprep.mubr.bf16.mxu0 0
        %2424 = vmatmul.mubr.bf16.gmra.mxu0 %v1406
        %v2425 = vpop.f32.mrf.mxu0
        %v2426 = vadd.f32 0.0, %v2425
        %v2427 = vpop.f32.mrf.mxu0
        %v2428 = vadd.f32 0.0, %v2427
        %v2429 = vpop.f32.mrf.mxu0
        %v2430 = vadd.f32 0.0, %v2429
        %v2431 = vpop.f32.mrf.mxu0
        %v2432 = vadd.f32 0.0, %v2431
        %2433 = vmatprep.mubr.bf16.mxu0 0
        %2434 = vmatmul.mubr.bf16.gmra.mxu0 %v1407
        %v2435 = vpop.f32.mrf.mxu0
        %v2436 = vadd.f32 0.0, %v2435
        %v2437 = vpop.f32.mrf.mxu0
        %v2438 = vadd.f32 0.0, %v2437
        %v2439 = vpop.f32.mrf.mxu0
        %v2440 = vadd.f32 0.0, %v2439
        %v2441 = vpop.f32.mrf.mxu0
        %v2442 = vadd.f32 0.0, %v2441
        %2443 = vmatprep.mubr.bf16.mxu0 0
        %2444 = vmatmul.mubr.bf16.gmra.mxu0 %v1408
        %v2445 = vpop.f32.mrf.mxu0
        %v2446 = vadd.f32 0.0, %v2445
        %v2447 = vpop.f32.mrf.mxu0
        %v2448 = vadd.f32 0.0, %v2447
        %v2449 = vpop.f32.mrf.mxu0
        %v2450 = vadd.f32 0.0, %v2449
        %v2451 = vpop.f32.mrf.mxu0
        %v2452 = vadd.f32 0.0, %v2451
        %2453 = vmatprep.mubr.bf16.mxu0 0
        %2454 = vmatmul.mubr.bf16.gmra.mxu0 %v1409
        %v2455 = vpop.f32.mrf.mxu0
        %v2456 = vadd.f32 0.0, %v2455
        %v2457 = vpop.f32.mrf.mxu0
        %v2458 = vadd.f32 0.0, %v2457
        %v2459 = vpop.f32.mrf.mxu0
        %v2460 = vadd.f32 0.0, %v2459
        %v2461 = vpop.f32.mrf.mxu0
        %v2462 = vadd.f32 0.0, %v2461
        %2463 = vmatprep.mubr.bf16.mxu0 0
        %2464 = vmatmul.mubr.bf16.gmra.mxu0 %v1410
        %v2465 = vpop.f32.mrf.mxu0
        %v2466 = vadd.f32 0.0, %v2465
        %v2467 = vpop.f32.mrf.mxu0
        %v2468 = vadd.f32 0.0, %v2467
        %v2469 = vpop.f32.mrf.mxu0
        %v2470 = vadd.f32 0.0, %v2469
        %v2471 = vpop.f32.mrf.mxu0
        %v2472 = vadd.f32 0.0, %v2471
        %2473 = vmatprep.mubr.bf16.mxu0 0
        %2474 = vmatmul.mubr.bf16.gmra.mxu0 %v1411
        %v2475 = vpop.f32.mrf.mxu0
        %v2476 = vadd.f32 0.0, %v2475
        %v2477 = vpop.f32.mrf.mxu0
        %v2478 = vadd.f32 0.0, %v2477
        %v2479 = vpop.f32.mrf.mxu0
        %v2480 = vadd.f32 0.0, %v2479
        %v2481 = vpop.f32.mrf.mxu0
        %v2482 = vadd.f32 0.0, %v2481
        %2483 = vmatprep.mubr.bf16.mxu0 0
        %2484 = vmatmul.mubr.bf16.gmra.mxu0 %v1412
        %v2485 = vpop.f32.mrf.mxu0
        %v2486 = vadd.f32 0.0, %v2485
        %v2487 = vpop.f32.mrf.mxu0
        %v2488 = vadd.f32 0.0, %v2487
        %v2489 = vpop.f32.mrf.mxu0
        %v2490 = vadd.f32 0.0, %v2489
        %v2491 = vpop.f32.mrf.mxu0
        %v2492 = vadd.f32 0.0, %v2491
        %2493 = vmatprep.mubr.bf16.mxu0 0
        %2494 = vmatmul.mubr.bf16.gmra.mxu0 %v1413
        %v2495 = vpop.f32.mrf.mxu0
        %v2496 = vadd.f32 0.0, %v2495
        %v2497 = vpop.f32.mrf.mxu0
        %v2498 = vadd.f32 0.0, %v2497
        %v2499 = vpop.f32.mrf.mxu0
        %v2500 = vadd.f32 0.0, %v2499
        %v2501 = vpop.f32.mrf.mxu0
        %v2502 = vadd.f32 0.0, %v2501
        %2503 = vdwg.mxu0
        %2504 = vmatprep.subr.bf16.mxu0 %v1731
        %2505 = vmatpush1.bf16.msra.mxu0 %v1730
        %2506 = vmatprep.subr.bf16.mxu0 %v1723
        %2507 = vmatpush1.bf16.msra.mxu0 %v1722
        %2508 = vmatprep.subr.bf16.mxu0 %v1715
        %2509 = vmatpush1.bf16.msra.mxu0 %v1714
        %2510 = vmatprep.subr.bf16.mxu0 %v1707
        %2511 = vmatpush1.bf16.msra.mxu0 %v1706
        %2512 = vmatprep.subr.bf16.mxu0 %v1699
        %2513 = vmatpush1.bf16.msra.mxu0 %v1698
        %2514 = vmatprep.subr.bf16.mxu0 %v1691
        %2515 = vmatpush1.bf16.msra.mxu0 %v1690
        %2516 = vmatprep.subr.bf16.mxu0 %v1683
        %2517 = vmatpush1.bf16.msra.mxu0 %v1682
        %2518 = vmatprep.subr.bf16.mxu0 %v1675
        %2519 = vmatpush1.bf16.msra.mxu0 %v1674
        %2520 = vmatprep.subr.bf16.mxu0 0
        %2521 = vmatpush2.bf16.msra.mxu0 0
        %2522 = vmatprep.subr.bf16.mxu0 0
        %2523 = vmatpush2.bf16.msra.mxu0 0
        %2524 = vmatprep.subr.bf16.mxu0 0
        %2525 = vmatpush2.bf16.msra.mxu0 0
        %2526 = vmatprep.subr.bf16.mxu0 0
        %2527 = vmatpush2.bf16.msra.mxu0 0
        %2528 = vmatprep.subr.bf16.mxu0 0
        %2529 = vmatpush2.bf16.msra.mxu0 0
        %2530 = vmatprep.subr.bf16.mxu0 0
        %2531 = vmatpush2.bf16.msra.mxu0 0
        %2532 = vmatprep.subr.bf16.mxu0 0
        %2533 = vmatpush2.bf16.msra.mxu0 0
        %2534 = vmatprep.subr.bf16.mxu0 0
        %2535 = vmatpush2.bf16.msra.mxu0 0
        %2536 = vmatprep.mubr.bf16.mxu0 0
        %2537 = vmatmul.mubr.bf16.gmra.mxu0 %v1382
        %v2538 = vpop.f32.mrf.mxu0
        %v2539 = vadd.f32 0.0, %v2538
        %v2540 = vpop.f32.mrf.mxu0
        %v2541 = vadd.f32 0.0, %v2540
        %v2542 = vpop.f32.mrf.mxu0
        %v2543 = vadd.f32 0.0, %v2542
        %v2544 = vpop.f32.mrf.mxu0
        %v2545 = vadd.f32 0.0, %v2544
        %2546 = vmatprep.mubr.bf16.mxu0 0
        %2547 = vmatmul.mubr.bf16.gmra.mxu0 %v1383
        %v2548 = vpop.f32.mrf.mxu0
        %v2549 = vadd.f32 0.0, %v2548
        %v2550 = vpop.f32.mrf.mxu0
        %v2551 = vadd.f32 0.0, %v2550
        %v2552 = vpop.f32.mrf.mxu0
        %v2553 = vadd.f32 0.0, %v2552
        %v2554 = vpop.f32.mrf.mxu0
        %v2555 = vadd.f32 0.0, %v2554
        %2556 = vmatprep.mubr.bf16.mxu0 0
        %2557 = vmatmul.mubr.bf16.gmra.mxu0 %v1384
        %v2558 = vpop.f32.mrf.mxu0
        %v2559 = vadd.f32 0.0, %v2558
        %v2560 = vpop.f32.mrf.mxu0
        %v2561 = vadd.f32 0.0, %v2560
        %v2562 = vpop.f32.mrf.mxu0
        %v2563 = vadd.f32 0.0, %v2562
        %v2564 = vpop.f32.mrf.mxu0
        %v2565 = vadd.f32 0.0, %v2564
        %2566 = vmatprep.mubr.bf16.mxu0 0
        %2567 = vmatmul.mubr.bf16.gmra.mxu0 %v1385
        %v2568 = vpop.f32.mrf.mxu0
        %v2569 = vadd.f32 0.0, %v2568
        %v2570 = vpop.f32.mrf.mxu0
        %v2571 = vadd.f32 0.0, %v2570
        %v2572 = vpop.f32.mrf.mxu0
        %v2573 = vadd.f32 0.0, %v2572
        %v2574 = vpop.f32.mrf.mxu0
        %v2575 = vadd.f32 0.0, %v2574
        %2576 = vmatprep.mubr.bf16.mxu0 0
        %2577 = vmatmul.mubr.bf16.gmra.mxu0 %v1386
        %v2578 = vpop.f32.mrf.mxu0
        %v2579 = vadd.f32 0.0, %v2578
        %v2580 = vpop.f32.mrf.mxu0
        %v2581 = vadd.f32 0.0, %v2580
        %v2582 = vpop.f32.mrf.mxu0
        %v2583 = vadd.f32 0.0, %v2582
        %v2584 = vpop.f32.mrf.mxu0
        %v2585 = vadd.f32 0.0, %v2584
        %2586 = vmatprep.mubr.bf16.mxu0 0
        %2587 = vmatmul.mubr.bf16.gmra.mxu0 %v1387
        %v2588 = vpop.f32.mrf.mxu0
        %v2589 = vadd.f32 0.0, %v2588
        %v2590 = vpop.f32.mrf.mxu0
        %v2591 = vadd.f32 0.0, %v2590
        %v2592 = vpop.f32.mrf.mxu0
        %v2593 = vadd.f32 0.0, %v2592
        %v2594 = vpop.f32.mrf.mxu0
        %v2595 = vadd.f32 0.0, %v2594
        %2596 = vmatprep.mubr.bf16.mxu0 0
        %2597 = vmatmul.mubr.bf16.gmra.mxu0 %v1388
        %v2598 = vpop.f32.mrf.mxu0
        %v2599 = vadd.f32 0.0, %v2598
        %v2600 = vpop.f32.mrf.mxu0
        %v2601 = vadd.f32 0.0, %v2600
        %v2602 = vpop.f32.mrf.mxu0
        %v2603 = vadd.f32 0.0, %v2602
        %v2604 = vpop.f32.mrf.mxu0
        %v2605 = vadd.f32 0.0, %v2604
        %2606 = vmatprep.mubr.bf16.mxu0 0
        %2607 = vmatmul.mubr.bf16.gmra.mxu0 %v1389
        %v2608 = vpop.f32.mrf.mxu0
        %v2609 = vadd.f32 0.0, %v2608
        %v2610 = vpop.f32.mrf.mxu0
        %v2611 = vadd.f32 0.0, %v2610
        %v2612 = vpop.f32.mrf.mxu0
        %v2613 = vadd.f32 0.0, %v2612
        %v2614 = vpop.f32.mrf.mxu0
        %v2615 = vadd.f32 0.0, %v2614
        %2616 = vmatprep.mubr.bf16.mxu0 0
        %2617 = vmatmul.mubr.bf16.gmra.mxu0 %v1390
        %v2618 = vpop.f32.mrf.mxu0
        %v2619 = vadd.f32 0.0, %v2618
        %v2620 = vpop.f32.mrf.mxu0
        %v2621 = vadd.f32 0.0, %v2620
        %v2622 = vpop.f32.mrf.mxu0
        %v2623 = vadd.f32 0.0, %v2622
        %v2624 = vpop.f32.mrf.mxu0
        %v2625 = vadd.f32 0.0, %v2624
        %2626 = vmatprep.mubr.bf16.mxu0 0
        %2627 = vmatmul.mubr.bf16.gmra.mxu0 %v1391
        %v2628 = vpop.f32.mrf.mxu0
        %v2629 = vadd.f32 0.0, %v2628
        %v2630 = vpop.f32.mrf.mxu0
        %v2631 = vadd.f32 0.0, %v2630
        %v2632 = vpop.f32.mrf.mxu0
        %v2633 = vadd.f32 0.0, %v2632
        %v2634 = vpop.f32.mrf.mxu0
        %v2635 = vadd.f32 0.0, %v2634
        %2636 = vmatprep.mubr.bf16.mxu0 0
        %2637 = vmatmul.mubr.bf16.gmra.mxu0 %v1392
        %v2638 = vpop.f32.mrf.mxu0
        %v2639 = vadd.f32 0.0, %v2638
        %v2640 = vpop.f32.mrf.mxu0
        %v2641 = vadd.f32 0.0, %v2640
        %v2642 = vpop.f32.mrf.mxu0
        %v2643 = vadd.f32 0.0, %v2642
        %v2644 = vpop.f32.mrf.mxu0
        %v2645 = vadd.f32 0.0, %v2644
        %2646 = vmatprep.mubr.bf16.mxu0 0
        %2647 = vmatmul.mubr.bf16.gmra.mxu0 %v1393
        %v2648 = vpop.f32.mrf.mxu0
        %v2649 = vadd.f32 0.0, %v2648
        %v2650 = vpop.f32.mrf.mxu0
        %v2651 = vadd.f32 0.0, %v2650
        %v2652 = vpop.f32.mrf.mxu0
        %v2653 = vadd.f32 0.0, %v2652
        %v2654 = vpop.f32.mrf.mxu0
        %v2655 = vadd.f32 0.0, %v2654
        %2656 = vmatprep.mubr.bf16.mxu0 0
        %2657 = vmatmul.mubr.bf16.gmra.mxu0 %v1394
        %v2658 = vpop.f32.mrf.mxu0
        %v2659 = vadd.f32 0.0, %v2658
        %v2660 = vpop.f32.mrf.mxu0
        %v2661 = vadd.f32 0.0, %v2660
        %v2662 = vpop.f32.mrf.mxu0
        %v2663 = vadd.f32 0.0, %v2662
        %v2664 = vpop.f32.mrf.mxu0
        %v2665 = vadd.f32 0.0, %v2664
        %2666 = vmatprep.mubr.bf16.mxu0 0
        %2667 = vmatmul.mubr.bf16.gmra.mxu0 %v1395
        %v2668 = vpop.f32.mrf.mxu0
        %v2669 = vadd.f32 0.0, %v2668
        %v2670 = vpop.f32.mrf.mxu0
        %v2671 = vadd.f32 0.0, %v2670
        %v2672 = vpop.f32.mrf.mxu0
        %v2673 = vadd.f32 0.0, %v2672
        %v2674 = vpop.f32.mrf.mxu0
        %v2675 = vadd.f32 0.0, %v2674
        %2676 = vmatprep.mubr.bf16.mxu0 0
        %2677 = vmatmul.mubr.bf16.gmra.mxu0 %v1396
        %v2678 = vpop.f32.mrf.mxu0
        %v2679 = vadd.f32 0.0, %v2678
        %v2680 = vpop.f32.mrf.mxu0
        %v2681 = vadd.f32 0.0, %v2680
        %v2682 = vpop.f32.mrf.mxu0
        %v2683 = vadd.f32 0.0, %v2682
        %v2684 = vpop.f32.mrf.mxu0
        %v2685 = vadd.f32 0.0, %v2684
        %2686 = vmatprep.mubr.bf16.mxu0 0
        %2687 = vmatmul.mubr.bf16.gmra.mxu0 %v1397
        %v2688 = vpop.f32.mrf.mxu0
        %v2689 = vadd.f32 0.0, %v2688
        %v2690 = vpop.f32.mrf.mxu0
        %v2691 = vadd.f32 0.0, %v2690
        %v2692 = vpop.f32.mrf.mxu0
        %v2693 = vadd.f32 0.0, %v2692
        %v2694 = vpop.f32.mrf.mxu0
        %v2695 = vadd.f32 0.0, %v2694
        %2696 = vmatprep.mubr.bf16.mxu0 0
        %2697 = vmatmul.mubr.bf16.gmra.mxu0 %v1398
        %v2698 = vpop.f32.mrf.mxu0
        %v2699 = vadd.f32 0.0, %v2698
        %v2700 = vpop.f32.mrf.mxu0
        %v2701 = vadd.f32 0.0, %v2700
        %v2702 = vpop.f32.mrf.mxu0
        %v2703 = vadd.f32 0.0, %v2702
        %v2704 = vpop.f32.mrf.mxu0
        %v2705 = vadd.f32 0.0, %v2704
        %2706 = vmatprep.mubr.bf16.mxu0 0
        %2707 = vmatmul.mubr.bf16.gmra.mxu0 %v1399
        %v2708 = vpop.f32.mrf.mxu0
        %v2709 = vadd.f32 0.0, %v2708
        %v2710 = vpop.f32.mrf.mxu0
        %v2711 = vadd.f32 0.0, %v2710
        %v2712 = vpop.f32.mrf.mxu0
        %v2713 = vadd.f32 0.0, %v2712
        %v2714 = vpop.f32.mrf.mxu0
        %v2715 = vadd.f32 0.0, %v2714
        %2716 = vmatprep.mubr.bf16.mxu0 0
        %2717 = vmatmul.mubr.bf16.gmra.mxu0 %v1400
        %v2718 = vpop.f32.mrf.mxu0
        %v2719 = vadd.f32 0.0, %v2718
        %v2720 = vpop.f32.mrf.mxu0
        %v2721 = vadd.f32 0.0, %v2720
        %v2722 = vpop.f32.mrf.mxu0
        %v2723 = vadd.f32 0.0, %v2722
        %v2724 = vpop.f32.mrf.mxu0
        %v2725 = vadd.f32 0.0, %v2724
        %2726 = vmatprep.mubr.bf16.mxu0 0
        %2727 = vmatmul.mubr.bf16.gmra.mxu0 %v1401
        %v2728 = vpop.f32.mrf.mxu0
        %v2729 = vadd.f32 0.0, %v2728
        %v2730 = vpop.f32.mrf.mxu0
        %v2731 = vadd.f32 0.0, %v2730
        %v2732 = vpop.f32.mrf.mxu0
        %v2733 = vadd.f32 0.0, %v2732
        %v2734 = vpop.f32.mrf.mxu0
        %v2735 = vadd.f32 0.0, %v2734
        %2736 = vmatprep.mubr.bf16.mxu0 0
        %2737 = vmatmul.mubr.bf16.gmra.mxu0 %v1402
        %v2738 = vpop.f32.mrf.mxu0
        %v2739 = vadd.f32 0.0, %v2738
        %v2740 = vpop.f32.mrf.mxu0
        %v2741 = vadd.f32 0.0, %v2740
        %v2742 = vpop.f32.mrf.mxu0
        %v2743 = vadd.f32 0.0, %v2742
        %v2744 = vpop.f32.mrf.mxu0
        %v2745 = vadd.f32 0.0, %v2744
        %2746 = vmatprep.mubr.bf16.mxu0 0
        %2747 = vmatmul.mubr.bf16.gmra.mxu0 %v1403
        %v2748 = vpop.f32.mrf.mxu0
        %v2749 = vadd.f32 0.0, %v2748
        %v2750 = vpop.f32.mrf.mxu0
        %v2751 = vadd.f32 0.0, %v2750
        %v2752 = vpop.f32.mrf.mxu0
        %v2753 = vadd.f32 0.0, %v2752
        %v2754 = vpop.f32.mrf.mxu0
        %v2755 = vadd.f32 0.0, %v2754
        %2756 = vmatprep.mubr.bf16.mxu0 0
        %2757 = vmatmul.mubr.bf16.gmra.mxu0 %v1404
        %v2758 = vpop.f32.mrf.mxu0
        %v2759 = vadd.f32 0.0, %v2758
        %v2760 = vpop.f32.mrf.mxu0
        %v2761 = vadd.f32 0.0, %v2760
        %v2762 = vpop.f32.mrf.mxu0
        %v2763 = vadd.f32 0.0, %v2762
        %v2764 = vpop.f32.mrf.mxu0
        %v2765 = vadd.f32 0.0, %v2764
        %2766 = vmatprep.mubr.bf16.mxu0 0
        %2767 = vmatmul.mubr.bf16.gmra.mxu0 %v1405
        %v2768 = vpop.f32.mrf.mxu0
        %v2769 = vadd.f32 0.0, %v2768
        %v2770 = vpop.f32.mrf.mxu0
        %v2771 = vadd.f32 0.0, %v2770
        %v2772 = vpop.f32.mrf.mxu0
        %v2773 = vadd.f32 0.0, %v2772
        %v2774 = vpop.f32.mrf.mxu0
        %v2775 = vadd.f32 0.0, %v2774
        %2776 = vmatprep.mubr.bf16.mxu0 0
        %2777 = vmatmul.mubr.bf16.gmra.mxu0 %v1406
        %v2778 = vpop.f32.mrf.mxu0
        %v2779 = vadd.f32 0.0, %v2778
        %v2780 = vpop.f32.mrf.mxu0
        %v2781 = vadd.f32 0.0, %v2780
        %v2782 = vpop.f32.mrf.mxu0
        %v2783 = vadd.f32 0.0, %v2782
        %v2784 = vpop.f32.mrf.mxu0
        %v2785 = vadd.f32 0.0, %v2784
        %2786 = vmatprep.mubr.bf16.mxu0 0
        %2787 = vmatmul.mubr.bf16.gmra.mxu0 %v1407
        %v2788 = vpop.f32.mrf.mxu0
        %v2789 = vadd.f32 0.0, %v2788
        %v2790 = vpop.f32.mrf.mxu0
        %v2791 = vadd.f32 0.0, %v2790
        %v2792 = vpop.f32.mrf.mxu0
        %v2793 = vadd.f32 0.0, %v2792
        %v2794 = vpop.f32.mrf.mxu0
        %v2795 = vadd.f32 0.0, %v2794
        %2796 = vmatprep.mubr.bf16.mxu0 0
        %2797 = vmatmul.mubr.bf16.gmra.mxu0 %v1408
        %v2798 = vpop.f32.mrf.mxu0
        %v2799 = vadd.f32 0.0, %v2798
        %v2800 = vpop.f32.mrf.mxu0
        %v2801 = vadd.f32 0.0, %v2800
        %v2802 = vpop.f32.mrf.mxu0
        %v2803 = vadd.f32 0.0, %v2802
        %v2804 = vpop.f32.mrf.mxu0
        %v2805 = vadd.f32 0.0, %v2804
        %2806 = vmatprep.mubr.bf16.mxu0 0
        %2807 = vmatmul.mubr.bf16.gmra.mxu0 %v1409
        %v2808 = vpop.f32.mrf.mxu0
        %v2809 = vadd.f32 0.0, %v2808
        %v2810 = vpop.f32.mrf.mxu0
        %v2811 = vadd.f32 0.0, %v2810
        %v2812 = vpop.f32.mrf.mxu0
        %v2813 = vadd.f32 0.0, %v2812
        %v2814 = vpop.f32.mrf.mxu0
        %v2815 = vadd.f32 0.0, %v2814
        %2816 = vmatprep.mubr.bf16.mxu0 0
        %2817 = vmatmul.mubr.bf16.gmra.mxu0 %v1410
        %v2818 = vpop.f32.mrf.mxu0
        %v2819 = vadd.f32 0.0, %v2818
        %v2820 = vpop.f32.mrf.mxu0
        %v2821 = vadd.f32 0.0, %v2820
        %v2822 = vpop.f32.mrf.mxu0
        %v2823 = vadd.f32 0.0, %v2822
        %v2824 = vpop.f32.mrf.mxu0
        %v2825 = vadd.f32 0.0, %v2824
        %2826 = vmatprep.mubr.bf16.mxu0 0
        %2827 = vmatmul.mubr.bf16.gmra.mxu0 %v1411
        %v2828 = vpop.f32.mrf.mxu0
        %v2829 = vadd.f32 0.0, %v2828
        %v2830 = vpop.f32.mrf.mxu0
        %v2831 = vadd.f32 0.0, %v2830
        %v2832 = vpop.f32.mrf.mxu0
        %v2833 = vadd.f32 0.0, %v2832
        %v2834 = vpop.f32.mrf.mxu0
        %v2835 = vadd.f32 0.0, %v2834
        %2836 = vmatprep.mubr.bf16.mxu0 0
        %2837 = vmatmul.mubr.bf16.gmra.mxu0 %v1412
        %v2838 = vpop.f32.mrf.mxu0
        %v2839 = vadd.f32 0.0, %v2838
        %v2840 = vpop.f32.mrf.mxu0
        %v2841 = vadd.f32 0.0, %v2840
        %v2842 = vpop.f32.mrf.mxu0
        %v2843 = vadd.f32 0.0, %v2842
        %v2844 = vpop.f32.mrf.mxu0
        %v2845 = vadd.f32 0.0, %v2844
        %2846 = vmatprep.mubr.bf16.mxu0 0
        %2847 = vmatmul.mubr.bf16.gmra.mxu0 %v1413
        %v2848 = vpop.f32.mrf.mxu0
        %v2849 = vadd.f32 0.0, %v2848
        %v2850 = vpop.f32.mrf.mxu0
        %v2851 = vadd.f32 0.0, %v2850
        %v2852 = vpop.f32.mrf.mxu0
        %v2853 = vadd.f32 0.0, %v2852
        %v2854 = vpop.f32.mrf.mxu0
        %v2855 = vadd.f32 0.0, %v2854
        %2856 = vdwg.mxu0
        %2857 = vmatprep.subr.bf16.mxu0 %v1733
        %2858 = vmatpush1.bf16.msra.mxu0 %v1732
        %2859 = vmatprep.subr.bf16.mxu0 %v1725
        %2860 = vmatpush1.bf16.msra.mxu0 %v1724
        %2861 = vmatprep.subr.bf16.mxu0 %v1717
        %2862 = vmatpush1.bf16.msra.mxu0 %v1716
        %2863 = vmatprep.subr.bf16.mxu0 %v1709
        %2864 = vmatpush1.bf16.msra.mxu0 %v1708
        %2865 = vmatprep.subr.bf16.mxu0 %v1701
        %2866 = vmatpush1.bf16.msra.mxu0 %v1700
        %2867 = vmatprep.subr.bf16.mxu0 %v1693
        %2868 = vmatpush1.bf16.msra.mxu0 %v1692
        %2869 = vmatprep.subr.bf16.mxu0 %v1685
        %2870 = vmatpush1.bf16.msra.mxu0 %v1684
        %2871 = vmatprep.subr.bf16.mxu0 %v1677
        %2872 = vmatpush1.bf16.msra.mxu0 %v1676
        %2873 = vmatprep.subr.bf16.mxu0 0
        %2874 = vmatpush2.bf16.msra.mxu0 0
        %2875 = vmatprep.subr.bf16.mxu0 0
        %2876 = vmatpush2.bf16.msra.mxu0 0
        %2877 = vmatprep.subr.bf16.mxu0 0
        %2878 = vmatpush2.bf16.msra.mxu0 0
        %2879 = vmatprep.subr.bf16.mxu0 0
        %2880 = vmatpush2.bf16.msra.mxu0 0
        %2881 = vmatprep.subr.bf16.mxu0 0
        %2882 = vmatpush2.bf16.msra.mxu0 0
        %2883 = vmatprep.subr.bf16.mxu0 0
        %2884 = vmatpush2.bf16.msra.mxu0 0
        %2885 = vmatprep.subr.bf16.mxu0 0
        %2886 = vmatpush2.bf16.msra.mxu0 0
        %2887 = vmatprep.subr.bf16.mxu0 0
        %2888 = vmatpush2.bf16.msra.mxu0 0
        %2889 = vmatprep.mubr.bf16.mxu0 0
        %2890 = vmatmul.mubr.bf16.gmra.mxu0 %v1382
        %v2891 = vpop.f32.mrf.mxu0
        %v2892 = vadd.f32 0.0, %v2891
        %v2893 = vpop.f32.mrf.mxu0
        %v2894 = vadd.f32 0.0, %v2893
        %v2895 = vpop.f32.mrf.mxu0
        %v2896 = vadd.f32 0.0, %v2895
        %v2897 = vpop.f32.mrf.mxu0
        %v2898 = vadd.f32 0.0, %v2897
        %2899 = vmatprep.mubr.bf16.mxu0 0
        %2900 = vmatmul.mubr.bf16.gmra.mxu0 %v1383
        %v2901 = vpop.f32.mrf.mxu0
        %v2902 = vadd.f32 0.0, %v2901
        %v2903 = vpop.f32.mrf.mxu0
        %v2904 = vadd.f32 0.0, %v2903
        %v2905 = vpop.f32.mrf.mxu0
        %v2906 = vadd.f32 0.0, %v2905
        %v2907 = vpop.f32.mrf.mxu0
        %v2908 = vadd.f32 0.0, %v2907
        %2909 = vmatprep.mubr.bf16.mxu0 0
        %2910 = vmatmul.mubr.bf16.gmra.mxu0 %v1384
        %v2911 = vpop.f32.mrf.mxu0
        %v2912 = vadd.f32 0.0, %v2911
        %v2913 = vpop.f32.mrf.mxu0
        %v2914 = vadd.f32 0.0, %v2913
        %v2915 = vpop.f32.mrf.mxu0
        %v2916 = vadd.f32 0.0, %v2915
        %v2917 = vpop.f32.mrf.mxu0
        %v2918 = vadd.f32 0.0, %v2917
        %2919 = vmatprep.mubr.bf16.mxu0 0
        %2920 = vmatmul.mubr.bf16.gmra.mxu0 %v1385
        %v2921 = vpop.f32.mrf.mxu0
        %v2922 = vadd.f32 0.0, %v2921
        %v2923 = vpop.f32.mrf.mxu0
        %v2924 = vadd.f32 0.0, %v2923
        %v2925 = vpop.f32.mrf.mxu0
        %v2926 = vadd.f32 0.0, %v2925
        %v2927 = vpop.f32.mrf.mxu0
        %v2928 = vadd.f32 0.0, %v2927
        %2929 = vmatprep.mubr.bf16.mxu0 0
        %2930 = vmatmul.mubr.bf16.gmra.mxu0 %v1386
        %v2931 = vpop.f32.mrf.mxu0
        %v2932 = vadd.f32 0.0, %v2931
        %v2933 = vpop.f32.mrf.mxu0
        %v2934 = vadd.f32 0.0, %v2933
        %v2935 = vpop.f32.mrf.mxu0
        %v2936 = vadd.f32 0.0, %v2935
        %v2937 = vpop.f32.mrf.mxu0
        %v2938 = vadd.f32 0.0, %v2937
        %2939 = vmatprep.mubr.bf16.mxu0 0
        %2940 = vmatmul.mubr.bf16.gmra.mxu0 %v1387
        %v2941 = vpop.f32.mrf.mxu0
        %v2942 = vadd.f32 0.0, %v2941
        %v2943 = vpop.f32.mrf.mxu0
        %v2944 = vadd.f32 0.0, %v2943
        %v2945 = vpop.f32.mrf.mxu0
        %v2946 = vadd.f32 0.0, %v2945
        %v2947 = vpop.f32.mrf.mxu0
        %v2948 = vadd.f32 0.0, %v2947
        %2949 = vmatprep.mubr.bf16.mxu0 0
        %2950 = vmatmul.mubr.bf16.gmra.mxu0 %v1388
        %v2951 = vpop.f32.mrf.mxu0
        %v2952 = vadd.f32 0.0, %v2951
        %v2953 = vpop.f32.mrf.mxu0
        %v2954 = vadd.f32 0.0, %v2953
        %v2955 = vpop.f32.mrf.mxu0
        %v2956 = vadd.f32 0.0, %v2955
        %v2957 = vpop.f32.mrf.mxu0
        %v2958 = vadd.f32 0.0, %v2957
        %2959 = vmatprep.mubr.bf16.mxu0 0
        %2960 = vmatmul.mubr.bf16.gmra.mxu0 %v1389
        %v2961 = vpop.f32.mrf.mxu0
        %v2962 = vadd.f32 0.0, %v2961
        %v2963 = vpop.f32.mrf.mxu0
        %v2964 = vadd.f32 0.0, %v2963
        %v2965 = vpop.f32.mrf.mxu0
        %v2966 = vadd.f32 0.0, %v2965
        %v2967 = vpop.f32.mrf.mxu0
        %v2968 = vadd.f32 0.0, %v2967
        %2969 = vmatprep.mubr.bf16.mxu0 0
        %2970 = vmatmul.mubr.bf16.gmra.mxu0 %v1390
        %v2971 = vpop.f32.mrf.mxu0
        %v2972 = vadd.f32 0.0, %v2971
        %v2973 = vpop.f32.mrf.mxu0
        %v2974 = vadd.f32 0.0, %v2973
        %v2975 = vpop.f32.mrf.mxu0
        %v2976 = vadd.f32 0.0, %v2975
        %v2977 = vpop.f32.mrf.mxu0
        %v2978 = vadd.f32 0.0, %v2977
        %2979 = vmatprep.mubr.bf16.mxu0 0
        %2980 = vmatmul.mubr.bf16.gmra.mxu0 %v1391
        %v2981 = vpop.f32.mrf.mxu0
        %v2982 = vadd.f32 0.0, %v2981
        %v2983 = vpop.f32.mrf.mxu0
        %v2984 = vadd.f32 0.0, %v2983
        %v2985 = vpop.f32.mrf.mxu0
        %v2986 = vadd.f32 0.0, %v2985
        %v2987 = vpop.f32.mrf.mxu0
        %v2988 = vadd.f32 0.0, %v2987
        %2989 = vmatprep.mubr.bf16.mxu0 0
        %2990 = vmatmul.mubr.bf16.gmra.mxu0 %v1392
        %v2991 = vpop.f32.mrf.mxu0
        %v2992 = vadd.f32 0.0, %v2991
        %v2993 = vpop.f32.mrf.mxu0
        %v2994 = vadd.f32 0.0, %v2993
        %v2995 = vpop.f32.mrf.mxu0
        %v2996 = vadd.f32 0.0, %v2995
        %v2997 = vpop.f32.mrf.mxu0
        %v2998 = vadd.f32 0.0, %v2997
        %2999 = vmatprep.mubr.bf16.mxu0 0
        %3000 = vmatmul.mubr.bf16.gmra.mxu0 %v1393
        %v3001 = vpop.f32.mrf.mxu0
        %v3002 = vadd.f32 0.0, %v3001
        %v3003 = vpop.f32.mrf.mxu0
        %v3004 = vadd.f32 0.0, %v3003
        %v3005 = vpop.f32.mrf.mxu0
        %v3006 = vadd.f32 0.0, %v3005
        %v3007 = vpop.f32.mrf.mxu0
        %v3008 = vadd.f32 0.0, %v3007
        %3009 = vmatprep.mubr.bf16.mxu0 0
        %3010 = vmatmul.mubr.bf16.gmra.mxu0 %v1394
        %v3011 = vpop.f32.mrf.mxu0
        %v3012 = vadd.f32 0.0, %v3011
        %v3013 = vpop.f32.mrf.mxu0
        %v3014 = vadd.f32 0.0, %v3013
        %v3015 = vpop.f32.mrf.mxu0
        %v3016 = vadd.f32 0.0, %v3015
        %v3017 = vpop.f32.mrf.mxu0
        %v3018 = vadd.f32 0.0, %v3017
        %3019 = vmatprep.mubr.bf16.mxu0 0
        %3020 = vmatmul.mubr.bf16.gmra.mxu0 %v1395
        %v3021 = vpop.f32.mrf.mxu0
        %v3022 = vadd.f32 0.0, %v3021
        %v3023 = vpop.f32.mrf.mxu0
        %v3024 = vadd.f32 0.0, %v3023
        %v3025 = vpop.f32.mrf.mxu0
        %v3026 = vadd.f32 0.0, %v3025
        %v3027 = vpop.f32.mrf.mxu0
        %v3028 = vadd.f32 0.0, %v3027
        %3029 = vmatprep.mubr.bf16.mxu0 0
        %3030 = vmatmul.mubr.bf16.gmra.mxu0 %v1396
        %v3031 = vpop.f32.mrf.mxu0
        %v3032 = vadd.f32 0.0, %v3031
        %v3033 = vpop.f32.mrf.mxu0
        %v3034 = vadd.f32 0.0, %v3033
        %v3035 = vpop.f32.mrf.mxu0
        %v3036 = vadd.f32 0.0, %v3035
        %v3037 = vpop.f32.mrf.mxu0
        %v3038 = vadd.f32 0.0, %v3037
        %3039 = vmatprep.mubr.bf16.mxu0 0
        %3040 = vmatmul.mubr.bf16.gmra.mxu0 %v1397
        %v3041 = vpop.f32.mrf.mxu0
        %v3042 = vadd.f32 0.0, %v3041
        %v3043 = vpop.f32.mrf.mxu0
        %v3044 = vadd.f32 0.0, %v3043
        %v3045 = vpop.f32.mrf.mxu0
        %v3046 = vadd.f32 0.0, %v3045
        %v3047 = vpop.f32.mrf.mxu0
        %v3048 = vadd.f32 0.0, %v3047
        %3049 = vmatprep.mubr.bf16.mxu0 0
        %3050 = vmatmul.mubr.bf16.gmra.mxu0 %v1398
        %v3051 = vpop.f32.mrf.mxu0
        %v3052 = vadd.f32 0.0, %v3051
        %v3053 = vpop.f32.mrf.mxu0
        %v3054 = vadd.f32 0.0, %v3053
        %v3055 = vpop.f32.mrf.mxu0
        %v3056 = vadd.f32 0.0, %v3055
        %v3057 = vpop.f32.mrf.mxu0
        %v3058 = vadd.f32 0.0, %v3057
        %3059 = vmatprep.mubr.bf16.mxu0 0
        %3060 = vmatmul.mubr.bf16.gmra.mxu0 %v1399
        %v3061 = vpop.f32.mrf.mxu0
        %v3062 = vadd.f32 0.0, %v3061
        %v3063 = vpop.f32.mrf.mxu0
        %v3064 = vadd.f32 0.0, %v3063
        %v3065 = vpop.f32.mrf.mxu0
        %v3066 = vadd.f32 0.0, %v3065
        %v3067 = vpop.f32.mrf.mxu0
        %v3068 = vadd.f32 0.0, %v3067
        %3069 = vmatprep.mubr.bf16.mxu0 0
        %3070 = vmatmul.mubr.bf16.gmra.mxu0 %v1400
        %v3071 = vpop.f32.mrf.mxu0
        %v3072 = vadd.f32 0.0, %v3071
        %v3073 = vpop.f32.mrf.mxu0
        %v3074 = vadd.f32 0.0, %v3073
        %v3075 = vpop.f32.mrf.mxu0
        %v3076 = vadd.f32 0.0, %v3075
        %v3077 = vpop.f32.mrf.mxu0
        %v3078 = vadd.f32 0.0, %v3077
        %3079 = vmatprep.mubr.bf16.mxu0 0
        %3080 = vmatmul.mubr.bf16.gmra.mxu0 %v1401
        %v3081 = vpop.f32.mrf.mxu0
        %v3082 = vadd.f32 0.0, %v3081
        %v3083 = vpop.f32.mrf.mxu0
        %v3084 = vadd.f32 0.0, %v3083
        %v3085 = vpop.f32.mrf.mxu0
        %v3086 = vadd.f32 0.0, %v3085
        %v3087 = vpop.f32.mrf.mxu0
        %v3088 = vadd.f32 0.0, %v3087
        %3089 = vmatprep.mubr.bf16.mxu0 0
        %3090 = vmatmul.mubr.bf16.gmra.mxu0 %v1402
        %v3091 = vpop.f32.mrf.mxu0
        %v3092 = vadd.f32 0.0, %v3091
        %v3093 = vpop.f32.mrf.mxu0
        %v3094 = vadd.f32 0.0, %v3093
        %v3095 = vpop.f32.mrf.mxu0
        %v3096 = vadd.f32 0.0, %v3095
        %v3097 = vpop.f32.mrf.mxu0
        %v3098 = vadd.f32 0.0, %v3097
        %3099 = vmatprep.mubr.bf16.mxu0 0
        %3100 = vmatmul.mubr.bf16.gmra.mxu0 %v1403
        %v3101 = vpop.f32.mrf.mxu0
        %v3102 = vadd.f32 0.0, %v3101
        %v3103 = vpop.f32.mrf.mxu0
        %v3104 = vadd.f32 0.0, %v3103
        %v3105 = vpop.f32.mrf.mxu0
        %v3106 = vadd.f32 0.0, %v3105
        %v3107 = vpop.f32.mrf.mxu0
        %v3108 = vadd.f32 0.0, %v3107
        %3109 = vmatprep.mubr.bf16.mxu0 0
        %3110 = vmatmul.mubr.bf16.gmra.mxu0 %v1404
        %v3111 = vpop.f32.mrf.mxu0
        %v3112 = vadd.f32 0.0, %v3111
        %v3113 = vpop.f32.mrf.mxu0
        %v3114 = vadd.f32 0.0, %v3113
        %v3115 = vpop.f32.mrf.mxu0
        %v3116 = vadd.f32 0.0, %v3115
        %v3117 = vpop.f32.mrf.mxu0
        %v3118 = vadd.f32 0.0, %v3117
        %3119 = vmatprep.mubr.bf16.mxu0 0
        %3120 = vmatmul.mubr.bf16.gmra.mxu0 %v1405
        %v3121 = vpop.f32.mrf.mxu0
        %v3122 = vadd.f32 0.0, %v3121
        %v3123 = vpop.f32.mrf.mxu0
        %v3124 = vadd.f32 0.0, %v3123
        %v3125 = vpop.f32.mrf.mxu0
        %v3126 = vadd.f32 0.0, %v3125
        %v3127 = vpop.f32.mrf.mxu0
        %v3128 = vadd.f32 0.0, %v3127
        %3129 = vmatprep.mubr.bf16.mxu0 0
        %3130 = vmatmul.mubr.bf16.gmra.mxu0 %v1406
        %v3131 = vpop.f32.mrf.mxu0
        %v3132 = vadd.f32 0.0, %v3131
        %v3133 = vpop.f32.mrf.mxu0
        %v3134 = vadd.f32 0.0, %v3133
        %v3135 = vpop.f32.mrf.mxu0
        %v3136 = vadd.f32 0.0, %v3135
        %v3137 = vpop.f32.mrf.mxu0
        %v3138 = vadd.f32 0.0, %v3137
        %3139 = vmatprep.mubr.bf16.mxu0 0
        %3140 = vmatmul.mubr.bf16.gmra.mxu0 %v1407
        %v3141 = vpop.f32.mrf.mxu0
        %v3142 = vadd.f32 0.0, %v3141
        %v3143 = vpop.f32.mrf.mxu0
        %v3144 = vadd.f32 0.0, %v3143
        %v3145 = vpop.f32.mrf.mxu0
        %v3146 = vadd.f32 0.0, %v3145
        %v3147 = vpop.f32.mrf.mxu0
        %v3148 = vadd.f32 0.0, %v3147
        %3149 = vmatprep.mubr.bf16.mxu0 0
        %3150 = vmatmul.mubr.bf16.gmra.mxu0 %v1408
        %v3151 = vpop.f32.mrf.mxu0
        %v3152 = vadd.f32 0.0, %v3151
        %v3153 = vpop.f32.mrf.mxu0
        %v3154 = vadd.f32 0.0, %v3153
        %v3155 = vpop.f32.mrf.mxu0
        %v3156 = vadd.f32 0.0, %v3155
        %v3157 = vpop.f32.mrf.mxu0
        %v3158 = vadd.f32 0.0, %v3157
        %3159 = vmatprep.mubr.bf16.mxu0 0
        %3160 = vmatmul.mubr.bf16.gmra.mxu0 %v1409
        %v3161 = vpop.f32.mrf.mxu0
        %v3162 = vadd.f32 0.0, %v3161
        %v3163 = vpop.f32.mrf.mxu0
        %v3164 = vadd.f32 0.0, %v3163
        %v3165 = vpop.f32.mrf.mxu0
        %v3166 = vadd.f32 0.0, %v3165
        %v3167 = vpop.f32.mrf.mxu0
        %v3168 = vadd.f32 0.0, %v3167
        %3169 = vmatprep.mubr.bf16.mxu0 0
        %3170 = vmatmul.mubr.bf16.gmra.mxu0 %v1410
        %v3171 = vpop.f32.mrf.mxu0
        %v3172 = vadd.f32 0.0, %v3171
        %v3173 = vpop.f32.mrf.mxu0
        %v3174 = vadd.f32 0.0, %v3173
        %v3175 = vpop.f32.mrf.mxu0
        %v3176 = vadd.f32 0.0, %v3175
        %v3177 = vpop.f32.mrf.mxu0
        %v3178 = vadd.f32 0.0, %v3177
        %3179 = vmatprep.mubr.bf16.mxu0 0
        %3180 = vmatmul.mubr.bf16.gmra.mxu0 %v1411
        %v3181 = vpop.f32.mrf.mxu0
        %v3182 = vadd.f32 0.0, %v3181
        %v3183 = vpop.f32.mrf.mxu0
        %v3184 = vadd.f32 0.0, %v3183
        %v3185 = vpop.f32.mrf.mxu0
        %v3186 = vadd.f32 0.0, %v3185
        %v3187 = vpop.f32.mrf.mxu0
        %v3188 = vadd.f32 0.0, %v3187
        %3189 = vmatprep.mubr.bf16.mxu0 0
        %3190 = vmatmul.mubr.bf16.gmra.mxu0 %v1412
        %v3191 = vpop.f32.mrf.mxu0
        %v3192 = vadd.f32 0.0, %v3191
        %v3193 = vpop.f32.mrf.mxu0
        %v3194 = vadd.f32 0.0, %v3193
        %v3195 = vpop.f32.mrf.mxu0
        %v3196 = vadd.f32 0.0, %v3195
        %v3197 = vpop.f32.mrf.mxu0
        %v3198 = vadd.f32 0.0, %v3197
        %3199 = vmatprep.mubr.bf16.mxu0 0
        %3200 = vmatmul.mubr.bf16.gmra.mxu0 %v1413
        %v3201 = vpop.f32.mrf.mxu0
        %v3202 = vadd.f32 0.0, %v3201
        %v3203 = vpop.f32.mrf.mxu0
        %v3204 = vadd.f32 0.0, %v3203
        %v3205 = vpop.f32.mrf.mxu0
        %v3206 = vadd.f32 0.0, %v3205
        %v3207 = vpop.f32.mrf.mxu0
        %v3208 = vadd.f32 0.0, %v3207
        %3209 = vdwg.mxu0
        %s3210 = sadd.s32 %s26, %s27
        %s3211 = sadd.s32 %s3210, 1
        %s3212 = smul.u32 %s3211, 512
        %p3213 = scmp.gt.s32.totalorder %s3212, 300
        // Predicated region
        $region49: #{tpu_custom_call.1} parent=43 // pred_check
          %p3214 = pneg %p3213
        $region50: #{tpu_custom_call.1} parent=43 // pred_check_branch
          %3216 = sbr.rel (%p3214) target = $region52
        $region51: #{tpu_custom_call.1} parent=43 // pred_region
          %s3217 = smul.u32 %s3210, 512
          %v3218 = vlaneseq
          %v3219 = vshrl.u32 %v3218, 7
          %v3220 = vadd.s32 %v3219, 8
          %v3221 = vadd.s32 %v3219, 16
          %v3222 = vadd.s32 %v3219, 24
          %v3223 = vadd.s32 %v3219, 32
          %v3224 = vadd.s32 %v3219, 40
          %v3225 = vadd.s32 %v3219, 48
          %v3226 = vadd.s32 %v3219, 56
          %v3227 = vadd.s32 %v3219, 64
          %v3228 = vadd.s32 %v3219, 72
          %v3229 = vadd.s32 %v3219, 80
          %v3230 = vadd.s32 %v3219, 88
          %v3231 = vadd.s32 %v3219, 96
          %v3232 = vadd.s32 %v3219, 104
          %v3233 = vadd.s32 %v3219, 112
          %v3234 = vadd.s32 %v3219, 120
          %v3235 = vadd.s32 %v3219, 128
          %v3236 = vadd.s32 %v3219, 136
          %v3237 = vadd.s32 %v3219, 144
          %v3238 = vadd.s32 %v3219, 152
          %v3239 = vadd.s32 %v3219, 160
          %v3240 = vadd.s32 %v3219, 168
          %v3241 = vadd.s32 %v3219, 176
          %v3242 = vadd.s32 %v3219, 184
          %v3243 = vadd.s32 %v3219, 192
          %v3244 = vadd.s32 %v3219, 200
          %v3245 = vadd.s32 %v3219, 208
          %v3246 = vadd.s32 %v3219, 216
          %v3247 = vadd.s32 %v3219, 224
          %v3248 = vadd.s32 %v3219, 232
          %v3249 = vadd.s32 %v3219, 240
          %v3250 = vadd.s32 %v3219, 248
          %v3251 = vadd.s32 %v3219, 256
          %v3252 = vadd.s32 %v3219, 264
          %v3253 = vadd.s32 %v3219, 272
          %v3254 = vadd.s32 %v3219, 280
          %v3255 = vadd.s32 %v3219, 288
          %v3256 = vadd.s32 %v3219, 296
          %v3257 = vadd.s32 %v3219, 304
          %v3258 = vadd.s32 %v3219, 312
          %v3259 = vadd.s32 %v3219, 320
          %v3260 = vadd.s32 %v3219, 328
          %v3261 = vadd.s32 %v3219, 336
          %v3262 = vadd.s32 %v3219, 344
          %v3263 = vadd.s32 %v3219, 352
          %v3264 = vadd.s32 %v3219, 360
          %v3265 = vadd.s32 %v3219, 368
          %v3266 = vadd.s32 %v3219, 376
          %v3267 = vadd.s32 %v3219, 384
          %v3268 = vadd.s32 %v3219, 392
          %v3269 = vadd.s32 %v3219, 400
          %v3270 = vadd.s32 %v3219, 408
          %v3271 = vadd.s32 %v3219, 416
          %v3272 = vadd.s32 %v3219, 424
          %v3273 = vadd.s32 %v3219, 432
          %v3274 = vadd.s32 %v3219, 440
          %v3275 = vadd.s32 %v3219, 448
          %v3276 = vadd.s32 %v3219, 456
          %v3277 = vadd.s32 %v3219, 464
          %v3278 = vadd.s32 %v3219, 472
          %v3279 = vadd.s32 %v3219, 480
          %v3280 = vadd.s32 %v3219, 488
          %v3281 = vadd.s32 %v3219, 496
          %v3282 = vadd.s32 %v3219, 504
          %v3283 = vstv %s3217
          %v3284 = vadd.s32 %v3283, %v3219
          %v3285 = vadd.s32 %v3283, %v3220
          %v3286 = vadd.s32 %v3283, %v3221
          %v3287 = vadd.s32 %v3283, %v3222
          %v3288 = vadd.s32 %v3283, %v3223
          %v3289 = vadd.s32 %v3283, %v3224
          %v3290 = vadd.s32 %v3283, %v3225
          %v3291 = vadd.s32 %v3283, %v3226
          %v3292 = vadd.s32 %v3283, %v3227
          %v3293 = vadd.s32 %v3283, %v3228
          %v3294 = vadd.s32 %v3283, %v3229
          %v3295 = vadd.s32 %v3283, %v3230
          %v3296 = vadd.s32 %v3283, %v3231
          %v3297 = vadd.s32 %v3283, %v3232
          %v3298 = vadd.s32 %v3283, %v3233
          %v3299 = vadd.s32 %v3283, %v3234
          %v3300 = vadd.s32 %v3283, %v3235
          %v3301 = vadd.s32 %v3283, %v3236
          %v3302 = vadd.s32 %v3283, %v3237
          %v3303 = vadd.s32 %v3283, %v3238
          %v3304 = vadd.s32 %v3283, %v3239
          %v3305 = vadd.s32 %v3283, %v3240
          %v3306 = vadd.s32 %v3283, %v3241
          %v3307 = vadd.s32 %v3283, %v3242
          %v3308 = vadd.s32 %v3283, %v3243
          %v3309 = vadd.s32 %v3283, %v3244
          %v3310 = vadd.s32 %v3283, %v3245
          %v3311 = vadd.s32 %v3283, %v3246
          %v3312 = vadd.s32 %v3283, %v3247
          %v3313 = vadd.s32 %v3283, %v3248
          %v3314 = vadd.s32 %v3283, %v3249
          %v3315 = vadd.s32 %v3283, %v3250
          %v3316 = vadd.s32 %v3283, %v3251
          %v3317 = vadd.s32 %v3283, %v3252
          %v3318 = vadd.s32 %v3283, %v3253
          %v3319 = vadd.s32 %v3283, %v3254
          %v3320 = vadd.s32 %v3283, %v3255
          %v3321 = vadd.s32 %v3283, %v3256
          %v3322 = vadd.s32 %v3283, %v3257
          %v3323 = vadd.s32 %v3283, %v3258
          %v3324 = vadd.s32 %v3283, %v3259
          %v3325 = vadd.s32 %v3283, %v3260
          %v3326 = vadd.s32 %v3283, %v3261
          %v3327 = vadd.s32 %v3283, %v3262
          %v3328 = vadd.s32 %v3283, %v3263
          %v3329 = vadd.s32 %v3283, %v3264
          %v3330 = vadd.s32 %v3283, %v3265
          %v3331 = vadd.s32 %v3283, %v3266
          %v3332 = vadd.s32 %v3283, %v3267
          %v3333 = vadd.s32 %v3283, %v3268
          %v3334 = vadd.s32 %v3283, %v3269
          %v3335 = vadd.s32 %v3283, %v3270
          %v3336 = vadd.s32 %v3283, %v3271
          %v3337 = vadd.s32 %v3283, %v3272
          %v3338 = vadd.s32 %v3283, %v3273
          %v3339 = vadd.s32 %v3283, %v3274
          %v3340 = vadd.s32 %v3283, %v3275
          %v3341 = vadd.s32 %v3283, %v3276
          %v3342 = vadd.s32 %v3283, %v3277
          %v3343 = vadd.s32 %v3283, %v3278
          %v3344 = vadd.s32 %v3283, %v3279
          %v3345 = vadd.s32 %v3283, %v3280
          %v3346 = vadd.s32 %v3283, %v3281
          %v3347 = vadd.s32 %v3283, %v3282
          %vm3348 = vcmp.lt.s32.totalorder %v3284, 300
          %vm3349 = vcmp.lt.s32.totalorder %v3285, 300
          %vm3350 = vcmp.lt.s32.totalorder %v3286, 300
          %vm3351 = vcmp.lt.s32.totalorder %v3287, 300
          %vm3352 = vcmp.lt.s32.totalorder %v3288, 300
          %vm3353 = vcmp.lt.s32.totalorder %v3289, 300
          %vm3354 = vcmp.lt.s32.totalorder %v3290, 300
          %vm3355 = vcmp.lt.s32.totalorder %v3291, 300
          %vm3356 = vcmp.lt.s32.totalorder %v3292, 300
          %vm3357 = vcmp.lt.s32.totalorder %v3293, 300
          %vm3358 = vcmp.lt.s32.totalorder %v3294, 300
          %vm3359 = vcmp.lt.s32.totalorder %v3295, 300
          %vm3360 = vcmp.lt.s32.totalorder %v3296, 300
          %vm3361 = vcmp.lt.s32.totalorder %v3297, 300
          %vm3362 = vcmp.lt.s32.totalorder %v3298, 300
          %vm3363 = vcmp.lt.s32.totalorder %v3299, 300
          %vm3364 = vcmp.lt.s32.totalorder %v3300, 300
          %vm3365 = vcmp.lt.s32.totalorder %v3301, 300
          %vm3366 = vcmp.lt.s32.totalorder %v3302, 300
          %vm3367 = vcmp.lt.s32.totalorder %v3303, 300
          %vm3368 = vcmp.lt.s32.totalorder %v3304, 300
          %vm3369 = vcmp.lt.s32.totalorder %v3305, 300
          %vm3370 = vcmp.lt.s32.totalorder %v3306, 300
          %vm3371 = vcmp.lt.s32.totalorder %v3307, 300
          %vm3372 = vcmp.lt.s32.totalorder %v3308, 300
          %vm3373 = vcmp.lt.s32.totalorder %v3309, 300
          %vm3374 = vcmp.lt.s32.totalorder %v3310, 300
          %vm3375 = vcmp.lt.s32.totalorder %v3311, 300
          %vm3376 = vcmp.lt.s32.totalorder %v3312, 300
          %vm3377 = vcmp.lt.s32.totalorder %v3313, 300
          %vm3378 = vcmp.lt.s32.totalorder %v3314, 300
          %vm3379 = vcmp.lt.s32.totalorder %v3315, 300
          %vm3380 = vcmp.lt.s32.totalorder %v3316, 300
          %vm3381 = vcmp.lt.s32.totalorder %v3317, 300
          %vm3382 = vcmp.lt.s32.totalorder %v3318, 300
          %vm3383 = vcmp.lt.s32.totalorder %v3319, 300
          %vm3384 = vcmp.lt.s32.totalorder %v3320, 300
          %vm3385 = vcmp.lt.s32.totalorder %v3321, 300
          %vm3386 = vcmp.lt.s32.totalorder %v3322, 300
          %vm3387 = vcmp.lt.s32.totalorder %v3323, 300
          %vm3388 = vcmp.lt.s32.totalorder %v3324, 300
          %vm3389 = vcmp.lt.s32.totalorder %v3325, 300
          %vm3390 = vcmp.lt.s32.totalorder %v3326, 300
          %vm3391 = vcmp.lt.s32.totalorder %v3327, 300
          %vm3392 = vcmp.lt.s32.totalorder %v3328, 300
          %vm3393 = vcmp.lt.s32.totalorder %v3329, 300
          %vm3394 = vcmp.lt.s32.totalorder %v3330, 300
          %vm3395 = vcmp.lt.s32.totalorder %v3331, 300
          %vm3396 = vcmp.lt.s32.totalorder %v3332, 300
          %vm3397 = vcmp.lt.s32.totalorder %v3333, 300
          %vm3398 = vcmp.lt.s32.totalorder %v3334, 300
          %vm3399 = vcmp.lt.s32.totalorder %v3335, 300
          %vm3400 = vcmp.lt.s32.totalorder %v3336, 300
          %vm3401 = vcmp.lt.s32.totalorder %v3337, 300
          %vm3402 = vcmp.lt.s32.totalorder %v3338, 300
          %vm3403 = vcmp.lt.s32.totalorder %v3339, 300
          %vm3404 = vcmp.lt.s32.totalorder %v3340, 300
          %vm3405 = vcmp.lt.s32.totalorder %v3341, 300
          %vm3406 = vcmp.lt.s32.totalorder %v3342, 300
          %vm3407 = vcmp.lt.s32.totalorder %v3343, 300
          %vm3408 = vcmp.lt.s32.totalorder %v3344, 300
          %vm3409 = vcmp.lt.s32.totalorder %v3345, 300
          %vm3410 = vcmp.lt.s32.totalorder %v3346, 300
          %vm3411 = vcmp.lt.s32.totalorder %v3347, 300
          %v3412 = vsel %vm3348, %v1833, -inf
          %v3413 = vsel %vm3348, %v1835, -inf
          %v3414 = vsel %vm3348, %v2186, -inf
          %v3415 = vsel %vm3348, %v2188, -inf
          %v3416 = vsel %vm3348, %v2539, -inf
          %v3417 = vsel %vm3348, %v2541, -inf
          %v3418 = vsel %vm3348, %v2892, -inf
          %v3419 = vsel %vm3348, %v2894, -inf
          %v3420 = vsel %vm3349, %v1837, -inf
          %v3421 = vsel %vm3349, %v1839, -inf
          %v3422 = vsel %vm3349, %v2190, -inf
          %v3423 = vsel %vm3349, %v2192, -inf
          %v3424 = vsel %vm3349, %v2543, -inf
          %v3425 = vsel %vm3349, %v2545, -inf
          %v3426 = vsel %vm3349, %v2896, -inf
          %v3427 = vsel %vm3349, %v2898, -inf
          %v3428 = vsel %vm3350, %v1843, -inf
          %v3429 = vsel %vm3350, %v1845, -inf
          %v3430 = vsel %vm3350, %v2196, -inf
          %v3431 = vsel %vm3350, %v2198, -inf
          %v3432 = vsel %vm3350, %v2549, -inf
          %v3433 = vsel %vm3350, %v2551, -inf
          %v3434 = vsel %vm3350, %v2902, -inf
          %v3435 = vsel %vm3350, %v2904, -inf
          %v3436 = vsel %vm3351, %v1847, -inf
          %v3437 = vsel %vm3351, %v1849, -inf
          %v3438 = vsel %vm3351, %v2200, -inf
          %v3439 = vsel %vm3351, %v2202, -inf
          %v3440 = vsel %vm3351, %v2553, -inf
          %v3441 = vsel %vm3351, %v2555, -inf
          %v3442 = vsel %vm3351, %v2906, -inf
          %v3443 = vsel %vm3351, %v2908, -inf
          %v3444 = vsel %vm3352, %v1853, -inf
          %v3445 = vsel %vm3352, %v1855, -inf
          %v3446 = vsel %vm3352, %v2206, -inf
          %v3447 = vsel %vm3352, %v2208, -inf
          %v3448 = vsel %vm3352, %v2559, -inf
          %v3449 = vsel %vm3352, %v2561, -inf
          %v3450 = vsel %vm3352, %v2912, -inf
          %v3451 = vsel %vm3352, %v2914, -inf
          %v3452 = vsel %vm3353, %v1857, -inf
          %v3453 = vsel %vm3353, %v1859, -inf
          %v3454 = vsel %vm3353, %v2210, -inf
          %v3455 = vsel %vm3353, %v2212, -inf
          %v3456 = vsel %vm3353, %v2563, -inf
          %v3457 = vsel %vm3353, %v2565, -inf
          %v3458 = vsel %vm3353, %v2916, -inf
          %v3459 = vsel %vm3353, %v2918, -inf
          %v3460 = vsel %vm3354, %v1863, -inf
          %v3461 = vsel %vm3354, %v1865, -inf
          %v3462 = vsel %vm3354, %v2216, -inf
          %v3463 = vsel %vm3354, %v2218, -inf
          %v3464 = vsel %vm3354, %v2569, -inf
          %v3465 = vsel %vm3354, %v2571, -inf
          %v3466 = vsel %vm3354, %v2922, -inf
          %v3467 = vsel %vm3354, %v2924, -inf
          %v3468 = vsel %vm3355, %v1867, -inf
          %v3469 = vsel %vm3355, %v1869, -inf
          %v3470 = vsel %vm3355, %v2220, -inf
          %v3471 = vsel %vm3355, %v2222, -inf
          %v3472 = vsel %vm3355, %v2573, -inf
          %v3473 = vsel %vm3355, %v2575, -inf
          %v3474 = vsel %vm3355, %v2926, -inf
          %v3475 = vsel %vm3355, %v2928, -inf
          %v3476 = vsel %vm3356, %v1873, -inf
          %v3477 = vsel %vm3356, %v1875, -inf
          %v3478 = vsel %vm3356, %v2226, -inf
          %v3479 = vsel %vm3356, %v2228, -inf
          %v3480 = vsel %vm3356, %v2579, -inf
          %v3481 = vsel %vm3356, %v2581, -inf
          %v3482 = vsel %vm3356, %v2932, -inf
          %v3483 = vsel %vm3356, %v2934, -inf
          %v3484 = vsel %vm3357, %v1877, -inf
          %v3485 = vsel %vm3357, %v1879, -inf
          %v3486 = vsel %vm3357, %v2230, -inf
          %v3487 = vsel %vm3357, %v2232, -inf
          %v3488 = vsel %vm3357, %v2583, -inf
          %v3489 = vsel %vm3357, %v2585, -inf
          %v3490 = vsel %vm3357, %v2936, -inf
          %v3491 = vsel %vm3357, %v2938, -inf
          %v3492 = vsel %vm3358, %v1883, -inf
          %v3493 = vsel %vm3358, %v1885, -inf
          %v3494 = vsel %vm3358, %v2236, -inf
          %v3495 = vsel %vm3358, %v2238, -inf
          %v3496 = vsel %vm3358, %v2589, -inf
          %v3497 = vsel %vm3358, %v2591, -inf
          %v3498 = vsel %vm3358, %v2942, -inf
          %v3499 = vsel %vm3358, %v2944, -inf
          %v3500 = vsel %vm3359, %v1887, -inf
          %v3501 = vsel %vm3359, %v1889, -inf
          %v3502 = vsel %vm3359, %v2240, -inf
          %v3503 = vsel %vm3359, %v2242, -inf
          %v3504 = vsel %vm3359, %v2593, -inf
          %v3505 = vsel %vm3359, %v2595, -inf
          %v3506 = vsel %vm3359, %v2946, -inf
          %v3507 = vsel %vm3359, %v2948, -inf
          %v3508 = vsel %vm3360, %v1893, -inf
          %v3509 = vsel %vm3360, %v1895, -inf
          %v3510 = vsel %vm3360, %v2246, -inf
          %v3511 = vsel %vm3360, %v2248, -inf
          %v3512 = vsel %vm3360, %v2599, -inf
          %v3513 = vsel %vm3360, %v2601, -inf
          %v3514 = vsel %vm3360, %v2952, -inf
          %v3515 = vsel %vm3360, %v2954, -inf
          %v3516 = vsel %vm3361, %v1897, -inf
          %v3517 = vsel %vm3361, %v1899, -inf
          %v3518 = vsel %vm3361, %v2250, -inf
          %v3519 = vsel %vm3361, %v2252, -inf
          %v3520 = vsel %vm3361, %v2603, -inf
          %v3521 = vsel %vm3361, %v2605, -inf
          %v3522 = vsel %vm3361, %v2956, -inf
          %v3523 = vsel %vm3361, %v2958, -inf
          %v3524 = vsel %vm3362, %v1903, -inf
          %v3525 = vsel %vm3362, %v1905, -inf
          %v3526 = vsel %vm3362, %v2256, -inf
          %v3527 = vsel %vm3362, %v2258, -inf
          %v3528 = vsel %vm3362, %v2609, -inf
          %v3529 = vsel %vm3362, %v2611, -inf
          %v3530 = vsel %vm3362, %v2962, -inf
          %v3531 = vsel %vm3362, %v2964, -inf
          %v3532 = vsel %vm3363, %v1907, -inf
          %v3533 = vsel %vm3363, %v1909, -inf
          %v3534 = vsel %vm3363, %v2260, -inf
          %v3535 = vsel %vm3363, %v2262, -inf
          %v3536 = vsel %vm3363, %v2613, -inf
          %v3537 = vsel %vm3363, %v2615, -inf
          %v3538 = vsel %vm3363, %v2966, -inf
          %v3539 = vsel %vm3363, %v2968, -inf
          %v3540 = vsel %vm3364, %v1913, -inf
          %v3541 = vsel %vm3364, %v1915, -inf
          %v3542 = vsel %vm3364, %v2266, -inf
          %v3543 = vsel %vm3364, %v2268, -inf
          %v3544 = vsel %vm3364, %v2619, -inf
          %v3545 = vsel %vm3364, %v2621, -inf
          %v3546 = vsel %vm3364, %v2972, -inf
          %v3547 = vsel %vm3364, %v2974, -inf
          %v3548 = vsel %vm3365, %v1917, -inf
          %v3549 = vsel %vm3365, %v1919, -inf
          %v3550 = vsel %vm3365, %v2270, -inf
          %v3551 = vsel %vm3365, %v2272, -inf
          %v3552 = vsel %vm3365, %v2623, -inf
          %v3553 = vsel %vm3365, %v2625, -inf
          %v3554 = vsel %vm3365, %v2976, -inf
          %v3555 = vsel %vm3365, %v2978, -inf
          %v3556 = vsel %vm3366, %v1923, -inf
          %v3557 = vsel %vm3366, %v1925, -inf
          %v3558 = vsel %vm3366, %v2276, -inf
          %v3559 = vsel %vm3366, %v2278, -inf
          %v3560 = vsel %vm3366, %v2629, -inf
          %v3561 = vsel %vm3366, %v2631, -inf
          %v3562 = vsel %vm3366, %v2982, -inf
          %v3563 = vsel %vm3366, %v2984, -inf
          %v3564 = vsel %vm3367, %v1927, -inf
          %v3565 = vsel %vm3367, %v1929, -inf
          %v3566 = vsel %vm3367, %v2280, -inf
          %v3567 = vsel %vm3367, %v2282, -inf
          %v3568 = vsel %vm3367, %v2633, -inf
          %v3569 = vsel %vm3367, %v2635, -inf
          %v3570 = vsel %vm3367, %v2986, -inf
          %v3571 = vsel %vm3367, %v2988, -inf
          %v3572 = vsel %vm3368, %v1933, -inf
          %v3573 = vsel %vm3368, %v1935, -inf
          %v3574 = vsel %vm3368, %v2286, -inf
          %v3575 = vsel %vm3368, %v2288, -inf
          %v3576 = vsel %vm3368, %v2639, -inf
          %v3577 = vsel %vm3368, %v2641, -inf
          %v3578 = vsel %vm3368, %v2992, -inf
          %v3579 = vsel %vm3368, %v2994, -inf
          %v3580 = vsel %vm3369, %v1937, -inf
          %v3581 = vsel %vm3369, %v1939, -inf
          %v3582 = vsel %vm3369, %v2290, -inf
          %v3583 = vsel %vm3369, %v2292, -inf
          %v3584 = vsel %vm3369, %v2643, -inf
          %v3585 = vsel %vm3369, %v2645, -inf
          %v3586 = vsel %vm3369, %v2996, -inf
          %v3587 = vsel %vm3369, %v2998, -inf
          %v3588 = vsel %vm3370, %v1943, -inf
          %v3589 = vsel %vm3370, %v1945, -inf
          %v3590 = vsel %vm3370, %v2296, -inf
          %v3591 = vsel %vm3370, %v2298, -inf
          %v3592 = vsel %vm3370, %v2649, -inf
          %v3593 = vsel %vm3370, %v2651, -inf
          %v3594 = vsel %vm3370, %v3002, -inf
          %v3595 = vsel %vm3370, %v3004, -inf
          %v3596 = vsel %vm3371, %v1947, -inf
          %v3597 = vsel %vm3371, %v1949, -inf
          %v3598 = vsel %vm3371, %v2300, -inf
          %v3599 = vsel %vm3371, %v2302, -inf
          %v3600 = vsel %vm3371, %v2653, -inf
          %v3601 = vsel %vm3371, %v2655, -inf
          %v3602 = vsel %vm3371, %v3006, -inf
          %v3603 = vsel %vm3371, %v3008, -inf
          %v3604 = vsel %vm3372, %v1953, -inf
          %v3605 = vsel %vm3372, %v1955, -inf
          %v3606 = vsel %vm3372, %v2306, -inf
          %v3607 = vsel %vm3372, %v2308, -inf
          %v3608 = vsel %vm3372, %v2659, -inf
          %v3609 = vsel %vm3372, %v2661, -inf
          %v3610 = vsel %vm3372, %v3012, -inf
          %v3611 = vsel %vm3372, %v3014, -inf
          %v3612 = vsel %vm3373, %v1957, -inf
          %v3613 = vsel %vm3373, %v1959, -inf
          %v3614 = vsel %vm3373, %v2310, -inf
          %v3615 = vsel %vm3373, %v2312, -inf
          %v3616 = vsel %vm3373, %v2663, -inf
          %v3617 = vsel %vm3373, %v2665, -inf
          %v3618 = vsel %vm3373, %v3016, -inf
          %v3619 = vsel %vm3373, %v3018, -inf
          %v3620 = vsel %vm3374, %v1963, -inf
          %v3621 = vsel %vm3374, %v1965, -inf
          %v3622 = vsel %vm3374, %v2316, -inf
          %v3623 = vsel %vm3374, %v2318, -inf
          %v3624 = vsel %vm3374, %v2669, -inf
          %v3625 = vsel %vm3374, %v2671, -inf
          %v3626 = vsel %vm3374, %v3022, -inf
          %v3627 = vsel %vm3374, %v3024, -inf
          %v3628 = vsel %vm3375, %v1967, -inf
          %v3629 = vsel %vm3375, %v1969, -inf
          %v3630 = vsel %vm3375, %v2320, -inf
          %v3631 = vsel %vm3375, %v2322, -inf
          %v3632 = vsel %vm3375, %v2673, -inf
          %v3633 = vsel %vm3375, %v2675, -inf
          %v3634 = vsel %vm3375, %v3026, -inf
          %v3635 = vsel %vm3375, %v3028, -inf
          %v3636 = vsel %vm3376, %v1973, -inf
          %v3637 = vsel %vm3376, %v1975, -inf
          %v3638 = vsel %vm3376, %v2326, -inf
          %v3639 = vsel %vm3376, %v2328, -inf
          %v3640 = vsel %vm3376, %v2679, -inf
          %v3641 = vsel %vm3376, %v2681, -inf
          %v3642 = vsel %vm3376, %v3032, -inf
          %v3643 = vsel %vm3376, %v3034, -inf
          %v3644 = vsel %vm3377, %v1977, -inf
          %v3645 = vsel %vm3377, %v1979, -inf
          %v3646 = vsel %vm3377, %v2330, -inf
          %v3647 = vsel %vm3377, %v2332, -inf
          %v3648 = vsel %vm3377, %v2683, -inf
          %v3649 = vsel %vm3377, %v2685, -inf
          %v3650 = vsel %vm3377, %v3036, -inf
          %v3651 = vsel %vm3377, %v3038, -inf
          %v3652 = vsel %vm3378, %v1983, -inf
          %v3653 = vsel %vm3378, %v1985, -inf
          %v3654 = vsel %vm3378, %v2336, -inf
          %v3655 = vsel %vm3378, %v2338, -inf
          %v3656 = vsel %vm3378, %v2689, -inf
          %v3657 = vsel %vm3378, %v2691, -inf
          %v3658 = vsel %vm3378, %v3042, -inf
          %v3659 = vsel %vm3378, %v3044, -inf
          %v3660 = vsel %vm3379, %v1987, -inf
          %v3661 = vsel %vm3379, %v1989, -inf
          %v3662 = vsel %vm3379, %v2340, -inf
          %v3663 = vsel %vm3379, %v2342, -inf
          %v3664 = vsel %vm3379, %v2693, -inf
          %v3665 = vsel %vm3379, %v2695, -inf
          %v3666 = vsel %vm3379, %v3046, -inf
          %v3667 = vsel %vm3379, %v3048, -inf
          %v3668 = vsel %vm3380, %v1993, -inf
          %v3669 = vsel %vm3380, %v1995, -inf
          %v3670 = vsel %vm3380, %v2346, -inf
          %v3671 = vsel %vm3380, %v2348, -inf
          %v3672 = vsel %vm3380, %v2699, -inf
          %v3673 = vsel %vm3380, %v2701, -inf
          %v3674 = vsel %vm3380, %v3052, -inf
          %v3675 = vsel %vm3380, %v3054, -inf
          %v3676 = vsel %vm3381, %v1997, -inf
          %v3677 = vsel %vm3381, %v1999, -inf
          %v3678 = vsel %vm3381, %v2350, -inf
          %v3679 = vsel %vm3381, %v2352, -inf
          %v3680 = vsel %vm3381, %v2703, -inf
          %v3681 = vsel %vm3381, %v2705, -inf
          %v3682 = vsel %vm3381, %v3056, -inf
          %v3683 = vsel %vm3381, %v3058, -inf
          %v3684 = vsel %vm3382, %v2003, -inf
          %v3685 = vsel %vm3382, %v2005, -inf
          %v3686 = vsel %vm3382, %v2356, -inf
          %v3687 = vsel %vm3382, %v2358, -inf
          %v3688 = vsel %vm3382, %v2709, -inf
          %v3689 = vsel %vm3382, %v2711, -inf
          %v3690 = vsel %vm3382, %v3062, -inf
          %v3691 = vsel %vm3382, %v3064, -inf
          %v3692 = vsel %vm3383, %v2007, -inf
          %v3693 = vsel %vm3383, %v2009, -inf
          %v3694 = vsel %vm3383, %v2360, -inf
          %v3695 = vsel %vm3383, %v2362, -inf
          %v3696 = vsel %vm3383, %v2713, -inf
          %v3697 = vsel %vm3383, %v2715, -inf
          %v3698 = vsel %vm3383, %v3066, -inf
          %v3699 = vsel %vm3383, %v3068, -inf
          %v3700 = vsel %vm3384, %v2013, -inf
          %v3701 = vsel %vm3384, %v2015, -inf
          %v3702 = vsel %vm3384, %v2366, -inf
          %v3703 = vsel %vm3384, %v2368, -inf
          %v3704 = vsel %vm3384, %v2719, -inf
          %v3705 = vsel %vm3384, %v2721, -inf
          %v3706 = vsel %vm3384, %v3072, -inf
          %v3707 = vsel %vm3384, %v3074, -inf
          %v3708 = vsel %vm3385, %v2017, -inf
          %v3709 = vsel %vm3385, %v2019, -inf
          %v3710 = vsel %vm3385, %v2370, -inf
          %v3711 = vsel %vm3385, %v2372, -inf
          %v3712 = vsel %vm3385, %v2723, -inf
          %v3713 = vsel %vm3385, %v2725, -inf
          %v3714 = vsel %vm3385, %v3076, -inf
          %v3715 = vsel %vm3385, %v3078, -inf
          %v3716 = vsel %vm3386, %v2023, -inf
          %v3717 = vsel %vm3386, %v2025, -inf
          %v3718 = vsel %vm3386, %v2376, -inf
          %v3719 = vsel %vm3386, %v2378, -inf
          %v3720 = vsel %vm3386, %v2729, -inf
          %v3721 = vsel %vm3386, %v2731, -inf
          %v3722 = vsel %vm3386, %v3082, -inf
          %v3723 = vsel %vm3386, %v3084, -inf
          %v3724 = vsel %vm3387, %v2027, -inf
          %v3725 = vsel %vm3387, %v2029, -inf
          %v3726 = vsel %vm3387, %v2380, -inf
          %v3727 = vsel %vm3387, %v2382, -inf
          %v3728 = vsel %vm3387, %v2733, -inf
          %v3729 = vsel %vm3387, %v2735, -inf
          %v3730 = vsel %vm3387, %v3086, -inf
          %v3731 = vsel %vm3387, %v3088, -inf
          %v3732 = vsel %vm3388, %v2033, -inf
          %v3733 = vsel %vm3388, %v2035, -inf
          %v3734 = vsel %vm3388, %v2386, -inf
          %v3735 = vsel %vm3388, %v2388, -inf
          %v3736 = vsel %vm3388, %v2739, -inf
          %v3737 = vsel %vm3388, %v2741, -inf
          %v3738 = vsel %vm3388, %v3092, -inf
          %v3739 = vsel %vm3388, %v3094, -inf
          %v3740 = vsel %vm3389, %v2037, -inf
          %v3741 = vsel %vm3389, %v2039, -inf
          %v3742 = vsel %vm3389, %v2390, -inf
          %v3743 = vsel %vm3389, %v2392, -inf
          %v3744 = vsel %vm3389, %v2743, -inf
          %v3745 = vsel %vm3389, %v2745, -inf
          %v3746 = vsel %vm3389, %v3096, -inf
          %v3747 = vsel %vm3389, %v3098, -inf
          %v3748 = vsel %vm3390, %v2043, -inf
          %v3749 = vsel %vm3390, %v2045, -inf
          %v3750 = vsel %vm3390, %v2396, -inf
          %v3751 = vsel %vm3390, %v2398, -inf
          %v3752 = vsel %vm3390, %v2749, -inf
          %v3753 = vsel %vm3390, %v2751, -inf
          %v3754 = vsel %vm3390, %v3102, -inf
          %v3755 = vsel %vm3390, %v3104, -inf
          %v3756 = vsel %vm3391, %v2047, -inf
          %v3757 = vsel %vm3391, %v2049, -inf
          %v3758 = vsel %vm3391, %v2400, -inf
          %v3759 = vsel %vm3391, %v2402, -inf
          %v3760 = vsel %vm3391, %v2753, -inf
          %v3761 = vsel %vm3391, %v2755, -inf
          %v3762 = vsel %vm3391, %v3106, -inf
          %v3763 = vsel %vm3391, %v3108, -inf
          %v3764 = vsel %vm3392, %v2053, -inf
          %v3765 = vsel %vm3392, %v2055, -inf
          %v3766 = vsel %vm3392, %v2406, -inf
          %v3767 = vsel %vm3392, %v2408, -inf
          %v3768 = vsel %vm3392, %v2759, -inf
          %v3769 = vsel %vm3392, %v2761, -inf
          %v3770 = vsel %vm3392, %v3112, -inf
          %v3771 = vsel %vm3392, %v3114, -inf
          %v3772 = vsel %vm3393, %v2057, -inf
          %v3773 = vsel %vm3393, %v2059, -inf
          %v3774 = vsel %vm3393, %v2410, -inf
          %v3775 = vsel %vm3393, %v2412, -inf
          %v3776 = vsel %vm3393, %v2763, -inf
          %v3777 = vsel %vm3393, %v2765, -inf
          %v3778 = vsel %vm3393, %v3116, -inf
          %v3779 = vsel %vm3393, %v3118, -inf
          %v3780 = vsel %vm3394, %v2063, -inf
          %v3781 = vsel %vm3394, %v2065, -inf
          %v3782 = vsel %vm3394, %v2416, -inf
          %v3783 = vsel %vm3394, %v2418, -inf
          %v3784 = vsel %vm3394, %v2769, -inf
          %v3785 = vsel %vm3394, %v2771, -inf
          %v3786 = vsel %vm3394, %v3122, -inf
          %v3787 = vsel %vm3394, %v3124, -inf
          %v3788 = vsel %vm3395, %v2067, -inf
          %v3789 = vsel %vm3395, %v2069, -inf
          %v3790 = vsel %vm3395, %v2420, -inf
          %v3791 = vsel %vm3395, %v2422, -inf
          %v3792 = vsel %vm3395, %v2773, -inf
          %v3793 = vsel %vm3395, %v2775, -inf
          %v3794 = vsel %vm3395, %v3126, -inf
          %v3795 = vsel %vm3395, %v3128, -inf
          %v3796 = vsel %vm3396, %v2073, -inf
          %v3797 = vsel %vm3396, %v2075, -inf
          %v3798 = vsel %vm3396, %v2426, -inf
          %v3799 = vsel %vm3396, %v2428, -inf
          %v3800 = vsel %vm3396, %v2779, -inf
          %v3801 = vsel %vm3396, %v2781, -inf
          %v3802 = vsel %vm3396, %v3132, -inf
          %v3803 = vsel %vm3396, %v3134, -inf
          %v3804 = vsel %vm3397, %v2077, -inf
          %v3805 = vsel %vm3397, %v2079, -inf
          %v3806 = vsel %vm3397, %v2430, -inf
          %v3807 = vsel %vm3397, %v2432, -inf
          %v3808 = vsel %vm3397, %v2783, -inf
          %v3809 = vsel %vm3397, %v2785, -inf
          %v3810 = vsel %vm3397, %v3136, -inf
          %v3811 = vsel %vm3397, %v3138, -inf
          %v3812 = vsel %vm3398, %v2083, -inf
          %v3813 = vsel %vm3398, %v2085, -inf
          %v3814 = vsel %vm3398, %v2436, -inf
          %v3815 = vsel %vm3398, %v2438, -inf
          %v3816 = vsel %vm3398, %v2789, -inf
          %v3817 = vsel %vm3398, %v2791, -inf
          %v3818 = vsel %vm3398, %v3142, -inf
          %v3819 = vsel %vm3398, %v3144, -inf
          %v3820 = vsel %vm3399, %v2087, -inf
          %v3821 = vsel %vm3399, %v2089, -inf
          %v3822 = vsel %vm3399, %v2440, -inf
          %v3823 = vsel %vm3399, %v2442, -inf
          %v3824 = vsel %vm3399, %v2793, -inf
          %v3825 = vsel %vm3399, %v2795, -inf
          %v3826 = vsel %vm3399, %v3146, -inf
          %v3827 = vsel %vm3399, %v3148, -inf
          %v3828 = vsel %vm3400, %v2093, -inf
          %v3829 = vsel %vm3400, %v2095, -inf
          %v3830 = vsel %vm3400, %v2446, -inf
          %v3831 = vsel %vm3400, %v2448, -inf
          %v3832 = vsel %vm3400, %v2799, -inf
          %v3833 = vsel %vm3400, %v2801, -inf
          %v3834 = vsel %vm3400, %v3152, -inf
          %v3835 = vsel %vm3400, %v3154, -inf
          %v3836 = vsel %vm3401, %v2097, -inf
          %v3837 = vsel %vm3401, %v2099, -inf
          %v3838 = vsel %vm3401, %v2450, -inf
          %v3839 = vsel %vm3401, %v2452, -inf
          %v3840 = vsel %vm3401, %v2803, -inf
          %v3841 = vsel %vm3401, %v2805, -inf
          %v3842 = vsel %vm3401, %v3156, -inf
          %v3843 = vsel %vm3401, %v3158, -inf
          %v3844 = vsel %vm3402, %v2103, -inf
          %v3845 = vsel %vm3402, %v2105, -inf
          %v3846 = vsel %vm3402, %v2456, -inf
          %v3847 = vsel %vm3402, %v2458, -inf
          %v3848 = vsel %vm3402, %v2809, -inf
          %v3849 = vsel %vm3402, %v2811, -inf
          %v3850 = vsel %vm3402, %v3162, -inf
          %v3851 = vsel %vm3402, %v3164, -inf
          %v3852 = vsel %vm3403, %v2107, -inf
          %v3853 = vsel %vm3403, %v2109, -inf
          %v3854 = vsel %vm3403, %v2460, -inf
          %v3855 = vsel %vm3403, %v2462, -inf
          %v3856 = vsel %vm3403, %v2813, -inf
          %v3857 = vsel %vm3403, %v2815, -inf
          %v3858 = vsel %vm3403, %v3166, -inf
          %v3859 = vsel %vm3403, %v3168, -inf
          %v3860 = vsel %vm3404, %v2113, -inf
          %v3861 = vsel %vm3404, %v2115, -inf
          %v3862 = vsel %vm3404, %v2466, -inf
          %v3863 = vsel %vm3404, %v2468, -inf
          %v3864 = vsel %vm3404, %v2819, -inf
          %v3865 = vsel %vm3404, %v2821, -inf
          %v3866 = vsel %vm3404, %v3172, -inf
          %v3867 = vsel %vm3404, %v3174, -inf
          %v3868 = vsel %vm3405, %v2117, -inf
          %v3869 = vsel %vm3405, %v2119, -inf
          %v3870 = vsel %vm3405, %v2470, -inf
          %v3871 = vsel %vm3405, %v2472, -inf
          %v3872 = vsel %vm3405, %v2823, -inf
          %v3873 = vsel %vm3405, %v2825, -inf
          %v3874 = vsel %vm3405, %v3176, -inf
          %v3875 = vsel %vm3405, %v3178, -inf
          %v3876 = vsel %vm3406, %v2123, -inf
          %v3877 = vsel %vm3406, %v2125, -inf
          %v3878 = vsel %vm3406, %v2476, -inf
          %v3879 = vsel %vm3406, %v2478, -inf
          %v3880 = vsel %vm3406, %v2829, -inf
          %v3881 = vsel %vm3406, %v2831, -inf
          %v3882 = vsel %vm3406, %v3182, -inf
          %v3883 = vsel %vm3406, %v3184, -inf
          %v3884 = vsel %vm3407, %v2127, -inf
          %v3885 = vsel %vm3407, %v2129, -inf
          %v3886 = vsel %vm3407, %v2480, -inf
          %v3887 = vsel %vm3407, %v2482, -inf
          %v3888 = vsel %vm3407, %v2833, -inf
          %v3889 = vsel %vm3407, %v2835, -inf
          %v3890 = vsel %vm3407, %v3186, -inf
          %v3891 = vsel %vm3407, %v3188, -inf
          %v3892 = vsel %vm3408, %v2133, -inf
          %v3893 = vsel %vm3408, %v2135, -inf
          %v3894 = vsel %vm3408, %v2486, -inf
          %v3895 = vsel %vm3408, %v2488, -inf
          %v3896 = vsel %vm3408, %v2839, -inf
          %v3897 = vsel %vm3408, %v2841, -inf
          %v3898 = vsel %vm3408, %v3192, -inf
          %v3899 = vsel %vm3408, %v3194, -inf
          %v3900 = vsel %vm3409, %v2137, -inf
          %v3901 = vsel %vm3409, %v2139, -inf
          %v3902 = vsel %vm3409, %v2490, -inf
          %v3903 = vsel %vm3409, %v2492, -inf
          %v3904 = vsel %vm3409, %v2843, -inf
          %v3905 = vsel %vm3409, %v2845, -inf
          %v3906 = vsel %vm3409, %v3196, -inf
          %v3907 = vsel %vm3409, %v3198, -inf
          %v3908 = vsel %vm3410, %v2143, -inf
          %v3909 = vsel %vm3410, %v2145, -inf
          %v3910 = vsel %vm3410, %v2496, -inf
          %v3911 = vsel %vm3410, %v2498, -inf
          %v3912 = vsel %vm3410, %v2849, -inf
          %v3913 = vsel %vm3410, %v2851, -inf
          %v3914 = vsel %vm3410, %v3202, -inf
          %v3915 = vsel %vm3410, %v3204, -inf
          %v3916 = vsel %vm3411, %v2147, -inf
          %v3917 = vsel %vm3411, %v2149, -inf
          %v3918 = vsel %vm3411, %v2500, -inf
          %v3919 = vsel %vm3411, %v2502, -inf
          %v3920 = vsel %vm3411, %v2853, -inf
          %v3921 = vsel %vm3411, %v2855, -inf
          %v3922 = vsel %vm3411, %v3206, -inf
          %v3923 = vsel %vm3411, %v3208, -inf
          %v3924 = vld [vmem:[%s281] sm:$0xff]
          %v3925 = vmax.f32 %v3412, %v3420
          %v3926 = vmax.f32 %v3925, %v3428
          %v3927 = vmax.f32 %v3926, %v3436
          %v3928 = vmax.f32 %v3927, %v3444
          %v3929 = vmax.f32 %v3928, %v3452
          %v3930 = vmax.f32 %v3929, %v3460
          %v3931 = vmax.f32 %v3930, %v3468
          %v3932 = vmax.f32 %v3931, %v3476
          %v3933 = vmax.f32 %v3932, %v3484
          %v3934 = vmax.f32 %v3933, %v3492
          %v3935 = vmax.f32 %v3934, %v3500
          %v3936 = vmax.f32 %v3935, %v3508
          %v3937 = vmax.f32 %v3936, %v3516
          %v3938 = vmax.f32 %v3937, %v3524
          %v3939 = vmax.f32 %v3938, %v3532
          %v3940 = vmax.f32 %v3939, %v3540
          %v3941 = vmax.f32 %v3940, %v3548
          %v3942 = vmax.f32 %v3941, %v3556
          %v3943 = vmax.f32 %v3942, %v3564
          %v3944 = vmax.f32 %v3943, %v3572
          %v3945 = vmax.f32 %v3944, %v3580
          %v3946 = vmax.f32 %v3945, %v3588
          %v3947 = vmax.f32 %v3946, %v3596
          %v3948 = vmax.f32 %v3947, %v3604
          %v3949 = vmax.f32 %v3948, %v3612
          %v3950 = vmax.f32 %v3949, %v3620
          %v3951 = vmax.f32 %v3950, %v3628
          %v3952 = vmax.f32 %v3951, %v3636
          %v3953 = vmax.f32 %v3952, %v3644
          %v3954 = vmax.f32 %v3953, %v3652
          %v3955 = vmax.f32 %v3954, %v3660
          %v3956 = vmax.f32 %v3955, %v3668
          %v3957 = vmax.f32 %v3956, %v3676
          %v3958 = vmax.f32 %v3957, %v3684
          %v3959 = vmax.f32 %v3958, %v3692
          %v3960 = vmax.f32 %v3959, %v3700
          %v3961 = vmax.f32 %v3960, %v3708
          %v3962 = vmax.f32 %v3961, %v3716
          %v3963 = vmax.f32 %v3962, %v3724
          %v3964 = vmax.f32 %v3963, %v3732
          %v3965 = vmax.f32 %v3964, %v3740
          %v3966 = vmax.f32 %v3965, %v3748
          %v3967 = vmax.f32 %v3966, %v3756
          %v3968 = vmax.f32 %v3967, %v3764
          %v3969 = vmax.f32 %v3968, %v3772
          %v3970 = vmax.f32 %v3969, %v3780
          %v3971 = vmax.f32 %v3970, %v3788
          %v3972 = vmax.f32 %v3971, %v3796
          %v3973 = vmax.f32 %v3972, %v3804
          %v3974 = vmax.f32 %v3973, %v3812
          %v3975 = vmax.f32 %v3974, %v3820
          %v3976 = vmax.f32 %v3975, %v3828
          %v3977 = vmax.f32 %v3976, %v3836
          %v3978 = vmax.f32 %v3977, %v3844
          %v3979 = vmax.f32 %v3978, %v3852
          %v3980 = vmax.f32 %v3979, %v3860
          %v3981 = vmax.f32 %v3980, %v3868
          %v3982 = vmax.f32 %v3981, %v3876
          %v3983 = vmax.f32 %v3982, %v3884
          %v3984 = vmax.f32 %v3983, %v3892
          %v3985 = vmax.f32 %v3984, %v3900
          %v3986 = vmax.f32 %v3985, %v3908
          %v3987 = vmax.f32 %v3986, %v3916
          %v3988 = vrot.slane %v3987, 4
          %v3989 = vmax.f32 %v3987, %v3988
          %v3990 = vrot.slane %v3989, 2
          %v3991 = vmax.f32 %v3989, %v3990
          %v3992 = vrot.slane %v3991, 1
          %v3993 = vmax.f32 %v3991, %v3992
          %v3994 = vmax.f32 %v3413, %v3421
          %v3995 = vmax.f32 %v3994, %v3429
          %v3996 = vmax.f32 %v3995, %v3437
          %v3997 = vmax.f32 %v3996, %v3445
          %v3998 = vmax.f32 %v3997, %v3453
          %v3999 = vmax.f32 %v3998, %v3461
          %v4000 = vmax.f32 %v3999, %v3469
          %v4001 = vmax.f32 %v4000, %v3477
          %v4002 = vmax.f32 %v4001, %v3485
          %v4003 = vmax.f32 %v4002, %v3493
          %v4004 = vmax.f32 %v4003, %v3501
          %v4005 = vmax.f32 %v4004, %v3509
          %v4006 = vmax.f32 %v4005, %v3517
          %v4007 = vmax.f32 %v4006, %v3525
          %v4008 = vmax.f32 %v4007, %v3533
          %v4009 = vmax.f32 %v4008, %v3541
          %v4010 = vmax.f32 %v4009, %v3549
          %v4011 = vmax.f32 %v4010, %v3557
          %v4012 = vmax.f32 %v4011, %v3565
          %v4013 = vmax.f32 %v4012, %v3573
          %v4014 = vmax.f32 %v4013, %v3581
          %v4015 = vmax.f32 %v4014, %v3589
          %v4016 = vmax.f32 %v4015, %v3597
          %v4017 = vmax.f32 %v4016, %v3605
          %v4018 = vmax.f32 %v4017, %v3613
          %v4019 = vmax.f32 %v4018, %v3621
          %v4020 = vmax.f32 %v4019, %v3629
          %v4021 = vmax.f32 %v4020, %v3637
          %v4022 = vmax.f32 %v4021, %v3645
          %v4023 = vmax.f32 %v4022, %v3653
          %v4024 = vmax.f32 %v4023, %v3661
          %v4025 = vmax.f32 %v4024, %v3669
          %v4026 = vmax.f32 %v4025, %v3677
          %v4027 = vmax.f32 %v4026, %v3685
          %v4028 = vmax.f32 %v4027, %v3693
          %v4029 = vmax.f32 %v4028, %v3701
          %v4030 = vmax.f32 %v4029, %v3709
          %v4031 = vmax.f32 %v4030, %v3717
          %v4032 = vmax.f32 %v4031, %v3725
          %v4033 = vmax.f32 %v4032, %v3733
          %v4034 = vmax.f32 %v4033, %v3741
          %v4035 = vmax.f32 %v4034, %v3749
          %v4036 = vmax.f32 %v4035, %v3757
          %v4037 = vmax.f32 %v4036, %v3765
          %v4038 = vmax.f32 %v4037, %v3773
          %v4039 = vmax.f32 %v4038, %v3781
          %v4040 = vmax.f32 %v4039, %v3789
          %v4041 = vmax.f32 %v4040, %v3797
          %v4042 = vmax.f32 %v4041, %v3805
          %v4043 = vmax.f32 %v4042, %v3813
          %v4044 = vmax.f32 %v4043, %v3821
          %v4045 = vmax.f32 %v4044, %v3829
          %v4046 = vmax.f32 %v4045, %v3837
          %v4047 = vmax.f32 %v4046, %v3845
          %v4048 = vmax.f32 %v4047, %v3853
          %v4049 = vmax.f32 %v4048, %v3861
          %v4050 = vmax.f32 %v4049, %v3869
          %v4051 = vmax.f32 %v4050, %v3877
          %v4052 = vmax.f32 %v4051, %v3885
          %v4053 = vmax.f32 %v4052, %v3893
          %v4054 = vmax.f32 %v4053, %v3901
          %v4055 = vmax.f32 %v4054, %v3909
          %v4056 = vmax.f32 %v4055, %v3917
          %v4057 = vrot.slane %v4056, 4
          %v4058 = vmax.f32 %v4056, %v4057
          %v4059 = vrot.slane %v4058, 2
          %v4060 = vmax.f32 %v4058, %v4059
          %v4061 = vrot.slane %v4060, 1
          %v4062 = vmax.f32 %v4060, %v4061
          %v4063 = vmax.f32 %v3414, %v3422
          %v4064 = vmax.f32 %v4063, %v3430
          %v4065 = vmax.f32 %v4064, %v3438
          %v4066 = vmax.f32 %v4065, %v3446
          %v4067 = vmax.f32 %v4066, %v3454
          %v4068 = vmax.f32 %v4067, %v3462
          %v4069 = vmax.f32 %v4068, %v3470
          %v4070 = vmax.f32 %v4069, %v3478
          %v4071 = vmax.f32 %v4070, %v3486
          %v4072 = vmax.f32 %v4071, %v3494
          %v4073 = vmax.f32 %v4072, %v3502
          %v4074 = vmax.f32 %v4073, %v3510
          %v4075 = vmax.f32 %v4074, %v3518
          %v4076 = vmax.f32 %v4075, %v3526
          %v4077 = vmax.f32 %v4076, %v3534
          %v4078 = vmax.f32 %v4077, %v3542
          %v4079 = vmax.f32 %v4078, %v3550
          %v4080 = vmax.f32 %v4079, %v3558
          %v4081 = vmax.f32 %v4080, %v3566
          %v4082 = vmax.f32 %v4081, %v3574
          %v4083 = vmax.f32 %v4082, %v3582
          %v4084 = vmax.f32 %v4083, %v3590
          %v4085 = vmax.f32 %v4084, %v3598
          %v4086 = vmax.f32 %v4085, %v3606
          %v4087 = vmax.f32 %v4086, %v3614
          %v4088 = vmax.f32 %v4087, %v3622
          %v4089 = vmax.f32 %v4088, %v3630
          %v4090 = vmax.f32 %v4089, %v3638
          %v4091 = vmax.f32 %v4090, %v3646
          %v4092 = vmax.f32 %v4091, %v3654
          %v4093 = vmax.f32 %v4092, %v3662
          %v4094 = vmax.f32 %v4093, %v3670
          %v4095 = vmax.f32 %v4094, %v3678
          %v4096 = vmax.f32 %v4095, %v3686
          %v4097 = vmax.f32 %v4096, %v3694
          %v4098 = vmax.f32 %v4097, %v3702
          %v4099 = vmax.f32 %v4098, %v3710
          %v4100 = vmax.f32 %v4099, %v3718
          %v4101 = vmax.f32 %v4100, %v3726
          %v4102 = vmax.f32 %v4101, %v3734
          %v4103 = vmax.f32 %v4102, %v3742
          %v4104 = vmax.f32 %v4103, %v3750
          %v4105 = vmax.f32 %v4104, %v3758
          %v4106 = vmax.f32 %v4105, %v3766
          %v4107 = vmax.f32 %v4106, %v3774
          %v4108 = vmax.f32 %v4107, %v3782
          %v4109 = vmax.f32 %v4108, %v3790
          %v4110 = vmax.f32 %v4109, %v3798
          %v4111 = vmax.f32 %v4110, %v3806
          %v4112 = vmax.f32 %v4111, %v3814
          %v4113 = vmax.f32 %v4112, %v3822
          %v4114 = vmax.f32 %v4113, %v3830
          %v4115 = vmax.f32 %v4114, %v3838
          %v4116 = vmax.f32 %v4115, %v3846
          %v4117 = vmax.f32 %v4116, %v3854
          %v4118 = vmax.f32 %v4117, %v3862
          %v4119 = vmax.f32 %v4118, %v3870
          %v4120 = vmax.f32 %v4119, %v3878
          %v4121 = vmax.f32 %v4120, %v3886
          %v4122 = vmax.f32 %v4121, %v3894
          %v4123 = vmax.f32 %v4122, %v3902
          %v4124 = vmax.f32 %v4123, %v3910
          %v4125 = vmax.f32 %v4124, %v3918
          %v4126 = vrot.slane %v4125, 4
          %v4127 = vmax.f32 %v4125, %v4126
          %v4128 = vrot.slane %v4127, 2
          %v4129 = vmax.f32 %v4127, %v4128
          %v4130 = vrot.slane %v4129, 1
          %v4131 = vmax.f32 %v4129, %v4130
          %v4132 = vmax.f32 %v3415, %v3423
          %v4133 = vmax.f32 %v4132, %v3431
          %v4134 = vmax.f32 %v4133, %v3439
          %v4135 = vmax.f32 %v4134, %v3447
          %v4136 = vmax.f32 %v4135, %v3455
          %v4137 = vmax.f32 %v4136, %v3463
          %v4138 = vmax.f32 %v4137, %v3471
          %v4139 = vmax.f32 %v4138, %v3479
          %v4140 = vmax.f32 %v4139, %v3487
          %v4141 = vmax.f32 %v4140, %v3495
          %v4142 = vmax.f32 %v4141, %v3503
          %v4143 = vmax.f32 %v4142, %v3511
          %v4144 = vmax.f32 %v4143, %v3519
          %v4145 = vmax.f32 %v4144, %v3527
          %v4146 = vmax.f32 %v4145, %v3535
          %v4147 = vmax.f32 %v4146, %v3543
          %v4148 = vmax.f32 %v4147, %v3551
          %v4149 = vmax.f32 %v4148, %v3559
          %v4150 = vmax.f32 %v4149, %v3567
          %v4151 = vmax.f32 %v4150, %v3575
          %v4152 = vmax.f32 %v4151, %v3583
          %v4153 = vmax.f32 %v4152, %v3591
          %v4154 = vmax.f32 %v4153, %v3599
          %v4155 = vmax.f32 %v4154, %v3607
          %v4156 = vmax.f32 %v4155, %v3615
          %v4157 = vmax.f32 %v4156, %v3623
          %v4158 = vmax.f32 %v4157, %v3631
          %v4159 = vmax.f32 %v4158, %v3639
          %v4160 = vmax.f32 %v4159, %v3647
          %v4161 = vmax.f32 %v4160, %v3655
          %v4162 = vmax.f32 %v4161, %v3663
          %v4163 = vmax.f32 %v4162, %v3671
          %v4164 = vmax.f32 %v4163, %v3679
          %v4165 = vmax.f32 %v4164, %v3687
          %v4166 = vmax.f32 %v4165, %v3695
          %v4167 = vmax.f32 %v4166, %v3703
          %v4168 = vmax.f32 %v4167, %v3711
          %v4169 = vmax.f32 %v4168, %v3719
          %v4170 = vmax.f32 %v4169, %v3727
          %v4171 = vmax.f32 %v4170, %v3735
          %v4172 = vmax.f32 %v4171, %v3743
          %v4173 = vmax.f32 %v4172, %v3751
          %v4174 = vmax.f32 %v4173, %v3759
          %v4175 = vmax.f32 %v4174, %v3767
          %v4176 = vmax.f32 %v4175, %v3775
          %v4177 = vmax.f32 %v4176, %v3783
          %v4178 = vmax.f32 %v4177, %v3791
          %v4179 = vmax.f32 %v4178, %v3799
          %v4180 = vmax.f32 %v4179, %v3807
          %v4181 = vmax.f32 %v4180, %v3815
          %v4182 = vmax.f32 %v4181, %v3823
          %v4183 = vmax.f32 %v4182, %v3831
          %v4184 = vmax.f32 %v4183, %v3839
          %v4185 = vmax.f32 %v4184, %v3847
          %v4186 = vmax.f32 %v4185, %v3855
          %v4187 = vmax.f32 %v4186, %v3863
          %v4188 = vmax.f32 %v4187, %v3871
          %v4189 = vmax.f32 %v4188, %v3879
          %v4190 = vmax.f32 %v4189, %v3887
          %v4191 = vmax.f32 %v4190, %v3895
          %v4192 = vmax.f32 %v4191, %v3903
          %v4193 = vmax.f32 %v4192, %v3911
          %v4194 = vmax.f32 %v4193, %v3919
          %v4195 = vrot.slane %v4194, 4
          %v4196 = vmax.f32 %v4194, %v4195
          %v4197 = vrot.slane %v4196, 2
          %v4198 = vmax.f32 %v4196, %v4197
          %v4199 = vrot.slane %v4198, 1
          %v4200 = vmax.f32 %v4198, %v4199
          %v4201 = vmax.f32 %v3416, %v3424
          %v4202 = vmax.f32 %v4201, %v3432
          %v4203 = vmax.f32 %v4202, %v3440
          %v4204 = vmax.f32 %v4203, %v3448
          %v4205 = vmax.f32 %v4204, %v3456
          %v4206 = vmax.f32 %v4205, %v3464
          %v4207 = vmax.f32 %v4206, %v3472
          %v4208 = vmax.f32 %v4207, %v3480
          %v4209 = vmax.f32 %v4208, %v3488
          %v4210 = vmax.f32 %v4209, %v3496
          %v4211 = vmax.f32 %v4210, %v3504
          %v4212 = vmax.f32 %v4211, %v3512
          %v4213 = vmax.f32 %v4212, %v3520
          %v4214 = vmax.f32 %v4213, %v3528
          %v4215 = vmax.f32 %v4214, %v3536
          %v4216 = vmax.f32 %v4215, %v3544
          %v4217 = vmax.f32 %v4216, %v3552
          %v4218 = vmax.f32 %v4217, %v3560
          %v4219 = vmax.f32 %v4218, %v3568
          %v4220 = vmax.f32 %v4219, %v3576
          %v4221 = vmax.f32 %v4220, %v3584
          %v4222 = vmax.f32 %v4221, %v3592
          %v4223 = vmax.f32 %v4222, %v3600
          %v4224 = vmax.f32 %v4223, %v3608
          %v4225 = vmax.f32 %v4224, %v3616
          %v4226 = vmax.f32 %v4225, %v3624
          %v4227 = vmax.f32 %v4226, %v3632
          %v4228 = vmax.f32 %v4227, %v3640
          %v4229 = vmax.f32 %v4228, %v3648
          %v4230 = vmax.f32 %v4229, %v3656
          %v4231 = vmax.f32 %v4230, %v3664
          %v4232 = vmax.f32 %v4231, %v3672
          %v4233 = vmax.f32 %v4232, %v3680
          %v4234 = vmax.f32 %v4233, %v3688
          %v4235 = vmax.f32 %v4234, %v3696
          %v4236 = vmax.f32 %v4235, %v3704
          %v4237 = vmax.f32 %v4236, %v3712
          %v4238 = vmax.f32 %v4237, %v3720
          %v4239 = vmax.f32 %v4238, %v3728
          %v4240 = vmax.f32 %v4239, %v3736
          %v4241 = vmax.f32 %v4240, %v3744
          %v4242 = vmax.f32 %v4241, %v3752
          %v4243 = vmax.f32 %v4242, %v3760
          %v4244 = vmax.f32 %v4243, %v3768
          %v4245 = vmax.f32 %v4244, %v3776
          %v4246 = vmax.f32 %v4245, %v3784
          %v4247 = vmax.f32 %v4246, %v3792
          %v4248 = vmax.f32 %v4247, %v3800
          %v4249 = vmax.f32 %v4248, %v3808
          %v4250 = vmax.f32 %v4249, %v3816
          %v4251 = vmax.f32 %v4250, %v3824
          %v4252 = vmax.f32 %v4251, %v3832
          %v4253 = vmax.f32 %v4252, %v3840
          %v4254 = vmax.f32 %v4253, %v3848
          %v4255 = vmax.f32 %v4254, %v3856
          %v4256 = vmax.f32 %v4255, %v3864
          %v4257 = vmax.f32 %v4256, %v3872
          %v4258 = vmax.f32 %v4257, %v3880
          %v4259 = vmax.f32 %v4258, %v3888
          %v4260 = vmax.f32 %v4259, %v3896
          %v4261 = vmax.f32 %v4260, %v3904
          %v4262 = vmax.f32 %v4261, %v3912
          %v4263 = vmax.f32 %v4262, %v3920
          %v4264 = vrot.slane %v4263, 4
          %v4265 = vmax.f32 %v4263, %v4264
          %v4266 = vrot.slane %v4265, 2
          %v4267 = vmax.f32 %v4265, %v4266
          %v4268 = vrot.slane %v4267, 1
          %v4269 = vmax.f32 %v4267, %v4268
          %v4270 = vmax.f32 %v3417, %v3425
          %v4271 = vmax.f32 %v4270, %v3433
          %v4272 = vmax.f32 %v4271, %v3441
          %v4273 = vmax.f32 %v4272, %v3449
          %v4274 = vmax.f32 %v4273, %v3457
          %v4275 = vmax.f32 %v4274, %v3465
          %v4276 = vmax.f32 %v4275, %v3473
          %v4277 = vmax.f32 %v4276, %v3481
          %v4278 = vmax.f32 %v4277, %v3489
          %v4279 = vmax.f32 %v4278, %v3497
          %v4280 = vmax.f32 %v4279, %v3505
          %v4281 = vmax.f32 %v4280, %v3513
          %v4282 = vmax.f32 %v4281, %v3521
          %v4283 = vmax.f32 %v4282, %v3529
          %v4284 = vmax.f32 %v4283, %v3537
          %v4285 = vmax.f32 %v4284, %v3545
          %v4286 = vmax.f32 %v4285, %v3553
          %v4287 = vmax.f32 %v4286, %v3561
          %v4288 = vmax.f32 %v4287, %v3569
          %v4289 = vmax.f32 %v4288, %v3577
          %v4290 = vmax.f32 %v4289, %v3585
          %v4291 = vmax.f32 %v4290, %v3593
          %v4292 = vmax.f32 %v4291, %v3601
          %v4293 = vmax.f32 %v4292, %v3609
          %v4294 = vmax.f32 %v4293, %v3617
          %v4295 = vmax.f32 %v4294, %v3625
          %v4296 = vmax.f32 %v4295, %v3633
          %v4297 = vmax.f32 %v4296, %v3641
          %v4298 = vmax.f32 %v4297, %v3649
          %v4299 = vmax.f32 %v4298, %v3657
          %v4300 = vmax.f32 %v4299, %v3665
          %v4301 = vmax.f32 %v4300, %v3673
          %v4302 = vmax.f32 %v4301, %v3681
          %v4303 = vmax.f32 %v4302, %v3689
          %v4304 = vmax.f32 %v4303, %v3697
          %v4305 = vmax.f32 %v4304, %v3705
          %v4306 = vmax.f32 %v4305, %v3713
          %v4307 = vmax.f32 %v4306, %v3721
          %v4308 = vmax.f32 %v4307, %v3729
          %v4309 = vmax.f32 %v4308, %v3737
          %v4310 = vmax.f32 %v4309, %v3745
          %v4311 = vmax.f32 %v4310, %v3753
          %v4312 = vmax.f32 %v4311, %v3761
          %v4313 = vmax.f32 %v4312, %v3769
          %v4314 = vmax.f32 %v4313, %v3777
          %v4315 = vmax.f32 %v4314, %v3785
          %v4316 = vmax.f32 %v4315, %v3793
          %v4317 = vmax.f32 %v4316, %v3801
          %v4318 = vmax.f32 %v4317, %v3809
          %v4319 = vmax.f32 %v4318, %v3817
          %v4320 = vmax.f32 %v4319, %v3825
          %v4321 = vmax.f32 %v4320, %v3833
          %v4322 = vmax.f32 %v4321, %v3841
          %v4323 = vmax.f32 %v4322, %v3849
          %v4324 = vmax.f32 %v4323, %v3857
          %v4325 = vmax.f32 %v4324, %v3865
          %v4326 = vmax.f32 %v4325, %v3873
          %v4327 = vmax.f32 %v4326, %v3881
          %v4328 = vmax.f32 %v4327, %v3889
          %v4329 = vmax.f32 %v4328, %v3897
          %v4330 = vmax.f32 %v4329, %v3905
          %v4331 = vmax.f32 %v4330, %v3913
          %v4332 = vmax.f32 %v4331, %v3921
          %v4333 = vrot.slane %v4332, 4
          %v4334 = vmax.f32 %v4332, %v4333
          %v4335 = vrot.slane %v4334, 2
          %v4336 = vmax.f32 %v4334, %v4335
          %v4337 = vrot.slane %v4336, 1
          %v4338 = vmax.f32 %v4336, %v4337
          %v4339 = vmax.f32 %v3418, %v3426
          %v4340 = vmax.f32 %v4339, %v3434
          %v4341 = vmax.f32 %v4340, %v3442
          %v4342 = vmax.f32 %v4341, %v3450
          %v4343 = vmax.f32 %v4342, %v3458
          %v4344 = vmax.f32 %v4343, %v3466
          %v4345 = vmax.f32 %v4344, %v3474
          %v4346 = vmax.f32 %v4345, %v3482
          %v4347 = vmax.f32 %v4346, %v3490
          %v4348 = vmax.f32 %v4347, %v3498
          %v4349 = vmax.f32 %v4348, %v3506
          %v4350 = vmax.f32 %v4349, %v3514
          %v4351 = vmax.f32 %v4350, %v3522
          %v4352 = vmax.f32 %v4351, %v3530
          %v4353 = vmax.f32 %v4352, %v3538
          %v4354 = vmax.f32 %v4353, %v3546
          %v4355 = vmax.f32 %v4354, %v3554
          %v4356 = vmax.f32 %v4355, %v3562
          %v4357 = vmax.f32 %v4356, %v3570
          %v4358 = vmax.f32 %v4357, %v3578
          %v4359 = vmax.f32 %v4358, %v3586
          %v4360 = vmax.f32 %v4359, %v3594
          %v4361 = vmax.f32 %v4360, %v3602
          %v4362 = vmax.f32 %v4361, %v3610
          %v4363 = vmax.f32 %v4362, %v3618
          %v4364 = vmax.f32 %v4363, %v3626
          %v4365 = vmax.f32 %v4364, %v3634
          %v4366 = vmax.f32 %v4365, %v3642
          %v4367 = vmax.f32 %v4366, %v3650
          %v4368 = vmax.f32 %v4367, %v3658
          %v4369 = vmax.f32 %v4368, %v3666
          %v4370 = vmax.f32 %v4369, %v3674
          %v4371 = vmax.f32 %v4370, %v3682
          %v4372 = vmax.f32 %v4371, %v3690
          %v4373 = vmax.f32 %v4372, %v3698
          %v4374 = vmax.f32 %v4373, %v3706
          %v4375 = vmax.f32 %v4374, %v3714
          %v4376 = vmax.f32 %v4375, %v3722
          %v4377 = vmax.f32 %v4376, %v3730
          %v4378 = vmax.f32 %v4377, %v3738
          %v4379 = vmax.f32 %v4378, %v3746
          %v4380 = vmax.f32 %v4379, %v3754
          %v4381 = vmax.f32 %v4380, %v3762
          %v4382 = vmax.f32 %v4381, %v3770
          %v4383 = vmax.f32 %v4382, %v3778
          %v4384 = vmax.f32 %v4383, %v3786
          %v4385 = vmax.f32 %v4384, %v3794
          %v4386 = vmax.f32 %v4385, %v3802
          %v4387 = vmax.f32 %v4386, %v3810
          %v4388 = vmax.f32 %v4387, %v3818
          %v4389 = vmax.f32 %v4388, %v3826
          %v4390 = vmax.f32 %v4389, %v3834
          %v4391 = vmax.f32 %v4390, %v3842
          %v4392 = vmax.f32 %v4391, %v3850
          %v4393 = vmax.f32 %v4392, %v3858
          %v4394 = vmax.f32 %v4393, %v3866
          %v4395 = vmax.f32 %v4394, %v3874
          %v4396 = vmax.f32 %v4395, %v3882
          %v4397 = vmax.f32 %v4396, %v3890
          %v4398 = vmax.f32 %v4397, %v3898
          %v4399 = vmax.f32 %v4398, %v3906
          %v4400 = vmax.f32 %v4399, %v3914
          %v4401 = vmax.f32 %v4400, %v3922
          %v4402 = vrot.slane %v4401, 4
          %v4403 = vmax.f32 %v4401, %v4402
          %v4404 = vrot.slane %v4403, 2
          %v4405 = vmax.f32 %v4403, %v4404
          %v4406 = vrot.slane %v4405, 1
          %v4407 = vmax.f32 %v4405, %v4406
          %v4408 = vmax.f32 %v3419, %v3427
          %v4409 = vmax.f32 %v4408, %v3435
          %v4410 = vmax.f32 %v4409, %v3443
          %v4411 = vmax.f32 %v4410, %v3451
          %v4412 = vmax.f32 %v4411, %v3459
          %v4413 = vmax.f32 %v4412, %v3467
          %v4414 = vmax.f32 %v4413, %v3475
          %v4415 = vmax.f32 %v4414, %v3483
          %v4416 = vmax.f32 %v4415, %v3491
          %v4417 = vmax.f32 %v4416, %v3499
          %v4418 = vmax.f32 %v4417, %v3507
          %v4419 = vmax.f32 %v4418, %v3515
          %v4420 = vmax.f32 %v4419, %v3523
          %v4421 = vmax.f32 %v4420, %v3531
          %v4422 = vmax.f32 %v4421, %v3539
          %v4423 = vmax.f32 %v4422, %v3547
          %v4424 = vmax.f32 %v4423, %v3555
          %v4425 = vmax.f32 %v4424, %v3563
          %v4426 = vmax.f32 %v4425, %v3571
          %v4427 = vmax.f32 %v4426, %v3579
          %v4428 = vmax.f32 %v4427, %v3587
          %v4429 = vmax.f32 %v4428, %v3595
          %v4430 = vmax.f32 %v4429, %v3603
          %v4431 = vmax.f32 %v4430, %v3611
          %v4432 = vmax.f32 %v4431, %v3619
          %v4433 = vmax.f32 %v4432, %v3627
          %v4434 = vmax.f32 %v4433, %v3635
          %v4435 = vmax.f32 %v4434, %v3643
          %v4436 = vmax.f32 %v4435, %v3651
          %v4437 = vmax.f32 %v4436, %v3659
          %v4438 = vmax.f32 %v4437, %v3667
          %v4439 = vmax.f32 %v4438, %v3675
          %v4440 = vmax.f32 %v4439, %v3683
          %v4441 = vmax.f32 %v4440, %v3691
          %v4442 = vmax.f32 %v4441, %v3699
          %v4443 = vmax.f32 %v4442, %v3707
          %v4444 = vmax.f32 %v4443, %v3715
          %v4445 = vmax.f32 %v4444, %v3723
          %v4446 = vmax.f32 %v4445, %v3731
          %v4447 = vmax.f32 %v4446, %v3739
          %v4448 = vmax.f32 %v4447, %v3747
          %v4449 = vmax.f32 %v4448, %v3755
          %v4450 = vmax.f32 %v4449, %v3763
          %v4451 = vmax.f32 %v4450, %v3771
          %v4452 = vmax.f32 %v4451, %v3779
          %v4453 = vmax.f32 %v4452, %v3787
          %v4454 = vmax.f32 %v4453, %v3795
          %v4455 = vmax.f32 %v4454, %v3803
          %v4456 = vmax.f32 %v4455, %v3811
          %v4457 = vmax.f32 %v4456, %v3819
          %v4458 = vmax.f32 %v4457, %v3827
          %v4459 = vmax.f32 %v4458, %v3835
          %v4460 = vmax.f32 %v4459, %v3843
          %v4461 = vmax.f32 %v4460, %v3851
          %v4462 = vmax.f32 %v4461, %v3859
          %v4463 = vmax.f32 %v4462, %v3867
          %v4464 = vmax.f32 %v4463, %v3875
          %v4465 = vmax.f32 %v4464, %v3883
          %v4466 = vmax.f32 %v4465, %v3891
          %v4467 = vmax.f32 %v4466, %v3899
          %v4468 = vmax.f32 %v4467, %v3907
          %v4469 = vmax.f32 %v4468, %v3915
          %v4470 = vmax.f32 %v4469, %v3923
          %v4471 = vrot.slane %v4470, 4
          %v4472 = vmax.f32 %v4470, %v4471
          %v4473 = vrot.slane %v4472, 2
          %v4474 = vmax.f32 %v4472, %v4473
          %v4475 = vrot.slane %v4474, 1
          %v4476 = vmax.f32 %v4474, %v4475
          %v4485 = vcombine.low %v3993, %v4062
          %v4486 = vcombine.low %v4131, %v4200
          %v4487 = vcombine.low %v4269, %v4338
          %v4488 = vcombine.low %v4407, %v4476
          %v4490 = vunpack.c.l.s4 1966171168
          %v4491 = vunpack.c.0.s8 %v4490
          %v4492 = vlaneseq
          %v4493 = vshrl.u32 %v4492, 7
          %v4494 = vsub.s32 %v4491, %v4493
          %v4495 = vrot.slane %v4485, %v4494
          %v4497 = vunpack.c.l.s4 1966171168
          %v4498 = vunpack.c.0.s8 %v4497
          %v4499 = vlaneseq
          %v4500 = vshrl.u32 %v4499, 7
          %v4501 = vsub.s32 %v4498, %v4500
          %v4502 = vrot.slane %v4486, %v4501
          %v4504 = vunpack.c.l.s4 1966171168
          %v4505 = vunpack.c.0.s8 %v4504
          %v4506 = vlaneseq
          %v4507 = vshrl.u32 %v4506, 7
          %v4508 = vsub.s32 %v4505, %v4507
          %v4509 = vrot.slane %v4487, %v4508
          %v4511 = vunpack.c.l.s4 1966171168
          %v4512 = vunpack.c.0.s8 %v4511
          %v4513 = vlaneseq
          %v4514 = vshrl.u32 %v4513, 7
          %v4515 = vsub.s32 %v4512, %v4514
          %v4516 = vrot.slane %v4488, %v4515
          %v4517 = vcombine.low %v4495, %v4502
          %v4518 = vcombine.low %v4509, %v4516
          %v4520 = vunpack.c.l.s4 1966171168
          %v4521 = vunpack.c.0.s8 %v4520
          %v4522 = vlaneseq
          %v4523 = vshrl.u32 %v4522, 7
          %v4524 = vsub.s32 %v4521, %v4523
          %v4525 = vrot.slane %v4517, %v4524
          %v4527 = vunpack.c.l.s4 1966171168
          %v4528 = vunpack.c.0.s8 %v4527
          %v4529 = vlaneseq
          %v4530 = vshrl.u32 %v4529, 7
          %v4531 = vsub.s32 %v4528, %v4530
          %v4532 = vrot.slane %v4518, %v4531
          %v4533 = vcombine.low %v4525, %v4532
          %v4535 = vmax.f32 %v3924, %v4533
          %4536 = vst [vmem:[%s281] sm:$0xff] %v4535
        $region52: #{tpu_custom_call.1} parent=43 // pred_fallthru
          _
        %p4537 = scmp.le.s32.totalorder %s3212, 300
        // Predicated region
        $region53: #{tpu_custom_call.1} parent=43 // pred_check
          %p4538 = pneg %p4537
        $region54: #{tpu_custom_call.1} parent=43 // pred_check_branch
          %4540 = sbr.rel (%p4538) target = $region56
        $region55: #{tpu_custom_call.1} parent=43 // pred_region
          %v4541 = vld [vmem:[%s281] sm:$0xff]
          %v4542 = vmax.f32 %v1833, %v1837
          %v4543 = vmax.f32 %v4542, %v1843
          %v4544 = vmax.f32 %v4543, %v1847
          %v4545 = vmax.f32 %v4544, %v1853
          %v4546 = vmax.f32 %v4545, %v1857
          %v4547 = vmax.f32 %v4546, %v1863
          %v4548 = vmax.f32 %v4547, %v1867
          %v4549 = vmax.f32 %v4548, %v1873
          %v4550 = vmax.f32 %v4549, %v1877
          %v4551 = vmax.f32 %v4550, %v1883
          %v4552 = vmax.f32 %v4551, %v1887
          %v4553 = vmax.f32 %v4552, %v1893
          %v4554 = vmax.f32 %v4553, %v1897
          %v4555 = vmax.f32 %v4554, %v1903
          %v4556 = vmax.f32 %v4555, %v1907
          %v4557 = vmax.f32 %v4556, %v1913
          %v4558 = vmax.f32 %v4557, %v1917
          %v4559 = vmax.f32 %v4558, %v1923
          %v4560 = vmax.f32 %v4559, %v1927
          %v4561 = vmax.f32 %v4560, %v1933
          %v4562 = vmax.f32 %v4561, %v1937
          %v4563 = vmax.f32 %v4562, %v1943
          %v4564 = vmax.f32 %v4563, %v1947
          %v4565 = vmax.f32 %v4564, %v1953
          %v4566 = vmax.f32 %v4565, %v1957
          %v4567 = vmax.f32 %v4566, %v1963
          %v4568 = vmax.f32 %v4567, %v1967
          %v4569 = vmax.f32 %v4568, %v1973
          %v4570 = vmax.f32 %v4569, %v1977
          %v4571 = vmax.f32 %v4570, %v1983
          %v4572 = vmax.f32 %v4571, %v1987
          %v4573 = vmax.f32 %v4572, %v1993
          %v4574 = vmax.f32 %v4573, %v1997
          %v4575 = vmax.f32 %v4574, %v2003
          %v4576 = vmax.f32 %v4575, %v2007
          %v4577 = vmax.f32 %v4576, %v2013
          %v4578 = vmax.f32 %v4577, %v2017
          %v4579 = vmax.f32 %v4578, %v2023
          %v4580 = vmax.f32 %v4579, %v2027
          %v4581 = vmax.f32 %v4580, %v2033
          %v4582 = vmax.f32 %v4581, %v2037
          %v4583 = vmax.f32 %v4582, %v2043
          %v4584 = vmax.f32 %v4583, %v2047
          %v4585 = vmax.f32 %v4584, %v2053
          %v4586 = vmax.f32 %v4585, %v2057
          %v4587 = vmax.f32 %v4586, %v2063
          %v4588 = vmax.f32 %v4587, %v2067
          %v4589 = vmax.f32 %v4588, %v2073
          %v4590 = vmax.f32 %v4589, %v2077
          %v4591 = vmax.f32 %v4590, %v2083
          %v4592 = vmax.f32 %v4591, %v2087
          %v4593 = vmax.f32 %v4592, %v2093
          %v4594 = vmax.f32 %v4593, %v2097
          %v4595 = vmax.f32 %v4594, %v2103
          %v4596 = vmax.f32 %v4595, %v2107
          %v4597 = vmax.f32 %v4596, %v2113
          %v4598 = vmax.f32 %v4597, %v2117
          %v4599 = vmax.f32 %v4598, %v2123
          %v4600 = vmax.f32 %v4599, %v2127
          %v4601 = vmax.f32 %v4600, %v2133
          %v4602 = vmax.f32 %v4601, %v2137
          %v4603 = vmax.f32 %v4602, %v2143
          %v4604 = vmax.f32 %v4603, %v2147
          %v4605 = vrot.slane %v4604, 4
          %v4606 = vmax.f32 %v4604, %v4605
          %v4607 = vrot.slane %v4606, 2
          %v4608 = vmax.f32 %v4606, %v4607
          %v4609 = vrot.slane %v4608, 1
          %v4610 = vmax.f32 %v4608, %v4609
          %v4611 = vmax.f32 %v1835, %v1839
          %v4612 = vmax.f32 %v4611, %v1845
          %v4613 = vmax.f32 %v4612, %v1849
          %v4614 = vmax.f32 %v4613, %v1855
          %v4615 = vmax.f32 %v4614, %v1859
          %v4616 = vmax.f32 %v4615, %v1865
          %v4617 = vmax.f32 %v4616, %v1869
          %v4618 = vmax.f32 %v4617, %v1875
          %v4619 = vmax.f32 %v4618, %v1879
          %v4620 = vmax.f32 %v4619, %v1885
          %v4621 = vmax.f32 %v4620, %v1889
          %v4622 = vmax.f32 %v4621, %v1895
          %v4623 = vmax.f32 %v4622, %v1899
          %v4624 = vmax.f32 %v4623, %v1905
          %v4625 = vmax.f32 %v4624, %v1909
          %v4626 = vmax.f32 %v4625, %v1915
          %v4627 = vmax.f32 %v4626, %v1919
          %v4628 = vmax.f32 %v4627, %v1925
          %v4629 = vmax.f32 %v4628, %v1929
          %v4630 = vmax.f32 %v4629, %v1935
          %v4631 = vmax.f32 %v4630, %v1939
          %v4632 = vmax.f32 %v4631, %v1945
          %v4633 = vmax.f32 %v4632, %v1949
          %v4634 = vmax.f32 %v4633, %v1955
          %v4635 = vmax.f32 %v4634, %v1959
          %v4636 = vmax.f32 %v4635, %v1965
          %v4637 = vmax.f32 %v4636, %v1969
          %v4638 = vmax.f32 %v4637, %v1975
          %v4639 = vmax.f32 %v4638, %v1979
          %v4640 = vmax.f32 %v4639, %v1985
          %v4641 = vmax.f32 %v4640, %v1989
          %v4642 = vmax.f32 %v4641, %v1995
          %v4643 = vmax.f32 %v4642, %v1999
          %v4644 = vmax.f32 %v4643, %v2005
          %v4645 = vmax.f32 %v4644, %v2009
          %v4646 = vmax.f32 %v4645, %v2015
          %v4647 = vmax.f32 %v4646, %v2019
          %v4648 = vmax.f32 %v4647, %v2025
          %v4649 = vmax.f32 %v4648, %v2029
          %v4650 = vmax.f32 %v4649, %v2035
          %v4651 = vmax.f32 %v4650, %v2039
          %v4652 = vmax.f32 %v4651, %v2045
          %v4653 = vmax.f32 %v4652, %v2049
          %v4654 = vmax.f32 %v4653, %v2055
          %v4655 = vmax.f32 %v4654, %v2059
          %v4656 = vmax.f32 %v4655, %v2065
          %v4657 = vmax.f32 %v4656, %v2069
          %v4658 = vmax.f32 %v4657, %v2075
          %v4659 = vmax.f32 %v4658, %v2079
          %v4660 = vmax.f32 %v4659, %v2085
          %v4661 = vmax.f32 %v4660, %v2089
          %v4662 = vmax.f32 %v4661, %v2095
          %v4663 = vmax.f32 %v4662, %v2099
          %v4664 = vmax.f32 %v4663, %v2105
          %v4665 = vmax.f32 %v4664, %v2109
          %v4666 = vmax.f32 %v4665, %v2115
          %v4667 = vmax.f32 %v4666, %v2119
          %v4668 = vmax.f32 %v4667, %v2125
          %v4669 = vmax.f32 %v4668, %v2129
          %v4670 = vmax.f32 %v4669, %v2135
          %v4671 = vmax.f32 %v4670, %v2139
          %v4672 = vmax.f32 %v4671, %v2145
          %v4673 = vmax.f32 %v4672, %v2149
          %v4674 = vrot.slane %v4673, 4
          %v4675 = vmax.f32 %v4673, %v4674
          %v4676 = vrot.slane %v4675, 2
          %v4677 = vmax.f32 %v4675, %v4676
          %v4678 = vrot.slane %v4677, 1
          %v4679 = vmax.f32 %v4677, %v4678
          %v4680 = vmax.f32 %v2186, %v2190
          %v4681 = vmax.f32 %v4680, %v2196
          %v4682 = vmax.f32 %v4681, %v2200
          %v4683 = vmax.f32 %v4682, %v2206
          %v4684 = vmax.f32 %v4683, %v2210
          %v4685 = vmax.f32 %v4684, %v2216
          %v4686 = vmax.f32 %v4685, %v2220
          %v4687 = vmax.f32 %v4686, %v2226
          %v4688 = vmax.f32 %v4687, %v2230
          %v4689 = vmax.f32 %v4688, %v2236
          %v4690 = vmax.f32 %v4689, %v2240
          %v4691 = vmax.f32 %v4690, %v2246
          %v4692 = vmax.f32 %v4691, %v2250
          %v4693 = vmax.f32 %v4692, %v2256
          %v4694 = vmax.f32 %v4693, %v2260
          %v4695 = vmax.f32 %v4694, %v2266
          %v4696 = vmax.f32 %v4695, %v2270
          %v4697 = vmax.f32 %v4696, %v2276
          %v4698 = vmax.f32 %v4697, %v2280
          %v4699 = vmax.f32 %v4698, %v2286
          %v4700 = vmax.f32 %v4699, %v2290
          %v4701 = vmax.f32 %v4700, %v2296
          %v4702 = vmax.f32 %v4701, %v2300
          %v4703 = vmax.f32 %v4702, %v2306
          %v4704 = vmax.f32 %v4703, %v2310
          %v4705 = vmax.f32 %v4704, %v2316
          %v4706 = vmax.f32 %v4705, %v2320
          %v4707 = vmax.f32 %v4706, %v2326
          %v4708 = vmax.f32 %v4707, %v2330
          %v4709 = vmax.f32 %v4708, %v2336
          %v4710 = vmax.f32 %v4709, %v2340
          %v4711 = vmax.f32 %v4710, %v2346
          %v4712 = vmax.f32 %v4711, %v2350
          %v4713 = vmax.f32 %v4712, %v2356
          %v4714 = vmax.f32 %v4713, %v2360
          %v4715 = vmax.f32 %v4714, %v2366
          %v4716 = vmax.f32 %v4715, %v2370
          %v4717 = vmax.f32 %v4716, %v2376
          %v4718 = vmax.f32 %v4717, %v2380
          %v4719 = vmax.f32 %v4718, %v2386
          %v4720 = vmax.f32 %v4719, %v2390
          %v4721 = vmax.f32 %v4720, %v2396
          %v4722 = vmax.f32 %v4721, %v2400
          %v4723 = vmax.f32 %v4722, %v2406
          %v4724 = vmax.f32 %v4723, %v2410
          %v4725 = vmax.f32 %v4724, %v2416
          %v4726 = vmax.f32 %v4725, %v2420
          %v4727 = vmax.f32 %v4726, %v2426
          %v4728 = vmax.f32 %v4727, %v2430
          %v4729 = vmax.f32 %v4728, %v2436
          %v4730 = vmax.f32 %v4729, %v2440
          %v4731 = vmax.f32 %v4730, %v2446
          %v4732 = vmax.f32 %v4731, %v2450
          %v4733 = vmax.f32 %v4732, %v2456
          %v4734 = vmax.f32 %v4733, %v2460
          %v4735 = vmax.f32 %v4734, %v2466
          %v4736 = vmax.f32 %v4735, %v2470
          %v4737 = vmax.f32 %v4736, %v2476
          %v4738 = vmax.f32 %v4737, %v2480
          %v4739 = vmax.f32 %v4738, %v2486
          %v4740 = vmax.f32 %v4739, %v2490
          %v4741 = vmax.f32 %v4740, %v2496
          %v4742 = vmax.f32 %v4741, %v2500
          %v4743 = vrot.slane %v4742, 4
          %v4744 = vmax.f32 %v4742, %v4743
          %v4745 = vrot.slane %v4744, 2
          %v4746 = vmax.f32 %v4744, %v4745
          %v4747 = vrot.slane %v4746, 1
          %v4748 = vmax.f32 %v4746, %v4747
          %v4749 = vmax.f32 %v2188, %v2192
          %v4750 = vmax.f32 %v4749, %v2198
          %v4751 = vmax.f32 %v4750, %v2202
          %v4752 = vmax.f32 %v4751, %v2208
          %v4753 = vmax.f32 %v4752, %v2212
          %v4754 = vmax.f32 %v4753, %v2218
          %v4755 = vmax.f32 %v4754, %v2222
          %v4756 = vmax.f32 %v4755, %v2228
          %v4757 = vmax.f32 %v4756, %v2232
          %v4758 = vmax.f32 %v4757, %v2238
          %v4759 = vmax.f32 %v4758, %v2242
          %v4760 = vmax.f32 %v4759, %v2248
          %v4761 = vmax.f32 %v4760, %v2252
          %v4762 = vmax.f32 %v4761, %v2258
          %v4763 = vmax.f32 %v4762, %v2262
          %v4764 = vmax.f32 %v4763, %v2268
          %v4765 = vmax.f32 %v4764, %v2272
          %v4766 = vmax.f32 %v4765, %v2278
          %v4767 = vmax.f32 %v4766, %v2282
          %v4768 = vmax.f32 %v4767, %v2288
          %v4769 = vmax.f32 %v4768, %v2292
          %v4770 = vmax.f32 %v4769, %v2298
          %v4771 = vmax.f32 %v4770, %v2302
          %v4772 = vmax.f32 %v4771, %v2308
          %v4773 = vmax.f32 %v4772, %v2312
          %v4774 = vmax.f32 %v4773, %v2318
          %v4775 = vmax.f32 %v4774, %v2322
          %v4776 = vmax.f32 %v4775, %v2328
          %v4777 = vmax.f32 %v4776, %v2332
          %v4778 = vmax.f32 %v4777, %v2338
          %v4779 = vmax.f32 %v4778, %v2342
          %v4780 = vmax.f32 %v4779, %v2348
          %v4781 = vmax.f32 %v4780, %v2352
          %v4782 = vmax.f32 %v4781, %v2358
          %v4783 = vmax.f32 %v4782, %v2362
          %v4784 = vmax.f32 %v4783, %v2368
          %v4785 = vmax.f32 %v4784, %v2372
          %v4786 = vmax.f32 %v4785, %v2378
          %v4787 = vmax.f32 %v4786, %v2382
          %v4788 = vmax.f32 %v4787, %v2388
          %v4789 = vmax.f32 %v4788, %v2392
          %v4790 = vmax.f32 %v4789, %v2398
          %v4791 = vmax.f32 %v4790, %v2402
          %v4792 = vmax.f32 %v4791, %v2408
          %v4793 = vmax.f32 %v4792, %v2412
          %v4794 = vmax.f32 %v4793, %v2418
          %v4795 = vmax.f32 %v4794, %v2422
          %v4796 = vmax.f32 %v4795, %v2428
          %v4797 = vmax.f32 %v4796, %v2432
          %v4798 = vmax.f32 %v4797, %v2438
          %v4799 = vmax.f32 %v4798, %v2442
          %v4800 = vmax.f32 %v4799, %v2448
          %v4801 = vmax.f32 %v4800, %v2452
          %v4802 = vmax.f32 %v4801, %v2458
          %v4803 = vmax.f32 %v4802, %v2462
          %v4804 = vmax.f32 %v4803, %v2468
          %v4805 = vmax.f32 %v4804, %v2472
          %v4806 = vmax.f32 %v4805, %v2478
          %v4807 = vmax.f32 %v4806, %v2482
          %v4808 = vmax.f32 %v4807, %v2488
          %v4809 = vmax.f32 %v4808, %v2492
          %v4810 = vmax.f32 %v4809, %v2498
          %v4811 = vmax.f32 %v4810, %v2502
          %v4812 = vrot.slane %v4811, 4
          %v4813 = vmax.f32 %v4811, %v4812
          %v4814 = vrot.slane %v4813, 2
          %v4815 = vmax.f32 %v4813, %v4814
          %v4816 = vrot.slane %v4815, 1
          %v4817 = vmax.f32 %v4815, %v4816
          %v4818 = vmax.f32 %v2539, %v2543
          %v4819 = vmax.f32 %v4818, %v2549
          %v4820 = vmax.f32 %v4819, %v2553
          %v4821 = vmax.f32 %v4820, %v2559
          %v4822 = vmax.f32 %v4821, %v2563
          %v4823 = vmax.f32 %v4822, %v2569
          %v4824 = vmax.f32 %v4823, %v2573
          %v4825 = vmax.f32 %v4824, %v2579
          %v4826 = vmax.f32 %v4825, %v2583
          %v4827 = vmax.f32 %v4826, %v2589
          %v4828 = vmax.f32 %v4827, %v2593
          %v4829 = vmax.f32 %v4828, %v2599
          %v4830 = vmax.f32 %v4829, %v2603
          %v4831 = vmax.f32 %v4830, %v2609
          %v4832 = vmax.f32 %v4831, %v2613
          %v4833 = vmax.f32 %v4832, %v2619
          %v4834 = vmax.f32 %v4833, %v2623
          %v4835 = vmax.f32 %v4834, %v2629
          %v4836 = vmax.f32 %v4835, %v2633
          %v4837 = vmax.f32 %v4836, %v2639
          %v4838 = vmax.f32 %v4837, %v2643
          %v4839 = vmax.f32 %v4838, %v2649
          %v4840 = vmax.f32 %v4839, %v2653
          %v4841 = vmax.f32 %v4840, %v2659
          %v4842 = vmax.f32 %v4841, %v2663
          %v4843 = vmax.f32 %v4842, %v2669
          %v4844 = vmax.f32 %v4843, %v2673
          %v4845 = vmax.f32 %v4844, %v2679
          %v4846 = vmax.f32 %v4845, %v2683
          %v4847 = vmax.f32 %v4846, %v2689
          %v4848 = vmax.f32 %v4847, %v2693
          %v4849 = vmax.f32 %v4848, %v2699
          %v4850 = vmax.f32 %v4849, %v2703
          %v4851 = vmax.f32 %v4850, %v2709
          %v4852 = vmax.f32 %v4851, %v2713
          %v4853 = vmax.f32 %v4852, %v2719
          %v4854 = vmax.f32 %v4853, %v2723
          %v4855 = vmax.f32 %v4854, %v2729
          %v4856 = vmax.f32 %v4855, %v2733
          %v4857 = vmax.f32 %v4856, %v2739
          %v4858 = vmax.f32 %v4857, %v2743
          %v4859 = vmax.f32 %v4858, %v2749
          %v4860 = vmax.f32 %v4859, %v2753
          %v4861 = vmax.f32 %v4860, %v2759
          %v4862 = vmax.f32 %v4861, %v2763
          %v4863 = vmax.f32 %v4862, %v2769
          %v4864 = vmax.f32 %v4863, %v2773
          %v4865 = vmax.f32 %v4864, %v2779
          %v4866 = vmax.f32 %v4865, %v2783
          %v4867 = vmax.f32 %v4866, %v2789
          %v4868 = vmax.f32 %v4867, %v2793
          %v4869 = vmax.f32 %v4868, %v2799
          %v4870 = vmax.f32 %v4869, %v2803
          %v4871 = vmax.f32 %v4870, %v2809
          %v4872 = vmax.f32 %v4871, %v2813
          %v4873 = vmax.f32 %v4872, %v2819
          %v4874 = vmax.f32 %v4873, %v2823
          %v4875 = vmax.f32 %v4874, %v2829
          %v4876 = vmax.f32 %v4875, %v2833
          %v4877 = vmax.f32 %v4876, %v2839
          %v4878 = vmax.f32 %v4877, %v2843
          %v4879 = vmax.f32 %v4878, %v2849
          %v4880 = vmax.f32 %v4879, %v2853
          %v4881 = vrot.slane %v4880, 4
          %v4882 = vmax.f32 %v4880, %v4881
          %v4883 = vrot.slane %v4882, 2
          %v4884 = vmax.f32 %v4882, %v4883
          %v4885 = vrot.slane %v4884, 1
          %v4886 = vmax.f32 %v4884, %v4885
          %v4887 = vmax.f32 %v2541, %v2545
          %v4888 = vmax.f32 %v4887, %v2551
          %v4889 = vmax.f32 %v4888, %v2555
          %v4890 = vmax.f32 %v4889, %v2561
          %v4891 = vmax.f32 %v4890, %v2565
          %v4892 = vmax.f32 %v4891, %v2571
          %v4893 = vmax.f32 %v4892, %v2575
          %v4894 = vmax.f32 %v4893, %v2581
          %v4895 = vmax.f32 %v4894, %v2585
          %v4896 = vmax.f32 %v4895, %v2591
          %v4897 = vmax.f32 %v4896, %v2595
          %v4898 = vmax.f32 %v4897, %v2601
          %v4899 = vmax.f32 %v4898, %v2605
          %v4900 = vmax.f32 %v4899, %v2611
          %v4901 = vmax.f32 %v4900, %v2615
          %v4902 = vmax.f32 %v4901, %v2621
          %v4903 = vmax.f32 %v4902, %v2625
          %v4904 = vmax.f32 %v4903, %v2631
          %v4905 = vmax.f32 %v4904, %v2635
          %v4906 = vmax.f32 %v4905, %v2641
          %v4907 = vmax.f32 %v4906, %v2645
          %v4908 = vmax.f32 %v4907, %v2651
          %v4909 = vmax.f32 %v4908, %v2655
          %v4910 = vmax.f32 %v4909, %v2661
          %v4911 = vmax.f32 %v4910, %v2665
          %v4912 = vmax.f32 %v4911, %v2671
          %v4913 = vmax.f32 %v4912, %v2675
          %v4914 = vmax.f32 %v4913, %v2681
          %v4915 = vmax.f32 %v4914, %v2685
          %v4916 = vmax.f32 %v4915, %v2691
          %v4917 = vmax.f32 %v4916, %v2695
          %v4918 = vmax.f32 %v4917, %v2701
          %v4919 = vmax.f32 %v4918, %v2705
          %v4920 = vmax.f32 %v4919, %v2711
          %v4921 = vmax.f32 %v4920, %v2715
          %v4922 = vmax.f32 %v4921, %v2721
          %v4923 = vmax.f32 %v4922, %v2725
          %v4924 = vmax.f32 %v4923, %v2731
          %v4925 = vmax.f32 %v4924, %v2735
          %v4926 = vmax.f32 %v4925, %v2741
          %v4927 = vmax.f32 %v4926, %v2745
          %v4928 = vmax.f32 %v4927, %v2751
          %v4929 = vmax.f32 %v4928, %v2755
          %v4930 = vmax.f32 %v4929, %v2761
          %v4931 = vmax.f32 %v4930, %v2765
          %v4932 = vmax.f32 %v4931, %v2771
          %v4933 = vmax.f32 %v4932, %v2775
          %v4934 = vmax.f32 %v4933, %v2781
          %v4935 = vmax.f32 %v4934, %v2785
          %v4936 = vmax.f32 %v4935, %v2791
          %v4937 = vmax.f32 %v4936, %v2795
          %v4938 = vmax.f32 %v4937, %v2801
          %v4939 = vmax.f32 %v4938, %v2805
          %v4940 = vmax.f32 %v4939, %v2811
          %v4941 = vmax.f32 %v4940, %v2815
          %v4942 = vmax.f32 %v4941, %v2821
          %v4943 = vmax.f32 %v4942, %v2825
          %v4944 = vmax.f32 %v4943, %v2831
          %v4945 = vmax.f32 %v4944, %v2835
          %v4946 = vmax.f32 %v4945, %v2841
          %v4947 = vmax.f32 %v4946, %v2845
          %v4948 = vmax.f32 %v4947, %v2851
          %v4949 = vmax.f32 %v4948, %v2855
          %v4950 = vrot.slane %v4949, 4
          %v4951 = vmax.f32 %v4949, %v4950
          %v4952 = vrot.slane %v4951, 2
          %v4953 = vmax.f32 %v4951, %v4952
          %v4954 = vrot.slane %v4953, 1
          %v4955 = vmax.f32 %v4953, %v4954
          %v4956 = vmax.f32 %v2892, %v2896
          %v4957 = vmax.f32 %v4956, %v2902
          %v4958 = vmax.f32 %v4957, %v2906
          %v4959 = vmax.f32 %v4958, %v2912
          %v4960 = vmax.f32 %v4959, %v2916
          %v4961 = vmax.f32 %v4960, %v2922
          %v4962 = vmax.f32 %v4961, %v2926
          %v4963 = vmax.f32 %v4962, %v2932
          %v4964 = vmax.f32 %v4963, %v2936
          %v4965 = vmax.f32 %v4964, %v2942
          %v4966 = vmax.f32 %v4965, %v2946
          %v4967 = vmax.f32 %v4966, %v2952
          %v4968 = vmax.f32 %v4967, %v2956
          %v4969 = vmax.f32 %v4968, %v2962
          %v4970 = vmax.f32 %v4969, %v2966
          %v4971 = vmax.f32 %v4970, %v2972
          %v4972 = vmax.f32 %v4971, %v2976
          %v4973 = vmax.f32 %v4972, %v2982
          %v4974 = vmax.f32 %v4973, %v2986
          %v4975 = vmax.f32 %v4974, %v2992
          %v4976 = vmax.f32 %v4975, %v2996
          %v4977 = vmax.f32 %v4976, %v3002
          %v4978 = vmax.f32 %v4977, %v3006
          %v4979 = vmax.f32 %v4978, %v3012
          %v4980 = vmax.f32 %v4979, %v3016
          %v4981 = vmax.f32 %v4980, %v3022
          %v4982 = vmax.f32 %v4981, %v3026
          %v4983 = vmax.f32 %v4982, %v3032
          %v4984 = vmax.f32 %v4983, %v3036
          %v4985 = vmax.f32 %v4984, %v3042
          %v4986 = vmax.f32 %v4985, %v3046
          %v4987 = vmax.f32 %v4986, %v3052
          %v4988 = vmax.f32 %v4987, %v3056
          %v4989 = vmax.f32 %v4988, %v3062
          %v4990 = vmax.f32 %v4989, %v3066
          %v4991 = vmax.f32 %v4990, %v3072
          %v4992 = vmax.f32 %v4991, %v3076
          %v4993 = vmax.f32 %v4992, %v3082
          %v4994 = vmax.f32 %v4993, %v3086
          %v4995 = vmax.f32 %v4994, %v3092
          %v4996 = vmax.f32 %v4995, %v3096
          %v4997 = vmax.f32 %v4996, %v3102
          %v4998 = vmax.f32 %v4997, %v3106
          %v4999 = vmax.f32 %v4998, %v3112
          %v5000 = vmax.f32 %v4999, %v3116
          %v5001 = vmax.f32 %v5000, %v3122
          %v5002 = vmax.f32 %v5001, %v3126
          %v5003 = vmax.f32 %v5002, %v3132
          %v5004 = vmax.f32 %v5003, %v3136
          %v5005 = vmax.f32 %v5004, %v3142
          %v5006 = vmax.f32 %v5005, %v3146
          %v5007 = vmax.f32 %v5006, %v3152
          %v5008 = vmax.f32 %v5007, %v3156
          %v5009 = vmax.f32 %v5008, %v3162
          %v5010 = vmax.f32 %v5009, %v3166
          %v5011 = vmax.f32 %v5010, %v3172
          %v5012 = vmax.f32 %v5011, %v3176
          %v5013 = vmax.f32 %v5012, %v3182
          %v5014 = vmax.f32 %v5013, %v3186
          %v5015 = vmax.f32 %v5014, %v3192
          %v5016 = vmax.f32 %v5015, %v3196
          %v5017 = vmax.f32 %v5016, %v3202
          %v5018 = vmax.f32 %v5017, %v3206
          %v5019 = vrot.slane %v5018, 4
          %v5020 = vmax.f32 %v5018, %v5019
          %v5021 = vrot.slane %v5020, 2
          %v5022 = vmax.f32 %v5020, %v5021
          %v5023 = vrot.slane %v5022, 1
          %v5024 = vmax.f32 %v5022, %v5023
          %v5025 = vmax.f32 %v2894, %v2898
          %v5026 = vmax.f32 %v5025, %v2904
          %v5027 = vmax.f32 %v5026, %v2908
          %v5028 = vmax.f32 %v5027, %v2914
          %v5029 = vmax.f32 %v5028, %v2918
          %v5030 = vmax.f32 %v5029, %v2924
          %v5031 = vmax.f32 %v5030, %v2928
          %v5032 = vmax.f32 %v5031, %v2934
          %v5033 = vmax.f32 %v5032, %v2938
          %v5034 = vmax.f32 %v5033, %v2944
          %v5035 = vmax.f32 %v5034, %v2948
          %v5036 = vmax.f32 %v5035, %v2954
          %v5037 = vmax.f32 %v5036, %v2958
          %v5038 = vmax.f32 %v5037, %v2964
          %v5039 = vmax.f32 %v5038, %v2968
          %v5040 = vmax.f32 %v5039, %v2974
          %v5041 = vmax.f32 %v5040, %v2978
          %v5042 = vmax.f32 %v5041, %v2984
          %v5043 = vmax.f32 %v5042, %v2988
          %v5044 = vmax.f32 %v5043, %v2994
          %v5045 = vmax.f32 %v5044, %v2998
          %v5046 = vmax.f32 %v5045, %v3004
          %v5047 = vmax.f32 %v5046, %v3008
          %v5048 = vmax.f32 %v5047, %v3014
          %v5049 = vmax.f32 %v5048, %v3018
          %v5050 = vmax.f32 %v5049, %v3024
          %v5051 = vmax.f32 %v5050, %v3028
          %v5052 = vmax.f32 %v5051, %v3034
          %v5053 = vmax.f32 %v5052, %v3038
          %v5054 = vmax.f32 %v5053, %v3044
          %v5055 = vmax.f32 %v5054, %v3048
          %v5056 = vmax.f32 %v5055, %v3054
          %v5057 = vmax.f32 %v5056, %v3058
          %v5058 = vmax.f32 %v5057, %v3064
          %v5059 = vmax.f32 %v5058, %v3068
          %v5060 = vmax.f32 %v5059, %v3074
          %v5061 = vmax.f32 %v5060, %v3078
          %v5062 = vmax.f32 %v5061, %v3084
          %v5063 = vmax.f32 %v5062, %v3088
          %v5064 = vmax.f32 %v5063, %v3094
          %v5065 = vmax.f32 %v5064, %v3098
          %v5066 = vmax.f32 %v5065, %v3104
          %v5067 = vmax.f32 %v5066, %v3108
          %v5068 = vmax.f32 %v5067, %v3114
          %v5069 = vmax.f32 %v5068, %v3118
          %v5070 = vmax.f32 %v5069, %v3124
          %v5071 = vmax.f32 %v5070, %v3128
          %v5072 = vmax.f32 %v5071, %v3134
          %v5073 = vmax.f32 %v5072, %v3138
          %v5074 = vmax.f32 %v5073, %v3144
          %v5075 = vmax.f32 %v5074, %v3148
          %v5076 = vmax.f32 %v5075, %v3154
          %v5077 = vmax.f32 %v5076, %v3158
          %v5078 = vmax.f32 %v5077, %v3164
          %v5079 = vmax.f32 %v5078, %v3168
          %v5080 = vmax.f32 %v5079, %v3174
          %v5081 = vmax.f32 %v5080, %v3178
          %v5082 = vmax.f32 %v5081, %v3184
          %v5083 = vmax.f32 %v5082, %v3188
          %v5084 = vmax.f32 %v5083, %v3194
          %v5085 = vmax.f32 %v5084, %v3198
          %v5086 = vmax.f32 %v5085, %v3204
          %v5087 = vmax.f32 %v5086, %v3208
          %v5088 = vrot.slane %v5087, 4
          %v5089 = vmax.f32 %v5087, %v5088
          %v5090 = vrot.slane %v5089, 2
          %v5091 = vmax.f32 %v5089, %v5090
          %v5092 = vrot.slane %v5091, 1
          %v5093 = vmax.f32 %v5091, %v5092
          %v5102 = vcombine.low %v4610, %v4679
          %v5103 = vcombine.low %v4748, %v4817
          %v5104 = vcombine.low %v4886, %v4955
          %v5105 = vcombine.low %v5024, %v5093
          %v5107 = vunpack.c.l.s4 1966171168
          %v5108 = vunpack.c.0.s8 %v5107
          %v5109 = vlaneseq
          %v5110 = vshrl.u32 %v5109, 7
          %v5111 = vsub.s32 %v5108, %v5110
          %v5112 = vrot.slane %v5102, %v5111
          %v5114 = vunpack.c.l.s4 1966171168
          %v5115 = vunpack.c.0.s8 %v5114
          %v5116 = vlaneseq
          %v5117 = vshrl.u32 %v5116, 7
          %v5118 = vsub.s32 %v5115, %v5117
          %v5119 = vrot.slane %v5103, %v5118
          %v5121 = vunpack.c.l.s4 1966171168
          %v5122 = vunpack.c.0.s8 %v5121
          %v5123 = vlaneseq
          %v5124 = vshrl.u32 %v5123, 7
          %v5125 = vsub.s32 %v5122, %v5124
          %v5126 = vrot.slane %v5104, %v5125
          %v5128 = vunpack.c.l.s4 1966171168
          %v5129 = vunpack.c.0.s8 %v5128
          %v5130 = vlaneseq
          %v5131 = vshrl.u32 %v5130, 7
          %v5132 = vsub.s32 %v5129, %v5131
          %v5133 = vrot.slane %v5105, %v5132
          %v5134 = vcombine.low %v5112, %v5119
          %v5135 = vcombine.low %v5126, %v5133
          %v5137 = vunpack.c.l.s4 1966171168
          %v5138 = vunpack.c.0.s8 %v5137
          %v5139 = vlaneseq
          %v5140 = vshrl.u32 %v5139, 7
          %v5141 = vsub.s32 %v5138, %v5140
          %v5142 = vrot.slane %v5134, %v5141
          %v5144 = vunpack.c.l.s4 1966171168
          %v5145 = vunpack.c.0.s8 %v5144
          %v5146 = vlaneseq
          %v5147 = vshrl.u32 %v5146, 7
          %v5148 = vsub.s32 %v5145, %v5147
          %v5149 = vrot.slane %v5135, %v5148
          %v5150 = vcombine.low %v5142, %v5149
          %v5152 = vmax.f32 %v4541, %v5150
          %5153 = vst [vmem:[%s281] sm:$0xff] %v5152
        $region56: #{tpu_custom_call.1} parent=43 // pred_fallthru
          _
        %s5154 = sand.u32 %s184, 1
        %s5155 = scalar_lea.sflag [#allocation3], %s5154
        %s5156 = sand.u32 %s184, 1
        %s5157 = smul.addr %s5156, 8
        %s5158 = scalar_lea.vmem [#allocation2], %s5157
        // Predicated region
        $region57: #{tpu_custom_call.1} parent=43 // pred_check
          %p5159 = pneg %p194
        $region58: #{tpu_custom_call.1} parent=43 // pred_check_branch
          %5161 = sbr.rel (%p5159) target = $region60
        $region59: #{tpu_custom_call.1} parent=43 // pred_region
          %s5163 = ssub.s32 128, 128
          %5164 = vsyncadd %s5155, %s5163
          %s5165 = smul.addr %s26, 8
          %s5166 = smul.addr %s25, 8
          %s5167 = sadd.s32 %s5165, %s5166
          %s5168 = smul.addr %s5167, 16
          %s5169 = scalar_lea.hbm %s6, %s5168
          %s5171 = sshll.u32 %s5158, 4
          %s5172 = int_to_ptr.vmem [resolvable:$true] %s5171
          %5174 = dma.vmem_to_hbm [thread:$0]  %s5172, 128, %s5169, %s5155
        $region60: #{tpu_custom_call.1} parent=43 // pred_fallthru
          _
      $region44: #{tpu_custom_call.1} parent=5 // pred_fallthru
        _
      %p5175 = scmp.le.s32.totalorder 2, %s15
      // Predicated region
      $region61: #{tpu_custom_call.1} parent=5 // pred_check
        %p5176 = pneg %p5175
      $region62: #{tpu_custom_call.1} parent=5 // pred_check_branch
        %5178 = sbr.rel (%p5176) target = $region64
      $region63: #{tpu_custom_call.1} parent=5 // pred_region
        %s5179 = ssub.s32 %s15, 2
        // Predicated region
        $region65: #{tpu_custom_call.1} parent=63 // pred_check
          %p5180 = pneg %p200
        $region66: #{tpu_custom_call.1} parent=63 // pred_check_branch
          %5182 = sbr.rel (%p5180) target = $region68
        $region67: #{tpu_custom_call.1} parent=63 // pred_region
          %s5183 = sand.u32 %s185, 1
          %s5184 = scalar_lea.sflag [#allocation3], %s5183
          %s5185 = sand.u32 %s185, 1
          %s5186 = smul.addr %s5185, 8
          %s5187 = scalar_lea.vmem [#allocation2], %s5186
          %5188 = dma.done %s5184, 128
        $region68: #{tpu_custom_call.1} parent=63 // pred_fallthru
          _
      $region64: #{tpu_custom_call.1} parent=5 // pred_fallthru
        _
    $region6: #{tpu_custom_call.1} parent=1 // loop_footer
      %s19 = sadd.s32 1, %s15
    $region7: #{tpu_custom_call.1} parent=1 // loop_footer_branch
      %14 = sbr.rel target = $region3
    $region8: #{tpu_custom_call.1} parent=1 // loop_exit
      _
    %5189 = vsyncpa [#allocation3], 1
    %s5190 = scalar_lea.sflag [#allocation3], 1
    %5191 = vsyncpa %s5190, 1

</llo_original>
